<compile_context>
chip_gen: v7x
topology: tpu7x:2x2x1
jax: 0.10.0
libtpu: 0.0.40
codegen_flags: <defaults>
</compile_context>

<pallas_src>
import functools

import jax
import jax.numpy as jnp
from jax import lax
from jax.experimental import pallas as pl
from jax.experimental.pallas import tpu as pltpu


# ---------------------------------------------------------------------------
# helpers
# ---------------------------------------------------------------------------
_SQRT1_2 = 0.7071067811865476


def _gelu_erf(x):
    # Exact (erf-based) GELU; erf via Abramowitz–Stegun 7.1.26 (|err| < 1.5e-7),
    # built only from exp/div/select so it lowers cleanly inside Mosaic.
    z = x * _SQRT1_2
    az = jnp.abs(z)
    t = 1.0 / (1.0 + 0.3275911 * az)
    poly = t * (0.254829592 + t * (-0.284496736 + t * (1.421413741
               + t * (-1.453152027 + t * 1.061405429))))
    erf_abs = 1.0 - poly * jnp.exp(-az * az)
    erf_z = jnp.where(z < 0.0, -erf_abs, erf_abs)
    return 0.5 * x * (1.0 + erf_z)


def _pick_tile(rows):
    # Largest row-tile (multiple of 8) that divides `rows`; else the full extent.
    for cand in (2048, 1024, 512, 256, 128, 64, 32, 16, 8):
        if rows % cand == 0:
            return cand
    return rows


def _bn_fold(sum_, sumsq, count, gamma, beta, eps):
    mean = sum_ / count
    var = jnp.maximum(sumsq / count - mean * mean, 0.0)
    scale = gamma * lax.rsqrt(var + eps)
    shift = beta - mean * scale
    return scale, shift


def _bn_train_rows(t, gamma, beta, eps):
    m = jnp.mean(t, axis=0, keepdims=True)
    v = jnp.mean((t - m) ** 2, axis=0, keepdims=True)
    return (t - m) * lax.rsqrt(v + eps) * gamma + beta


# ---------------------------------------------------------------------------
# Pallas kernels
# ---------------------------------------------------------------------------
def _stage1_kernel(x_ref, r_ref, w_ref, b_ref, t1_ref, s_ref, q_ref, xs_ref):
    xa = x_ref[0] + r_ref[0]                                    # (TR, C) f32
    t1 = jnp.dot(xa.astype(jnp.bfloat16), w_ref[...],
                 preferred_element_type=jnp.float32) + b_ref[...]
    t1_ref[0] = t1
    s_ref[0, 0] = jnp.sum(t1, axis=0, keepdims=True)            # BN1 partials
    q_ref[0, 0] = jnp.sum(t1 * t1, axis=0, keepdims=True)
    xs_ref[0, 0] = jnp.sum(xa, axis=0, keepdims=True)           # avg-pool partial


def _stage2_kernel(t1_ref, sc_ref, sh_ref, w_ref, b_ref, t2_ref, s_ref, q_ref):
    h = _gelu_erf(t1_ref[0] * sc_ref[...] + sh_ref[...])        # BN1 affine + GELU
    t2 = jnp.dot(h.astype(jnp.bfloat16), w_ref[...],
                 preferred_element_type=jnp.float32) + b_ref[...]
    t2_ref[0] = t2
    s_ref[0, 0] = jnp.sum(t2, axis=0, keepdims=True)            # BN2 partials
    q_ref[0, 0] = jnp.sum(t2 * t2, axis=0, keepdims=True)


def _fuse_kernel(x_ref, r_ref, t2_ref, sc_ref, sh_ref, xg_ref, o_ref):
    xl = t2_ref[0] * sc_ref[...] + sh_ref[...]                  # BN2 affine
    wei = jax.nn.sigmoid(xl + xg_ref[0])                        # in-kernel broadcast
    o_ref[0] = 2.0 * x_ref[0] * wei + 2.0 * r_ref[0] * (1.0 - wei)


# ---------------------------------------------------------------------------
# pallas_call builders (cached per static shape)
# ---------------------------------------------------------------------------
_PAR2 = pltpu.CompilerParams(dimension_semantics=("parallel", "parallel"))


@functools.lru_cache(maxsize=None)
def _stage1_call(N, HW, C, IC, TR):
    T = HW // TR
    return pl.pallas_call(
        _stage1_kernel,
        grid=(N, T),
        in_specs=[
            pl.BlockSpec((1, TR, C), lambda n, t: (n, t, 0)),
            pl.BlockSpec((1, TR, C), lambda n, t: (n, t, 0)),
            pl.BlockSpec((C, IC), lambda n, t: (0, 0)),
            pl.BlockSpec((1, IC), lambda n, t: (0, 0)),
        ],
        out_shape=(
            jax.ShapeDtypeStruct((N, HW, IC), jnp.float32),
            jax.ShapeDtypeStruct((N, T, 1, IC), jnp.float32),
            jax.ShapeDtypeStruct((N, T, 1, IC), jnp.float32),
            jax.ShapeDtypeStruct((N, T, 1, C), jnp.float32),
        ),
        out_specs=(
            pl.BlockSpec((1, TR, IC), lambda n, t: (n, t, 0)),
            pl.BlockSpec((1, 1, 1, IC), lambda n, t: (n, t, 0, 0)),
            pl.BlockSpec((1, 1, 1, IC), lambda n, t: (n, t, 0, 0)),
            pl.BlockSpec((1, 1, 1, C), lambda n, t: (n, t, 0, 0)),
        ),
        compiler_params=_PAR2,
    )


@functools.lru_cache(maxsize=None)
def _stage2_call(N, HW, C, IC, TR):
    T = HW // TR
    return pl.pallas_call(
        _stage2_kernel,
        grid=(N, T),
        in_specs=[
            pl.BlockSpec((1, TR, IC), lambda n, t: (n, t, 0)),
            pl.BlockSpec((1, IC), lambda n, t: (0, 0)),
            pl.BlockSpec((1, IC), lambda n, t: (0, 0)),
            pl.BlockSpec((IC, C), lambda n, t: (0, 0)),
            pl.BlockSpec((1, C), lambda n, t: (0, 0)),
        ],
        out_shape=(
            jax.ShapeDtypeStruct((N, HW, C), jnp.float32),
            jax.ShapeDtypeStruct((N, T, 1, C), jnp.float32),
            jax.ShapeDtypeStruct((N, T, 1, C), jnp.float32),
        ),
        out_specs=(
            pl.BlockSpec((1, TR, C), lambda n, t: (n, t, 0)),
            pl.BlockSpec((1, 1, 1, C), lambda n, t: (n, t, 0, 0)),
            pl.BlockSpec((1, 1, 1, C), lambda n, t: (n, t, 0, 0)),
        ),
        compiler_params=_PAR2,
    )


@functools.lru_cache(maxsize=None)
def _fuse_call(N, R, CL, TR):
    T = R // TR
    spec = pl.BlockSpec((1, TR, CL), lambda n, t: (n, t, 0))
    vec = pl.BlockSpec((1, CL), lambda n, t: (0, 0))
    return pl.pallas_call(
        _fuse_kernel,
        grid=(N, T),
        in_specs=[spec, spec, spec, vec, vec,
                  pl.BlockSpec((1, 1, CL), lambda n, t: (n, 0, 0))],
        out_shape=jax.ShapeDtypeStruct((N, R, CL), jnp.float32),
        out_specs=spec,
        compiler_params=_PAR2,
    )


# ---------------------------------------------------------------------------
# AFF forward
# ---------------------------------------------------------------------------
@jax.jit
def aff_forward(params, x, residual):
    eps = 1e-5
    N, H, W, C = x.shape
    HW = H * W
    IC = params["w_l1"].shape[1]
    TR = _pick_tile(HW)
    count = float(N * HW)

    xf = x.reshape(N, HW, C)
    rf = residual.reshape(N, HW, C)

    w1 = params["w_l1"].astype(jnp.bfloat16)
    w2 = params["w_l2"].astype(jnp.bfloat16)

    # ---- stage 1: xa = x + r ; conv1 (bf16 MXU) ; partial BN1 / pool sums ----
    t1, ps1, pq1, pxa = _stage1_call(N, HW, C, IC, TR)(
        xf, rf, w1, params["b_l1"].reshape(1, IC))

    scale1, shift1 = _bn_fold(jnp.sum(ps1, axis=(0, 1, 2)),
                              jnp.sum(pq1, axis=(0, 1, 2)),
                              count, params["g_lbn1"], params["b_lbn1"], eps)

    # ---- stage 2: BN1 affine + GELU + conv2 (bf16 MXU) ; partial BN2 sums ----
    t2, ps2, pq2 = _stage2_call(N, HW, C, IC, TR)(
        t1, scale1.reshape(1, IC), shift1.reshape(1, IC),
        w2, params["b_l2"].reshape(1, C))

    scale2, shift2 = _bn_fold(jnp.sum(ps2, axis=(0, 1, 2)),
                              jnp.sum(pq2, axis=(0, 1, 2)),
                              count, params["g_lbn2"], params["b_lbn2"], eps)

    # ---- global attention branch: (N, C) matrices, plain JAX ----------------
    # TODO(synk): the global branch operates on (N, C) = (2, 64) matrices after
    # AdaptiveAvgPool2d(1); a Pallas launch here is pure overhead, so it stays
    # in plain JAX (per the performance review).
    g = jnp.sum(pxa, axis=(1, 2)) / float(HW)                   # avg pool of xa
    g1 = g @ params["w_g1"] + params["b_g1"]
    g1 = _bn_train_rows(g1, params["g_gbn1"], params["b_gbn1"], eps)
    g1 = jax.nn.gelu(g1, approximate=False)
    g2 = g1 @ params["w_g2"] + params["b_g2"]
    xg = _bn_train_rows(g2, params["g_gbn2"], params["b_gbn2"], eps)   # (N, C)

    # ---- fused BN2 + sigmoid gate + fusion, lane-dense packed view ----------
    P2 = 128 // C if (C < 128 and 128 % C == 0 and HW % (128 // C) == 0) else 1
    R, CL = HW // P2, C * P2
    TRF = _pick_tile(R)
    out = _fuse_call(N, R, CL, TRF)(
        xf.reshape(N, R, CL), rf.reshape(N, R, CL), t2.reshape(N, R, CL),
        jnp.tile(scale2, P2).reshape(1, CL),
        jnp.tile(shift2, P2).reshape(1, CL),
        jnp.tile(xg, (1, P2)).reshape(N, 1, CL))
    return out.reshape(N, H, W, C)


# ---------------------------------------------------------------------------
# Pure-JAX reference (same bf16 matmul precision) and synthetic parameters
# ---------------------------------------------------------------------------
def aff_reference(p, x, residual, eps=1e-5):
    N, H, W, C = x.shape
    IC = p["w_l1"].shape[1]
    xa = x + residual

    def mm_bf16(a, w, b):
        return jnp.dot(a.astype(jnp.bfloat16), w.astype(jnp.bfloat16),
                       preferred_element_type=jnp.float32) + b

    def bn(t, gamma, beta, axes):
        m = jnp.mean(t, axis=axes, keepdims=True)
        v = jnp.mean((t - m) ** 2, axis=axes, keepdims=True)
        return (t - m) * lax.rsqrt(v + eps) * gamma + beta

    t1 = mm_bf16(xa.reshape(-1, C), p["w_l1"], p["b_l1"]).reshape(N, H, W, IC)
    t1 = bn(t1, p["g_lbn1"], p["b_lbn1"], (0, 1, 2))
    t1 = jax.nn.gelu(t1, approximate=False)
    xl = mm_bf16(t1.reshape(-1, IC), p["w_l2"], p["b_l2"]).reshape(N, H, W, C)
    xl = bn(xl, p["g_lbn2"], p["b_lbn2"], (0, 1, 2))

    g = jnp.mean(xa, axis=(1, 2))
    g1 = g @ p["w_g1"] + p["b_g1"]
    g1 = bn(g1, p["g_gbn1"], p["b_gbn1"], (0,))
    g1 = jax.nn.gelu(g1, approximate=False)
    g2 = g1 @ p["w_g2"] + p["b_g2"]
    xg = bn(g2, p["g_gbn2"], p["b_gbn2"], (0,))

    wei = jax.nn.sigmoid(xl + xg[:, None, None, :])
    return 2.0 * x * wei + 2.0 * residual * (1.0 - wei)


def aff_params(key, channels=64, r=4):
    ic = channels // r
    ks = jax.random.split(key, 8)

    def uni(k, shape, fan_in):
        bound = fan_in ** -0.5
        return jax.random.uniform(k, shape, jnp.float32, -bound, bound)

    return {
        # local attention: Conv1x1(C->IC) -> BN -> GELU -> Conv1x1(IC->C) -> BN
        "w_l1": uni(ks[0], (channels, ic), channels),
        "b_l1": uni(ks[1], (ic,), channels),
        "g_lbn1": jnp.ones((ic,), jnp.float32),
        "b_lbn1": jnp.zeros((ic,), jnp.float32),
        "w_l2": uni(ks[2], (ic, channels), ic),
        "b_l2": uni(ks[3], (channels,), ic),
        "g_lbn2": jnp.ones((channels,), jnp.float32),
        "b_lbn2": jnp.zeros((channels,), jnp.float32),
        # global attention: AvgPool(1) -> Conv1x1 -> BN -> GELU -> Conv1x1 -> BN
        "w_g1": uni(ks[4], (channels, ic), channels),
        "b_g1": uni(ks[5], (ic,), channels),
        "g_gbn1": jnp.ones((ic,), jnp.float32),
        "b_gbn1": jnp.zeros((ic,), jnp.float32),
        "w_g2": uni(ks[6], (ic, channels), ic),
        "b_g2": uni(ks[7], (channels,), ic),
        "g_gbn2": jnp.ones((channels,), jnp.float32),
        "b_gbn2": jnp.zeros((channels,), jnp.float32),
    }


if __name__ == "__main__":
    key = jax.random.PRNGKey(0)
    pkey, xkey, rkey = jax.random.split(key, 3)

    C, RATIO = 64, 4                       # AFF defaults: channels=64, r=4
    N, H, W = 2, 16, 16
    params = aff_params(pkey, channels=C, r=RATIO)

    x_nchw = jax.random.normal(xkey, (N, C, H, W), jnp.float32)   # PyTorch layout
    r_nchw = jax.random.normal(rkey, (N, C, H, W), jnp.float32)
    x = jnp.transpose(x_nchw, (0, 2, 3, 1))                        # -> NHWC
    residual = jnp.transpose(r_nchw, (0, 2, 3, 1))

    out = jax.block_until_ready(aff_forward(params, x, residual))
    ref = jax.block_until_ready(aff_reference(params, x, residual))

    assert out.shape == (N, H, W, C)
    assert bool(jnp.all(jnp.isfinite(out)))
    assert bool(jnp.allclose(out, ref, atol=2e-2, rtol=2e-2))
    print("KERNEL_OK")
</pallas_src>

<mosaic_0001>
module attributes {stable_mosaic.version = 11 : i64} {
  func.func @_stage1_kernel(%arg0: i32, %arg1: i32, %arg2: memref<1x256x64xf32, #tpu.memory_space<vmem>>, %arg3: memref<1x256x64xf32, #tpu.memory_space<vmem>>, %arg4: memref<64x16xbf16, #tpu.memory_space<vmem>>, %arg5: memref<1x16xf32, #tpu.memory_space<vmem>>, %arg6: memref<1x256x16xf32, #tpu.memory_space<vmem>>, %arg7: memref<1x1x1x16xf32, #tpu.memory_space<vmem>>, %arg8: memref<1x1x1x16xf32, #tpu.memory_space<vmem>>, %arg9: memref<1x1x1x64xf32, #tpu.memory_space<vmem>>) attributes {dimension_semantics = [#tpu.dimension_semantics<parallel>, #tpu.dimension_semantics<parallel>], iteration_bounds = array<i64: 2, 1>, scalar_prefetch = 0 : i64, scratch_operands = 0 : i64, tpu.core_type = #tpu.core_type<tc>, window_params = [{transform_indices = @transform_0, window_bounds = array<i64: 1, 256, 64>}, {transform_indices = @transform_1, window_bounds = array<i64: 1, 256, 64>}, {pipeline_mode = #tpu.pipeline_mode<synchronous>, transform_indices = @transform_2, window_bounds = array<i64: 64, 16>}, {pipeline_mode = #tpu.pipeline_mode<synchronous>, transform_indices = @transform_3, window_bounds = array<i64: 1, 16>}, {transform_indices = @transform_4, window_bounds = array<i64: 1, 256, 16>}, {transform_indices = @transform_5, window_bounds = array<i64: 1, 1, 1, 16>}, {transform_indices = @transform_6, window_bounds = array<i64: 1, 1, 1, 16>}, {transform_indices = @transform_7, window_bounds = array<i64: 1, 1, 1, 64>}]} {
    %c0 = arith.constant 0 : index
    %c0_0 = arith.constant 0 : index
    %c0_1 = arith.constant 0 : index
    %0 = vector.load %arg2[%c0, %c0_0, %c0_1] : memref<1x256x64xf32, #tpu.memory_space<vmem>>, vector<1x256x64xf32>
    %1 = vector.shape_cast %0 : vector<1x256x64xf32> to vector<256x64xf32>
    %c0_2 = arith.constant 0 : index
    %c0_3 = arith.constant 0 : index
    %c0_4 = arith.constant 0 : index
    %2 = vector.load %arg3[%c0_2, %c0_3, %c0_4] : memref<1x256x64xf32, #tpu.memory_space<vmem>>, vector<1x256x64xf32>
    %3 = vector.shape_cast %2 : vector<1x256x64xf32> to vector<256x64xf32>
    %4 = arith.addf %1, %3 : vector<256x64xf32>
    %5 = arith.truncf %4 : vector<256x64xf32> to vector<256x64xbf16>
    %c0_5 = arith.constant 0 : index
    %c0_6 = arith.constant 0 : index
    %6 = vector.load %arg4[%c0_5, %c0_6] : memref<64x16xbf16, #tpu.memory_space<vmem>>, vector<64x16xbf16>
    %cst = arith.constant dense<0.000000e+00> : vector<256x16xf32>
    %7 = tpu.matmul %5, %6, %cst {dimension_numbers = #tpu.dot_dimension_numbers<[1], [0], [0], [1], [0, 0, 1, 1], [], []>} : vector<256x64xbf16>, vector<64x16xbf16>, vector<256x16xf32> -> vector<256x16xf32>
    %c0_7 = arith.constant 0 : index
    %c0_8 = arith.constant 0 : index
    %8 = vector.load %arg5[%c0_7, %c0_8] : memref<1x16xf32, #tpu.memory_space<vmem>>, vector<1x16xf32>
    %9 = vector.broadcast %8 : vector<1x16xf32> to vector<256x16xf32>
    %10 = arith.addf %7, %9 : vector<256x16xf32>
    %c0_9 = arith.constant 0 : index
    %c0_10 = arith.constant 0 : index
    %c0_11 = arith.constant 0 : index
    %11 = vector.load %arg6[%c0_9, %c0_10, %c0_11] : memref<1x256x16xf32, #tpu.memory_space<vmem>>, vector<1x256x16xf32>
    %12 = vector.shape_cast %11 : vector<1x256x16xf32> to vector<256x16xf32>
    %13 = vector.shape_cast %10 : vector<256x16xf32> to vector<1x256x16xf32>
    tpu.vector_store %arg6[%c0_9, %c0_10, %c0_11], %13 {strides = array<i32>} : memref<1x256x16xf32, #tpu.memory_space<vmem>>, vector<1x256x16xf32>,
    %cst_12 = arith.constant dense<0.000000e+00> : vector<16xf32>
    %14 = vector.multi_reduction <add>, %10, %cst_12 [0] : vector<256x16xf32> to vector<16xf32>
    %15 = vector.shape_cast %14 : vector<16xf32> to vector<1x16xf32>
    %c0_13 = arith.constant 0 : index
    %c0_14 = arith.constant 0 : index
    %c0_15 = arith.constant 0 : index
    %c0_16 = arith.constant 0 : index
    %16 = vector.load %arg7[%c0_13, %c0_14, %c0_15, %c0_16] : memref<1x1x1x16xf32, #tpu.memory_space<vmem>>, vector<1x1x1x16xf32>
    %17 = vector.shape_cast %16 : vector<1x1x1x16xf32> to vector<1x16xf32>
    %18 = vector.shape_cast %15 : vector<1x16xf32> to vector<1x1x1x16xf32>
    tpu.vector_store %arg7[%c0_13, %c0_14, %c0_15, %c0_16], %18 {strides = array<i32>} : memref<1x1x1x16xf32, #tpu.memory_space<vmem>>, vector<1x1x1x16xf32>,
    %19 = arith.mulf %10, %10 : vector<256x16xf32>
    %cst_17 = arith.constant dense<0.000000e+00> : vector<16xf32>
    %20 = vector.multi_reduction <add>, %19, %cst_17 [0] : vector<256x16xf32> to vector<16xf32>
    %21 = vector.shape_cast %20 : vector<16xf32> to vector<1x16xf32>
    %c0_18 = arith.constant 0 : index
    %c0_19 = arith.constant 0 : index
    %c0_20 = arith.constant 0 : index
    %c0_21 = arith.constant 0 : index
    %22 = vector.load %arg8[%c0_18, %c0_19, %c0_20, %c0_21] : memref<1x1x1x16xf32, #tpu.memory_space<vmem>>, vector<1x1x1x16xf32>
    %23 = vector.shape_cast %22 : vector<1x1x1x16xf32> to vector<1x16xf32>
    %24 = vector.shape_cast %21 : vector<1x16xf32> to vector<1x1x1x16xf32>
    tpu.vector_store %arg8[%c0_18, %c0_19, %c0_20, %c0_21], %24 {strides = array<i32>} : memref<1x1x1x16xf32, #tpu.memory_space<vmem>>, vector<1x1x1x16xf32>,
    %cst_22 = arith.constant dense<0.000000e+00> : vector<64xf32>
    %25 = vector.multi_reduction <add>, %4, %cst_22 [0] : vector<256x64xf32> to vector<64xf32>
    %26 = vector.shape_cast %25 : vector<64xf32> to vector<1x64xf32>
    %c0_23 = arith.constant 0 : index
    %c0_24 = arith.constant 0 : index
    %c0_25 = arith.constant 0 : index
    %c0_26 = arith.constant 0 : index
    %27 = vector.load %arg9[%c0_23, %c0_24, %c0_25, %c0_26] : memref<1x1x1x64xf32, #tpu.memory_space<vmem>>, vector<1x1x1x64xf32>
    %28 = vector.shape_cast %27 : vector<1x1x1x64xf32> to vector<1x64xf32>
    %29 = vector.shape_cast %26 : vector<1x64xf32> to vector<1x1x1x64xf32>
    tpu.vector_store %arg9[%c0_23, %c0_24, %c0_25, %c0_26], %29 {strides = array<i32>} : memref<1x1x1x64xf32, #tpu.memory_space<vmem>>, vector<1x1x1x64xf32>,
    return
  }
  func.func @transform_0(%arg0: i32, %arg1: i32) -> (i32, i32, i32) {
    %c0_i32 = arith.constant 0 : i32
    %c0_i32_0 = arith.constant 0 : i32
    return %arg0, %arg1, %c0_i32 : i32, i32, i32
  }
  func.func @transform_1(%arg0: i32, %arg1: i32) -> (i32, i32, i32) {
    %c0_i32 = arith.constant 0 : i32
    %c0_i32_0 = arith.constant 0 : i32
    return %arg0, %arg1, %c0_i32 : i32, i32, i32
  }
  func.func @transform_2(%arg0: i32, %arg1: i32) -> (i32, i32) {
    %c0_i32 = arith.constant 0 : i32
    %c0_i32_0 = arith.constant 0 : i32
    %c0_i32_1 = arith.constant 0 : i32
    return %c0_i32, %c0_i32_0 : i32, i32
  }
  func.func @transform_3(%arg0: i32, %arg1: i32) -> (i32, i32) {
    %c0_i32 = arith.constant 0 : i32
    %c0_i32_0 = arith.constant 0 : i32
    %c0_i32_1 = arith.constant 0 : i32
    return %c0_i32, %c0_i32_0 : i32, i32
  }
  func.func @transform_4(%arg0: i32, %arg1: i32) -> (i32, i32, i32) {
    %c0_i32 = arith.constant 0 : i32
    %c0_i32_0 = arith.constant 0 : i32
    return %arg0, %arg1, %c0_i32 : i32, i32, i32
  }
  func.func @transform_5(%arg0: i32, %arg1: i32) -> (i32, i32, i32, i32) {
    %c0_i32 = arith.constant 0 : i32
    %c0_i32_0 = arith.constant 0 : i32
    %c0_i32_1 = arith.constant 0 : i32
    return %arg0, %arg1, %c0_i32, %c0_i32_0 : i32, i32, i32, i32
  }
  func.func @transform_6(%arg0: i32, %arg1: i32) -> (i32, i32, i32, i32) {
    %c0_i32 = arith.constant 0 : i32
    %c0_i32_0 = arith.constant 0 : i32
    %c0_i32_1 = arith.constant 0 : i32
    return %arg0, %arg1, %c0_i32, %c0_i32_0 : i32, i32, i32, i32
  }
  func.func @transform_7(%arg0: i32, %arg1: i32) -> (i32, i32, i32, i32) {
    %c0_i32 = arith.constant 0 : i32
    %c0_i32_0 = arith.constant 0 : i32
    %c0_i32_1 = arith.constant 0 : i32
    return %arg0, %arg1, %c0_i32, %c0_i32_0 : i32, i32, i32, i32
  }
}

module attributes {stable_mosaic.version = 11 : i64} {
  func.func @_stage2_kernel(%arg0: i32, %arg1: i32, %arg2: memref<1x256x16xf32, #tpu.memory_space<vmem>>, %arg3: memref<1x16xf32, #tpu.memory_space<vmem>>, %arg4: memref<1x16xf32, #tpu.memory_space<vmem>>, %arg5: memref<16x64xbf16, #tpu.memory_space<vmem>>, %arg6: memref<1x64xf32, #tpu.memory_space<vmem>>, %arg7: memref<1x256x64xf32, #tpu.memory_space<vmem>>, %arg8: memref<1x1x1x64xf32, #tpu.memory_space<vmem>>, %arg9: memref<1x1x1x64xf32, #tpu.memory_space<vmem>>) attributes {dimension_semantics = [#tpu.dimension_semantics<parallel>, #tpu.dimension_semantics<parallel>], iteration_bounds = array<i64: 2, 1>, scalar_prefetch = 0 : i64, scratch_operands = 0 : i64, tpu.core_type = #tpu.core_type<tc>, window_params = [{transform_indices = @transform_0, window_bounds = array<i64: 1, 256, 16>}, {pipeline_mode = #tpu.pipeline_mode<synchronous>, transform_indices = @transform_1, window_bounds = array<i64: 1, 16>}, {pipeline_mode = #tpu.pipeline_mode<synchronous>, transform_indices = @transform_2, window_bounds = array<i64: 1, 16>}, {pipeline_mode = #tpu.pipeline_mode<synchronous>, transform_indices = @transform_3, window_bounds = array<i64: 16, 64>}, {pipeline_mode = #tpu.pipeline_mode<synchronous>, transform_indices = @transform_4, window_bounds = array<i64: 1, 64>}, {transform_indices = @transform_5, window_bounds = array<i64: 1, 256, 64>}, {transform_indices = @transform_6, window_bounds = array<i64: 1, 1, 1, 64>}, {transform_indices = @transform_7, window_bounds = array<i64: 1, 1, 1, 64>}]} {
    %c0 = arith.constant 0 : index
    %c0_0 = arith.constant 0 : index
    %c0_1 = arith.constant 0 : index
    %0 = vector.load %arg2[%c0, %c0_0, %c0_1] : memref<1x256x16xf32, #tpu.memory_space<vmem>>, vector<1x256x16xf32>
    %1 = vector.shape_cast %0 : vector<1x256x16xf32> to vector<256x16xf32>
    %c0_2 = arith.constant 0 : index
    %c0_3 = arith.constant 0 : index
    %2 = vector.load %arg3[%c0_2, %c0_3] : memref<1x16xf32, #tpu.memory_space<vmem>>, vector<1x16xf32>
    %3 = vector.broadcast %2 : vector<1x16xf32> to vector<256x16xf32>
    %4 = arith.mulf %1, %3 : vector<256x16xf32>
    %c0_4 = arith.constant 0 : index
    %c0_5 = arith.constant 0 : index
    %5 = vector.load %arg4[%c0_4, %c0_5] : memref<1x16xf32, #tpu.memory_space<vmem>>, vector<1x16xf32>
    %6 = vector.broadcast %5 : vector<1x16xf32> to vector<256x16xf32>
    %7 = arith.addf %4, %6 : vector<256x16xf32>
    %cst = arith.constant 0.707106769 : f32
    %8 = vector.broadcast %cst : f32 to vector<256x16xf32>
    %9 = arith.mulf %7, %8 : vector<256x16xf32>
    %10 = math.absf %9 : vector<256x16xf32>
    %cst_6 = arith.constant 0.327591091 : f32
    %11 = vector.broadcast %cst_6 : f32 to vector<256x16xf32>
    %12 = arith.mulf %11, %10 : vector<256x16xf32>
    %cst_7 = arith.constant 1.000000e+00 : f32
    %13 = vector.broadcast %cst_7 : f32 to vector<256x16xf32>
    %14 = arith.addf %13, %12 : vector<256x16xf32>
    %cst_8 = arith.constant 1.000000e+00 : f32
    %15 = vector.broadcast %cst_8 : f32 to vector<256x16xf32>
    %16 = arith.divf %15, %14 : vector<256x16xf32>
    %cst_9 = arith.constant 1.06140542 : f32
    %17 = vector.broadcast %cst_9 : f32 to vector<256x16xf32>
    %18 = arith.mulf %16, %17 : vector<256x16xf32>
    %cst_10 = arith.constant -1.45315206 : f32
    %19 = vector.broadcast %cst_10 : f32 to vector<256x16xf32>
    %20 = arith.addf %19, %18 : vector<256x16xf32>
    %21 = arith.mulf %16, %20 : vector<256x16xf32>
    %cst_11 = arith.constant 1.42141378 : f32
    %22 = vector.broadcast %cst_11 : f32 to vector<256x16xf32>
    %23 = arith.addf %22, %21 : vector<256x16xf32>
    %24 = arith.mulf %16, %23 : vector<256x16xf32>
    %cst_12 = arith.constant -0.284496725 : f32
    %25 = vector.broadcast %cst_12 : f32 to vector<256x16xf32>
    %26 = arith.addf %25, %24 : vector<256x16xf32>
    %27 = arith.mulf %16, %26 : vector<256x16xf32>
    %cst_13 = arith.constant 0.254829586 : f32
    %28 = vector.broadcast %cst_13 : f32 to vector<256x16xf32>
    %29 = arith.addf %28, %27 : vector<256x16xf32>
    %30 = arith.mulf %16, %29 : vector<256x16xf32>
    %cst_14 = arith.constant 0.000000e+00 : f32
    %31 = vector.broadcast %cst_14 : f32 to vector<256x16xf32>
    %32 = arith.subf %31, %10 : vector<256x16xf32>
    %33 = arith.mulf %32, %10 : vector<256x16xf32>
    %34 = math.exp %33 : vector<256x16xf32>
    %35 = arith.mulf %30, %34 : vector<256x16xf32>
    %cst_15 = arith.constant 1.000000e+00 : f32
    %36 = vector.broadcast %cst_15 : f32 to vector<256x16xf32>
    %37 = arith.subf %36, %35 : vector<256x16xf32>
    %cst_16 = arith.constant 0.000000e+00 : f32
    %38 = vector.broadcast %cst_16 : f32 to vector<256x16xf32>
    %39 = arith.cmpf olt, %9, %38 : vector<256x16xf32>
    %cst_17 = arith.constant 0.000000e+00 : f32
    %40 = vector.broadcast %cst_17 : f32 to vector<256x16xf32>
    %41 = arith.subf %40, %37 : vector<256x16xf32>
    %42 = arith.select %39, %41, %37 : vector<256x16xi1>, vector<256x16xf32>
    %cst_18 = arith.constant 5.000000e-01 : f32
    %43 = vector.broadcast %cst_18 : f32 to vector<256x16xf32>
    %44 = arith.mulf %43, %7 : vector<256x16xf32>
    %cst_19 = arith.constant 1.000000e+00 : f32
    %45 = vector.broadcast %cst_19 : f32 to vector<256x16xf32>
    %46 = arith.addf %45, %42 : vector<256x16xf32>
    %47 = arith.mulf %44, %46 : vector<256x16xf32>
    %48 = arith.truncf %47 : vector<256x16xf32> to vector<256x16xbf16>
    %c0_20 = arith.constant 0 : index
    %c0_21 = arith.constant 0 : index
    %49 = vector.load %arg5[%c0_20, %c0_21] : memref<16x64xbf16, #tpu.memory_space<vmem>>, vector<16x64xbf16>
    %cst_22 = arith.constant dense<0.000000e+00> : vector<256x64xf32>
    %50 = tpu.matmul %48, %49, %cst_22 {dimension_numbers = #tpu.dot_dimension_numbers<[1], [0], [0], [1], [0, 0, 1, 1], [], []>} : vector<256x16xbf16>, vector<16x64xbf16>, vector<256x64xf32> -> vector<256x64xf32>
    %c0_23 = arith.constant 0 : index
    %c0_24 = arith.constant 0 : index
    %51 = vector.load %arg6[%c0_23, %c0_24] : memref<1x64xf32, #tpu.memory_space<vmem>>, vector<1x64xf32>
    %52 = vector.broadcast %51 : vector<1x64xf32> to vector<256x64xf32>
    %53 = arith.addf %50, %52 : vector<256x64xf32>
    %c0_25 = arith.constant 0 : index
    %c0_26 = arith.constant 0 : index
    %c0_27 = arith.constant 0 : index
    %54 = vector.load %arg7[%c0_25, %c0_26, %c0_27] : memref<1x256x64xf32, #tpu.memory_space<vmem>>, vector<1x256x64xf32>
    %55 = vector.shape_cast %54 : vector<1x256x64xf32> to vector<256x64xf32>
    %56 = vector.shape_cast %53 : vector<256x64xf32> to vector<1x256x64xf32>
    tpu.vector_store %arg7[%c0_25, %c0_26, %c0_27], %56 {strides = array<i32>} : memref<1x256x64xf32, #tpu.memory_space<vmem>>, vector<1x256x64xf32>,
    %cst_28 = arith.constant dense<0.000000e+00> : vector<64xf32>
    %57 = vector.multi_reduction <add>, %53, %cst_28 [0] : vector<256x64xf32> to vector<64xf32>
    %58 = vector.shape_cast %57 : vector<64xf32> to vector<1x64xf32>
    %c0_29 = arith.constant 0 : index
    %c0_30 = arith.constant 0 : index
    %c0_31 = arith.constant 0 : index
    %c0_32 = arith.constant 0 : index
    %59 = vector.load %arg8[%c0_29, %c0_30, %c0_31, %c0_32] : memref<1x1x1x64xf32, #tpu.memory_space<vmem>>, vector<1x1x1x64xf32>
    %60 = vector.shape_cast %59 : vector<1x1x1x64xf32> to vector<1x64xf32>
    %61 = vector.shape_cast %58 : vector<1x64xf32> to vector<1x1x1x64xf32>
    tpu.vector_store %arg8[%c0_29, %c0_30, %c0_31, %c0_32], %61 {strides = array<i32>} : memref<1x1x1x64xf32, #tpu.memory_space<vmem>>, vector<1x1x1x64xf32>,
    %62 = arith.mulf %53, %53 : vector<256x64xf32>
    %cst_33 = arith.constant dense<0.000000e+00> : vector<64xf32>
    %63 = vector.multi_reduction <add>, %62, %cst_33 [0] : vector<256x64xf32> to vector<64xf32>
    %64 = vector.shape_cast %63 : vector<64xf32> to vector<1x64xf32>
    %c0_34 = arith.constant 0 : index
    %c0_35 = arith.constant 0 : index
    %c0_36 = arith.constant 0 : index
    %c0_37 = arith.constant 0 : index
    %65 = vector.load %arg9[%c0_34, %c0_35, %c0_36, %c0_37] : memref<1x1x1x64xf32, #tpu.memory_space<vmem>>, vector<1x1x1x64xf32>
    %66 = vector.shape_cast %65 : vector<1x1x1x64xf32> to vector<1x64xf32>
    %67 = vector.shape_cast %64 : vector<1x64xf32> to vector<1x1x1x64xf32>
    tpu.vector_store %arg9[%c0_34, %c0_35, %c0_36, %c0_37], %67 {strides = array<i32>} : memref<1x1x1x64xf32, #tpu.memory_space<vmem>>, vector<1x1x1x64xf32>,
    return
  }
  func.func @transform_0(%arg0: i32, %arg1: i32) -> (i32, i32, i32) {
    %c0_i32 = arith.constant 0 : i32
    %c0_i32_0 = arith.constant 0 : i32
    return %arg0, %arg1, %c0_i32 : i32, i32, i32
  }
  func.func @transform_1(%arg0: i32, %arg1: i32) -> (i32, i32) {
    %c0_i32 = arith.constant 0 : i32
    %c0_i32_0 = arith.constant 0 : i32
    %c0_i32_1 = arith.constant 0 : i32
    return %c0_i32, %c0_i32_0 : i32, i32
  }
  func.func @transform_2(%arg0: i32, %arg1: i32) -> (i32, i32) {
    %c0_i32 = arith.constant 0 : i32
    %c0_i32_0 = arith.constant 0 : i32
    %c0_i32_1 = arith.constant 0 : i32
    return %c0_i32, %c0_i32_0 : i32, i32
  }
  func.func @transform_3(%arg0: i32, %arg1: i32) -> (i32, i32) {
    %c0_i32 = arith.constant 0 : i32
    %c0_i32_0 = arith.constant 0 : i32
    %c0_i32_1 = arith.constant 0 : i32
    return %c0_i32, %c0_i32_0 : i32, i32
  }
  func.func @transform_4(%arg0: i32, %arg1: i32) -> (i32, i32) {
    %c0_i32 = arith.constant 0 : i32
    %c0_i32_0 = arith.constant 0 : i32
    %c0_i32_1 = arith.constant 0 : i32
    return %c0_i32, %c0_i32_0 : i32, i32
  }
  func.func @transform_5(%arg0: i32, %arg1: i32) -> (i32, i32, i32) {
    %c0_i32 = arith.constant 0 : i32
    %c0_i32_0 = arith.constant 0 : i32
    return %arg0, %arg1, %c0_i32 : i32, i32, i32
  }
  func.func @transform_6(%arg0: i32, %arg1: i32) -> (i32, i32, i32, i32) {
    %c0_i32 = arith.constant 0 : i32
    %c0_i32_0 = arith.constant 0 : i32
    %c0_i32_1 = arith.constant 0 : i32
    return %arg0, %arg1, %c0_i32, %c0_i32_0 : i32, i32, i32, i32
  }
  func.func @transform_7(%arg0: i32, %arg1: i32) -> (i32, i32, i32, i32) {
    %c0_i32 = arith.constant 0 : i32
    %c0_i32_0 = arith.constant 0 : i32
    %c0_i32_1 = arith.constant 0 : i32
    return %arg0, %arg1, %c0_i32, %c0_i32_0 : i32, i32, i32, i32
  }
}

module attributes {stable_mosaic.version = 11 : i64} {
  func.func @_fuse_kernel(%arg0: i32, %arg1: i32, %arg2: memref<1x128x128xf32, #tpu.memory_space<vmem>>, %arg3: memref<1x128x128xf32, #tpu.memory_space<vmem>>, %arg4: memref<1x128x128xf32, #tpu.memory_space<vmem>>, %arg5: memref<1x128xf32, #tpu.memory_space<vmem>>, %arg6: memref<1x128xf32, #tpu.memory_space<vmem>>, %arg7: memref<1x1x128xf32, #tpu.memory_space<vmem>>, %arg8: memref<1x128x128xf32, #tpu.memory_space<vmem>>) attributes {dimension_semantics = [#tpu.dimension_semantics<parallel>, #tpu.dimension_semantics<parallel>], iteration_bounds = array<i64: 2, 1>, scalar_prefetch = 0 : i64, scratch_operands = 0 : i64, tpu.core_type = #tpu.core_type<tc>, window_params = [{transform_indices = @transform_0, window_bounds = array<i64: 1, 128, 128>}, {transform_indices = @transform_1, window_bounds = array<i64: 1, 128, 128>}, {transform_indices = @transform_2, window_bounds = array<i64: 1, 128, 128>}, {pipeline_mode = #tpu.pipeline_mode<synchronous>, transform_indices = @transform_3, window_bounds = array<i64: 1, 128>}, {pipeline_mode = #tpu.pipeline_mode<synchronous>, transform_indices = @transform_4, window_bounds = array<i64: 1, 128>}, {transform_indices = @transform_5, window_bounds = array<i64: 1, 1, 128>}, {transform_indices = @transform_6, window_bounds = array<i64: 1, 128, 128>}]} {
    %c0 = arith.constant 0 : index
    %c0_0 = arith.constant 0 : index
    %c0_1 = arith.constant 0 : index
    %0 = vector.load %arg4[%c0, %c0_0, %c0_1] : memref<1x128x128xf32, #tpu.memory_space<vmem>>, vector<1x128x128xf32>
    %1 = vector.shape_cast %0 : vector<1x128x128xf32> to vector<128x128xf32>
    %c0_2 = arith.constant 0 : index
    %c0_3 = arith.constant 0 : index
    %2 = vector.load %arg5[%c0_2, %c0_3] : memref<1x128xf32, #tpu.memory_space<vmem>>, vector<1x128xf32>
    %3 = vector.broadcast %2 : vector<1x128xf32> to vector<128x128xf32>
    %4 = arith.mulf %1, %3 : vector<128x128xf32>
    %c0_4 = arith.constant 0 : index
    %c0_5 = arith.constant 0 : index
    %5 = vector.load %arg6[%c0_4, %c0_5] : memref<1x128xf32, #tpu.memory_space<vmem>>, vector<1x128xf32>
    %6 = vector.broadcast %5 : vector<1x128xf32> to vector<128x128xf32>
    %7 = arith.addf %4, %6 : vector<128x128xf32>
    %c0_6 = arith.constant 0 : index
    %c0_7 = arith.constant 0 : index
    %c0_8 = arith.constant 0 : index
    %8 = vector.load %arg7[%c0_6, %c0_7, %c0_8] : memref<1x1x128xf32, #tpu.memory_space<vmem>>, vector<1x1x128xf32>
    %9 = vector.shape_cast %8 : vector<1x1x128xf32> to vector<1x128xf32>
    %10 = vector.broadcast %9 : vector<1x128xf32> to vector<128x128xf32>
    %11 = arith.addf %7, %10 : vector<128x128xf32>
    %12 = arith.negf %11 : vector<128x128xf32>
    %13 = math.exp %12 : vector<128x128xf32>
    %cst = arith.constant 1.000000e+00 : f32
    %14 = vector.broadcast %cst : f32 to vector<128x128xf32>
    %15 = arith.addf %14, %13 : vector<128x128xf32>
    %16 = arith.divf %14, %15 : vector<128x128xf32>
    %c0_9 = arith.constant 0 : index
    %c0_10 = arith.constant 0 : index
    %c0_11 = arith.constant 0 : index
    %17 = vector.load %arg2[%c0_9, %c0_10, %c0_11] : memref<1x128x128xf32, #tpu.memory_space<vmem>>, vector<1x128x128xf32>
    %18 = vector.shape_cast %17 : vector<1x128x128xf32> to vector<128x128xf32>
    %cst_12 = arith.constant 2.000000e+00 : f32
    %19 = vector.broadcast %cst_12 : f32 to vector<128x128xf32>
    %20 = arith.mulf %19, %18 : vector<128x128xf32>
    %21 = arith.mulf %20, %16 : vector<128x128xf32>
    %c0_13 = arith.constant 0 : index
    %c0_14 = arith.constant 0 : index
    %c0_15 = arith.constant 0 : index
    %22 = vector.load %arg3[%c0_13, %c0_14, %c0_15] : memref<1x128x128xf32, #tpu.memory_space<vmem>>, vector<1x128x128xf32>
    %23 = vector.shape_cast %22 : vector<1x128x128xf32> to vector<128x128xf32>
    %cst_16 = arith.constant 2.000000e+00 : f32
    %24 = vector.broadcast %cst_16 : f32 to vector<128x128xf32>
    %25 = arith.mulf %24, %23 : vector<128x128xf32>
    %cst_17 = arith.constant 1.000000e+00 : f32
    %26 = vector.broadcast %cst_17 : f32 to vector<128x128xf32>
    %27 = arith.subf %26, %16 : vector<128x128xf32>
    %28 = arith.mulf %25, %27 : vector<128x128xf32>
    %29 = arith.addf %21, %28 : vector<128x128xf32>
    %c0_18 = arith.constant 0 : index
    %c0_19 = arith.constant 0 : index
    %c0_20 = arith.constant 0 : index
    %30 = vector.load %arg8[%c0_18, %c0_19, %c0_20] : memref<1x128x128xf32, #tpu.memory_space<vmem>>, vector<1x128x128xf32>
    %31 = vector.shape_cast %30 : vector<1x128x128xf32> to vector<128x128xf32>
    %32 = vector.shape_cast %29 : vector<128x128xf32> to vector<1x128x128xf32>
    tpu.vector_store %arg8[%c0_18, %c0_19, %c0_20], %32 {strides = array<i32>} : memref<1x128x128xf32, #tpu.memory_space<vmem>>, vector<1x128x128xf32>,
    return
  }
  func.func @transform_0(%arg0: i32, %arg1: i32) -> (i32, i32, i32) {
    %c0_i32 = arith.constant 0 : i32
    %c0_i32_0 = arith.constant 0 : i32
    return %arg0, %arg1, %c0_i32 : i32, i32, i32
  }
  func.func @transform_1(%arg0: i32, %arg1: i32) -> (i32, i32, i32) {
    %c0_i32 = arith.constant 0 : i32
    %c0_i32_0 = arith.constant 0 : i32
    return %arg0, %arg1, %c0_i32 : i32, i32, i32
  }
  func.func @transform_2(%arg0: i32, %arg1: i32) -> (i32, i32, i32) {
    %c0_i32 = arith.constant 0 : i32
    %c0_i32_0 = arith.constant 0 : i32
    return %arg0, %arg1, %c0_i32 : i32, i32, i32
  }
  func.func @transform_3(%arg0: i32, %arg1: i32) -> (i32, i32) {
    %c0_i32 = arith.constant 0 : i32
    %c0_i32_0 = arith.constant 0 : i32
    %c0_i32_1 = arith.constant 0 : i32
    return %c0_i32, %c0_i32_0 : i32, i32
  }
  func.func @transform_4(%arg0: i32, %arg1: i32) -> (i32, i32) {
    %c0_i32 = arith.constant 0 : i32
    %c0_i32_0 = arith.constant 0 : i32
    %c0_i32_1 = arith.constant 0 : i32
    return %c0_i32, %c0_i32_0 : i32, i32
  }
  func.func @transform_5(%arg0: i32, %arg1: i32) -> (i32, i32, i32) {
    %c0_i32 = arith.constant 0 : i32
    %c0_i32_0 = arith.constant 0 : i32
    %c0_i32_1 = arith.constant 0 : i32
    return %arg0, %c0_i32, %c0_i32_0 : i32, i32, i32
  }
  func.func @transform_6(%arg0: i32, %arg1: i32) -> (i32, i32, i32) {
    %c0_i32 = arith.constant 0 : i32
    %c0_i32_0 = arith.constant 0 : i32
    return %arg0, %arg1, %c0_i32 : i32, i32, i32
  }
}

</mosaic_0001>

<llo_original>
// kernel: tile.18
$region0: #{tile.18}
  #allocation0 [shape = 's32[1]{0}', space=sflag, size = 0x4, scoped, tag = 'scoped memory for tile.18']
  %s0 = inlined_call_operand.vmem [shape: f32[64], index: 0, kind: input, shape index: {}]
  %s1 = inlined_call_operand.vmem [shape: f32[2,64], index: 1, kind: output, shape index: {}]
  // Predicated region
  $region2: #{tile.18} parent=0 // pred_check
    _
  $region3: #{tile.18} parent=0 // pred_check_branch
    %3 = sbr.rel (0) target = $region5
  $region4: #{tile.18} parent=0 // pred_region
    _
  $region5: #{tile.18} parent=0 // pred_fallthru
    _
  %v4 = vld [vmem:[%s0] ss:$0 sm:$0xff]
  %5 = vst [vmem:[%s1] sm:$0x3] %v4

// kernel: tile.19
$region0: #{tile.19}
  %s0 = inlined_call_operand.vmem [shape: f32[2,64], index: 0, kind: input, shape index: {}]
  %s1 = inlined_call_operand.vmem [shape: f32[1,128], index: 1, kind: output, shape index: {}]
  $region1: #{tile.19} parent=0
    #allocation0 [shape = 'u8[4096]{0}', space=vmem, size = 0x1000, scoped, tag = 'scoped mem for output reshape']
    #allocation1 [shape = 'u8[4096]{0}', space=vmem, size = 0x1000, scoped, tag = 'scoped mem for input reshape']
    %s3 = sshllo.u32 0, 2
    %v4 = vld [vmem:[%s0] sm:%s3]
    %5 = vst [vmem:[#allocation1] sm:%s3] %v4
    %v6 = vld [vmem:[#allocation1] sm:$0x1]
    %vm7 = vcmask 523264
    %8 = vst.msk [vmem:[#allocation0] sm:$0x1] %vm7, %v6
    %s9 = scalar_lea.vmem [#allocation1], 1
    %v10 = vld [vmem:[%s9] sm:$0x1]
    %11 = vrot.lane.b32.xlu0 %v10, 64
    %v12 = vpop.permute.xlu0 %11
    %vm13 = vcmask 1048064
    %14 = vst.msk [vmem:[#allocation0] sm:$0x1] %vm13, %v12
    %s16 = sshllo.u32 0, 1
    %v18 = vld [vmem:[#allocation0] sm:%s16]
    %s19 = sshllo.u32 0, 1
    %20 = vst [vmem:[%s1] sm:%s19] %v18

// kernel: aff_forward.3
$region0: #{aff_forward.3}
  #allocation0 [shape = 'u32[]', space=smem, size = 0x4, offset = 0x4, fixed_abs, tag = 'smem constant byte address 0x4 - core index']
  #allocation1 [shape = 'u32[144,128]{1,0:T(1,128)}', space=vmem, size = 0x12000, scoped, tag = 'internal scratch']
  %s0 = inlined_call_operand.hbm [shape: f32[2,256,64], index: 0, kind: input, shape index: {}]
  %s1 = inlined_call_operand.hbm [shape: f32[2,256,64], index: 1, kind: input, shape index: {}]
  %s2 = inlined_call_operand.vmem [shape: bf16[64,16], index: 2, kind: input, shape index: {}]
  %s3 = inlined_call_operand.vmem [shape: f32[1,16], index: 3, kind: input, shape index: {}]
  %s4 = inlined_call_operand.vmem [shape: f32[2,256,16], index: 4, kind: output, shape index: {0}]
  %s5 = inlined_call_operand.vmem [shape: f32[2,1,1,16], index: 5, kind: output, shape index: {1}]
  %s6 = inlined_call_operand.vmem [shape: f32[2,1,1,16], index: 6, kind: output, shape index: {2}]
  %s7 = inlined_call_operand.vmem [shape: f32[2,1,1,64], index: 7, kind: output, shape index: {3}]
  %8 = xla_tuple %s4, %s5, %s6, %s7
  %s9 = sld [smem:[#allocation0]]
  $region81: #{aff_forward.3} parent=0
    _
  %s11 = ssub.s32 1, %s9
  %s12 = scalar_select 0, %s11, %s9
  $region1: #{aff_forward.3} parent=0
    #allocation2 [shape = 'u8[262144]{0}', space=vmem, size = 0x40000, scoped, tag = 'input window, operand 0']
    #allocation3 [shape = 's32[2]{0}', space=sflag, size = 0x8, scoped, tag = 'scoped memory for aff_forward.3']
    #allocation4 [shape = 'u8[262144]{0}', space=vmem, size = 0x40000, scoped, tag = 'input window, operand 1']
    #allocation5 [shape = 's32[2]{0}', space=sflag, size = 0x8, scoped, tag = 'scoped memory for aff_forward.3']
    %13 = vsyncpa [#allocation3], 0
    %s14 = scalar_lea.sflag [#allocation3], 1
    %15 = vsyncpa %s14, 0
    %16 = vsyncpa [#allocation5], 0
    %s17 = scalar_lea.sflag [#allocation5], 1
    %18 = vsyncpa %s17, 0
    loop: start=0, step=1, limit=4
    $region2: #{aff_forward.3} parent=1 // loop_pre_header
      _
    $region3: #{aff_forward.3} parent=1 // loop_header
      %s20 = sphi 0, %s24
      %p21 = scmp.ge.s32.totalorder %s20, 4
      %s27 = sphi 0, %s39
      %s28 = sphi 0, %s35
      %s29 = sphi 0, %s27
      %s30 = sphi 0, %s28
      %s31 = sphi 0, %s29
      %s32 = sphi 0, %s30
      %s44 = sphi 0, %s46
      %s47 = sphi 0, %s44
      %s48 = sphi 0, %s47
      %s64 = sphi 0, %s48
      %s72 = sphi 0, %s74
      %s75 = sphi 0, %s72
      %s76 = sphi 0, %s75
      %s92 = sphi 0, %s76
      %s96 = sphi 0, %s96
      %s98 = sphi 0, %s96
      %s99 = sphi 0, %s98
      %s113 = sphi 0, %s99
      %s117 = sphi 0, %s117
      %s119 = sphi 0, %s117
      %s120 = sphi 0, %s119
      %s134 = sphi 0, %s120
      %s142 = sphi 0, %s144
      %s145 = sphi 0, %s142
      %s146 = sphi 0, %s145
      %s162 = sphi 0, %s146
      %s170 = sphi 0, %s172
      %s173 = sphi 0, %s170
      %s174 = sphi 0, %s173
      %s190 = sphi 0, %s174
      %s198 = sphi 0, %s200
      %s201 = sphi 0, %s198
      %s202 = sphi 0, %s201
      %s218 = sphi 0, %s202
      %s226 = sphi 0, %s228
      %s229 = sphi 0, %s226
      %s230 = sphi 0, %s229
      %s246 = sphi 0, %s230
    $region4: #{aff_forward.3} parent=1 // loop_header_branch
      %23 = sbr.rel (%p21) target = $region8
    $region5: #{aff_forward.3} parent=1 // loop_body
      %s25 = ssub.s32 %s20, 1
      %s26 = ssub.s32 %s20, 2
      %s33 = sadd.s32 1, %s28
      %p34 = scmp.ge.s32.totalorder %s33, 1
      %s35 = scalar_select %p34, 0, %s33
      %s36 = sadd.s32 1, %s27
      %s37 = scalar_select %p34, %s36, %s27
      %p38 = scmp.ge.s32.totalorder %s37, 2
      %s39 = scalar_select %p38, 0, %s37
      %s40 = ssub.s32 %s27, %s39
      %s41 = ssub.s32 %s28, %s35
      %s42 = sor.u32 %s40, %s41
      %p43 = scmp.eq.s32.totalorder %s42, 0
      %s45 = sadd.s32 %s44, 1
      %s46 = scalar_select %p43, %s44, %s45
      %p49 = pneg %p43
      %p50 = scmp.eq.s32.totalorder %s20, 1
      %p51 = por %p49, %p50
      %p52 = scmp.ne.s32.totalorder %s44, %s47
      %p53 = scmp.eq.s32.totalorder %s20, 0
      %p54 = por %p52, %p53
      %p55 = scmp.ne.s32.totalorder %s44, %s47
      %p56 = scmp.eq.s32.totalorder %s25, 1
      %p57 = por %p55, %p56
      %p58 = scmp.ne.s32.totalorder %s47, %s48
      %p59 = scmp.eq.s32.totalorder %s25, 0
      %p60 = por %p58, %p59
      %p61 = scmp.ne.s32.totalorder %s47, %s48
      %p62 = scmp.eq.s32.totalorder %s26, 1
      %p63 = por %p61, %p62
      %p65 = scmp.ne.s32.totalorder %s48, %s64
      %p66 = scmp.eq.s32.totalorder %s26, 0
      %p67 = por %p65, %p66
      %s68 = ssub.s32 %s27, %s39
      %s69 = ssub.s32 %s28, %s35
      %s70 = sor.u32 %s68, %s69
      %p71 = scmp.eq.s32.totalorder %s70, 0
      %s73 = sadd.s32 %s72, 1
      %s74 = scalar_select %p71, %s72, %s73
      %p77 = pneg %p71
      %p78 = scmp.eq.s32.totalorder %s20, 1
      %p79 = por %p77, %p78
      %p80 = scmp.ne.s32.totalorder %s72, %s75
      %p81 = scmp.eq.s32.totalorder %s20, 0
      %p82 = por %p80, %p81
      %p83 = scmp.ne.s32.totalorder %s72, %s75
      %p84 = scmp.eq.s32.totalorder %s25, 1
      %p85 = por %p83, %p84
      %p86 = scmp.ne.s32.totalorder %s75, %s76
      %p87 = scmp.eq.s32.totalorder %s25, 0
      %p88 = por %p86, %p87
      %p89 = scmp.ne.s32.totalorder %s75, %s76
      %p90 = scmp.eq.s32.totalorder %s26, 1
      %p91 = por %p89, %p90
      %p93 = scmp.ne.s32.totalorder %s76, %s92
      %p94 = scmp.eq.s32.totalorder %s26, 0
      %p95 = por %p93, %p94
      %s97 = sadd.s32 %s96, 1
      %p100 = scmp.eq.s32.totalorder %s20, 1
      %p101 = scmp.ne.s32.totalorder %s96, %s98
      %p102 = scmp.eq.s32.totalorder %s20, 0
      %p103 = por %p101, %p102
      %p104 = scmp.ne.s32.totalorder %s96, %s98
      %p105 = scmp.eq.s32.totalorder %s25, 1
      %p106 = por %p104, %p105
      %p107 = scmp.ne.s32.totalorder %s98, %s99
      %p108 = scmp.eq.s32.totalorder %s25, 0
      %p109 = por %p107, %p108
      %p110 = scmp.ne.s32.totalorder %s98, %s99
      %p111 = scmp.eq.s32.totalorder %s26, 1
      %p112 = por %p110, %p111
      %p114 = scmp.ne.s32.totalorder %s99, %s113
      %p115 = scmp.eq.s32.totalorder %s26, 0
      %p116 = por %p114, %p115
      %s118 = sadd.s32 %s117, 1
      %p121 = scmp.eq.s32.totalorder %s20, 1
      %p122 = scmp.ne.s32.totalorder %s117, %s119
      %p123 = scmp.eq.s32.totalorder %s20, 0
      %p124 = por %p122, %p123
      %p125 = scmp.ne.s32.totalorder %s117, %s119
      %p126 = scmp.eq.s32.totalorder %s25, 1
      %p127 = por %p125, %p126
      %p128 = scmp.ne.s32.totalorder %s119, %s120
      %p129 = scmp.eq.s32.totalorder %s25, 0
      %p130 = por %p128, %p129
      %p131 = scmp.ne.s32.totalorder %s119, %s120
      %p132 = scmp.eq.s32.totalorder %s26, 1
      %p133 = por %p131, %p132
      %p135 = scmp.ne.s32.totalorder %s120, %s134
      %p136 = scmp.eq.s32.totalorder %s26, 0
      %p137 = por %p135, %p136
      %s138 = ssub.s32 %s27, %s39
      %s139 = ssub.s32 %s28, %s35
      %s140 = sor.u32 %s138, %s139
      %p141 = scmp.eq.s32.totalorder %s140, 0
      %s143 = sadd.s32 %s142, 1
      %s144 = scalar_select %p141, %s142, %s143
      %p147 = pneg %p141
      %p148 = scmp.eq.s32.totalorder %s20, 1
      %p149 = por %p147, %p148
      %p150 = scmp.ne.s32.totalorder %s142, %s145
      %p151 = scmp.eq.s32.totalorder %s20, 0
      %p152 = por %p150, %p151
      %p153 = scmp.ne.s32.totalorder %s142, %s145
      %p154 = scmp.eq.s32.totalorder %s25, 1
      %p155 = por %p153, %p154
      %p156 = scmp.ne.s32.totalorder %s145, %s146
      %p157 = scmp.eq.s32.totalorder %s25, 0
      %p158 = por %p156, %p157
      %p159 = scmp.ne.s32.totalorder %s145, %s146
      %p160 = scmp.eq.s32.totalorder %s26, 1
      %p161 = por %p159, %p160
      %p163 = scmp.ne.s32.totalorder %s146, %s162
      %p164 = scmp.eq.s32.totalorder %s26, 0
      %p165 = por %p163, %p164
      %s166 = ssub.s32 %s27, %s39
      %s167 = ssub.s32 %s28, %s35
      %s168 = sor.u32 %s166, %s167
      %p169 = scmp.eq.s32.totalorder %s168, 0
      %s171 = sadd.s32 %s170, 1
      %s172 = scalar_select %p169, %s170, %s171
      %p175 = pneg %p169
      %p176 = scmp.eq.s32.totalorder %s20, 1
      %p177 = por %p175, %p176
      %p178 = scmp.ne.s32.totalorder %s170, %s173
      %p179 = scmp.eq.s32.totalorder %s20, 0
      %p180 = por %p178, %p179
      %p181 = scmp.ne.s32.totalorder %s170, %s173
      %p182 = scmp.eq.s32.totalorder %s25, 1
      %p183 = por %p181, %p182
      %p184 = scmp.ne.s32.totalorder %s173, %s174
      %p185 = scmp.eq.s32.totalorder %s25, 0
      %p186 = por %p184, %p185
      %p187 = scmp.ne.s32.totalorder %s173, %s174
      %p188 = scmp.eq.s32.totalorder %s26, 1
      %p189 = por %p187, %p188
      %p191 = scmp.ne.s32.totalorder %s174, %s190
      %p192 = scmp.eq.s32.totalorder %s26, 0
      %p193 = por %p191, %p192
      %s194 = ssub.s32 %s27, %s39
      %s195 = ssub.s32 %s28, %s35
      %s196 = sor.u32 %s194, %s195
      %p197 = scmp.eq.s32.totalorder %s196, 0
      %s199 = sadd.s32 %s198, 1
      %s200 = scalar_select %p197, %s198, %s199
      %p203 = pneg %p197
      %p204 = scmp.eq.s32.totalorder %s20, 1
      %p205 = por %p203, %p204
      %p206 = scmp.ne.s32.totalorder %s198, %s201
      %p207 = scmp.eq.s32.totalorder %s20, 0
      %p208 = por %p206, %p207
      %p209 = scmp.ne.s32.totalorder %s198, %s201
      %p210 = scmp.eq.s32.totalorder %s25, 1
      %p211 = por %p209, %p210
      %p212 = scmp.ne.s32.totalorder %s201, %s202
      %p213 = scmp.eq.s32.totalorder %s25, 0
      %p214 = por %p212, %p213
      %p215 = scmp.ne.s32.totalorder %s201, %s202
      %p216 = scmp.eq.s32.totalorder %s26, 1
      %p217 = por %p215, %p216
      %p219 = scmp.ne.s32.totalorder %s202, %s218
      %p220 = scmp.eq.s32.totalorder %s26, 0
      %p221 = por %p219, %p220
      %s222 = ssub.s32 %s27, %s39
      %s223 = ssub.s32 %s28, %s35
      %s224 = sor.u32 %s222, %s223
      %p225 = scmp.eq.s32.totalorder %s224, 0
      %s227 = sadd.s32 %s226, 1
      %s228 = scalar_select %p225, %s226, %s227
      %p231 = pneg %p225
      %p232 = scmp.eq.s32.totalorder %s20, 1
      %p233 = por %p231, %p232
      %p234 = scmp.ne.s32.totalorder %s226, %s229
      %p235 = scmp.eq.s32.totalorder %s20, 0
      %p236 = por %p234, %p235
      %p237 = scmp.ne.s32.totalorder %s226, %s229
      %p238 = scmp.eq.s32.totalorder %s25, 1
      %p239 = por %p237, %p238
      %p240 = scmp.ne.s32.totalorder %s229, %s230
      %p241 = scmp.eq.s32.totalorder %s25, 0
      %p242 = por %p240, %p241
      %p243 = scmp.ne.s32.totalorder %s229, %s230
      %p244 = scmp.eq.s32.totalorder %s26, 1
      %p245 = por %p243, %p244
      %p247 = scmp.ne.s32.totalorder %s230, %s246
      %p248 = scmp.eq.s32.totalorder %s26, 0
      %p249 = por %p247, %p248
      %p250 = scmp.le.s32.totalorder 1, %s20
      %p251 = scmp.lt.s32.totalorder %s20, 3
      %p252 = pnand %p250, %p251
      %p253 = pneg %p252
      // Predicated region
      $region9: #{aff_forward.3} parent=5 // pred_check
        _
      $region10: #{aff_forward.3} parent=5 // pred_check_branch
        %255 = sbr.rel (%p252) target = $region12
      $region11: #{aff_forward.3} parent=5 // pred_region
        %s256 = ssub.s32 %s20, 1
        // Predicated region
        $region13: #{aff_forward.3} parent=11 // pred_check
          %p257 = pneg %p109
        $region14: #{aff_forward.3} parent=11 // pred_check_branch
          %259 = sbr.rel (%p257) target = $region16
        $region15: #{aff_forward.3} parent=11 // pred_region
          _
        $region16: #{aff_forward.3} parent=11 // pred_fallthru
          _
        // Predicated region
        $region17: #{aff_forward.3} parent=11 // pred_check
          %p260 = pneg %p130
        $region18: #{aff_forward.3} parent=11 // pred_check_branch
          %262 = sbr.rel (%p260) target = $region20
        $region19: #{aff_forward.3} parent=11 // pred_region
          _
        $region20: #{aff_forward.3} parent=11 // pred_fallthru
          _
      $region12: #{aff_forward.3} parent=5 // pred_fallthru
        _
      %p263 = scmp.lt.s32.totalorder %s20, 2
      // Predicated region
      $region21: #{aff_forward.3} parent=5 // pred_check
        %p264 = pneg %p263
      $region22: #{aff_forward.3} parent=5 // pred_check_branch
        %266 = sbr.rel (%p264) target = $region24
      $region23: #{aff_forward.3} parent=5 // pred_region
        // Predicated region
        $region25: #{aff_forward.3} parent=23 // pred_check
          %p267 = pneg %p54
        $region26: #{aff_forward.3} parent=23 // pred_check_branch
          %269 = sbr.rel (%p267) target = $region28
        $region27: #{aff_forward.3} parent=23 // pred_region
          %s270 = sand.u32 %s44, 1
          %s271 = scalar_lea.sflag [#allocation3], %s270
          %s272 = sand.u32 %s44, 1
          %s273 = smul.addr %s272, 256
          %s274 = scalar_lea.vmem [#allocation2], %s273
          %s275 = smul.u32 32, %s28
          %s277 = ssub.s32 4096, 4096
          %278 = vsyncadd %s271, %s277
          %s279 = smul.addr %s27, 32
          %s280 = sadd.s32 %s275, %s279
          %s281 = smul.addr %s280, 128
          %s282 = scalar_lea.hbm %s0, %s281
          %s283 = sshll.u32 %s274, 4
          %s284 = int_to_ptr.vmem [resolvable:$true] %s283
          %289 = dma.hbm_to_vmem [thread:$0]  %s282, 4096, %s284, %s271, 128, 128, 8
        $region28: #{aff_forward.3} parent=23 // pred_fallthru
          _
        // Predicated region
        $region29: #{aff_forward.3} parent=23 // pred_check
          %p290 = pneg %p82
        $region30: #{aff_forward.3} parent=23 // pred_check_branch
          %292 = sbr.rel (%p290) target = $region32
        $region31: #{aff_forward.3} parent=23 // pred_region
          %s293 = sand.u32 %s72, 1
          %s294 = scalar_lea.sflag [#allocation5], %s293
          %s295 = sand.u32 %s72, 1
          %s296 = smul.addr %s295, 256
          %s297 = scalar_lea.vmem [#allocation4], %s296
          %s298 = smul.u32 32, %s28
          %s300 = ssub.s32 4096, 4096
          %301 = vsyncadd %s294, %s300
          %s302 = smul.addr %s27, 32
          %s303 = sadd.s32 %s298, %s302
          %s304 = smul.addr %s303, 128
          %s305 = scalar_lea.hbm %s1, %s304
          %s306 = sshll.u32 %s297, 4
          %s307 = int_to_ptr.vmem [resolvable:$true] %s306
          %312 = dma.hbm_to_vmem [thread:$0]  %s305, 4096, %s307, %s294, 128, 128, 8
        $region32: #{aff_forward.3} parent=23 // pred_fallthru
          _
      $region24: #{aff_forward.3} parent=5 // pred_fallthru
        _
      %p313 = scmp.le.s32.totalorder 1, %s20
      %p314 = scmp.lt.s32.totalorder %s20, 3
      %p315 = pnand %p313, %p314
      %p316 = pneg %p315
      // Predicated region
      $region33: #{aff_forward.3} parent=5 // pred_check
        _
      $region34: #{aff_forward.3} parent=5 // pred_check_branch
        %318 = sbr.rel (%p315) target = $region36
      $region35: #{aff_forward.3} parent=5 // pred_region
        %s319 = ssub.s32 %s20, 1
        %s320 = sand.u32 %s47, 1
        %s321 = scalar_lea.sflag [#allocation3], %s320
        %s322 = sand.u32 %s47, 1
        %s323 = smul.addr %s322, 256
        %s324 = scalar_lea.vmem [#allocation2], %s323
        // Predicated region
        $region37: #{aff_forward.3} parent=35 // pred_check
          %p325 = pneg %p60
        $region38: #{aff_forward.3} parent=35 // pred_check_branch
          %327 = sbr.rel (%p325) target = $region40
        $region39: #{aff_forward.3} parent=35 // pred_region
          %328 = dma.done %s321, 4096
        $region40: #{aff_forward.3} parent=35 // pred_fallthru
          _
        %s329 = sand.u32 %s75, 1
        %s330 = scalar_lea.sflag [#allocation5], %s329
        %s331 = sand.u32 %s75, 1
        %s332 = smul.addr %s331, 256
        %s333 = scalar_lea.vmem [#allocation4], %s332
        // Predicated region
        $region41: #{aff_forward.3} parent=35 // pred_check
          %p334 = pneg %p88
        $region42: #{aff_forward.3} parent=35 // pred_check_branch
          %336 = sbr.rel (%p334) target = $region44
        $region43: #{aff_forward.3} parent=35 // pred_region
          %337 = dma.done %s330, 4096
        $region44: #{aff_forward.3} parent=35 // pred_fallthru
          _
        %s338 = sand.u32 %s47, 1
        %s339 = scalar_lea.sflag [#allocation3], %s338
        %s340 = sand.u32 %s47, 1
        %s341 = smul.addr %s340, 256
        %s342 = scalar_lea.vmem [#allocation2], %s341
        %p343 = pneg %p60
        %p344 = pneg %p57
        %s345 = sand.u32 %s75, 1
        %s346 = scalar_lea.sflag [#allocation5], %s345
        %s347 = sand.u32 %s75, 1
        %s348 = smul.addr %s347, 256
        %s349 = scalar_lea.vmem [#allocation4], %s348
        %p350 = pneg %p88
        %p351 = pneg %p85
        %p352 = pneg %p109
        %p353 = pneg %p106
        %p354 = pneg %p130
        %p355 = pneg %p127
        %p356 = pneg %p158
        %p357 = pneg %p155
        %s358 = smul.u32 32, %s30
        %p359 = scmp.lt.s32.totalorder %s29, 1
        %s360 = scalar_select %p359, %s29, 1
        %p361 = scmp.lt.s32.totalorder %s358, 31
        %s362 = scalar_select %p361, %s358, 31
        %s363 = smul.addr %s360, 32
        %s364 = sadd.s32 %s362, %s363
        %s365 = smul.addr %s364, 8
        %s366 = scalar_lea.vmem %s4, %s365
        %p367 = pneg %p186
        %p368 = pneg %p183
        %p369 = scmp.lt.s32.totalorder %s29, 1
        %s370 = scalar_select %p369, %s29, 1
        %p371 = scmp.lt.s32.totalorder %s30, 0
        %s372 = scalar_select %p371, %s30, 0
        %s373 = sadd.s32 %s372, %s370
        %s374 = scalar_lea.vmem %s5, %s373
        %p375 = pneg %p214
        %p376 = pneg %p211
        %p377 = scmp.lt.s32.totalorder %s29, 1
        %s378 = scalar_select %p377, %s29, 1
        %p379 = scmp.lt.s32.totalorder %s30, 0
        %s380 = scalar_select %p379, %s30, 0
        %s381 = sadd.s32 %s380, %s378
        %s382 = scalar_lea.vmem %s6, %s381
        %p383 = pneg %p242
        %p384 = pneg %p239
        %p385 = scmp.lt.s32.totalorder %s29, 1
        %s386 = scalar_select %p385, %s29, 1
        %p387 = scmp.lt.s32.totalorder %s30, 0
        %s388 = scalar_select %p387, %s30, 0
        %s389 = sadd.s32 %s388, %s386
        %s390 = scalar_lea.vmem %s7, %s389
        %s391 = smul.u32 32, %s30
        %s392 = smul.u32 32, %s30
        %s393 = smul.u32 32, %s30
        %p394 = scmp.lt.s32.totalorder %s29, 1
        %s395 = scalar_select %p394, %s29, 1
        %p396 = scmp.lt.s32.totalorder %s393, 31
        %s397 = scalar_select %p396, %s393, 31
        %s398 = smul.addr %s395, 32
        %s399 = sadd.s32 %s397, %s398
        %s400 = smul.addr %s399, 8
        %s401 = scalar_lea.vmem %s4, %s400
        %s402 = smul.u32 32, %s30
        %p403 = scmp.lt.s32.totalorder %s29, 1
        %s404 = scalar_select %p403, %s29, 1
        %p405 = scmp.lt.s32.totalorder %s30, 0
        %s406 = scalar_select %p405, %s30, 0
        %s407 = sadd.s32 %s406, %s404
        %s408 = scalar_lea.vmem %s5, %s407
        %p409 = scmp.lt.s32.totalorder %s29, 1
        %s410 = scalar_select %p409, %s29, 1
        %p411 = scmp.lt.s32.totalorder %s30, 0
        %s412 = scalar_select %p411, %s30, 0
        %s413 = sadd.s32 %s412, %s410
        %s414 = scalar_lea.vmem %s6, %s413
        %p415 = scmp.lt.s32.totalorder %s29, 1
        %s416 = scalar_select %p415, %s29, 1
        %p417 = scmp.lt.s32.totalorder %s30, 0
        %s418 = scalar_select %p417, %s30, 0
        %s419 = sadd.s32 %s418, %s416
        %s420 = scalar_lea.vmem %s7, %s419
        %v422 = vld [vmem:[%s324] sm:$0xff]
        %v423 = vld [vmem:[%s324 + $0x8] sm:$0xff]
        %v424 = vld [vmem:[%s324 + $0x10] sm:$0xff]
        %v425 = vld [vmem:[%s324 + $0x18] sm:$0xff]
        %v426 = vld [vmem:[%s324 + $0x20] sm:$0xff]
        %v427 = vld [vmem:[%s324 + $0x28] sm:$0xff]
        %v428 = vld [vmem:[%s324 + $0x30] sm:$0xff]
        %v429 = vld [vmem:[%s324 + $0x38] sm:$0xff]
        %v430 = vld [vmem:[%s324 + $0x40] sm:$0xff]
        %v431 = vld [vmem:[%s324 + $0x48] sm:$0xff]
        %v432 = vld [vmem:[%s324 + $0x50] sm:$0xff]
        %v433 = vld [vmem:[%s324 + $0x58] sm:$0xff]
        %v434 = vld [vmem:[%s324 + $0x60] sm:$0xff]
        %v435 = vld [vmem:[%s324 + $0x68] sm:$0xff]
        %v436 = vld [vmem:[%s324 + $0x70] sm:$0xff]
        %v437 = vld [vmem:[%s324 + $0x78] sm:$0xff]
        %v438 = vld [vmem:[%s324 + $0x80] sm:$0xff]
        %v439 = vld [vmem:[%s324 + $0x88] sm:$0xff]
        %v440 = vld [vmem:[%s324 + $0x90] sm:$0xff]
        %v441 = vld [vmem:[%s324 + $0x98] sm:$0xff]
        %v442 = vld [vmem:[%s324 + $0xa0] sm:$0xff]
        %v443 = vld [vmem:[%s324 + $0xa8] sm:$0xff]
        %v444 = vld [vmem:[%s324 + $0xb0] sm:$0xff]
        %v445 = vld [vmem:[%s324 + $0xb8] sm:$0xff]
        %v446 = vld [vmem:[%s324 + $0xc0] sm:$0xff]
        %v447 = vld [vmem:[%s324 + $0xc8] sm:$0xff]
        %v448 = vld [vmem:[%s324 + $0xd0] sm:$0xff]
        %v449 = vld [vmem:[%s324 + $0xd8] sm:$0xff]
        %v450 = vld [vmem:[%s324 + $0xe0] sm:$0xff]
        %v451 = vld [vmem:[%s324 + $0xe8] sm:$0xff]
        %v452 = vld [vmem:[%s324 + $0xf0] sm:$0xff]
        %v453 = vld [vmem:[%s324 + $0xf8] sm:$0xff]
        %v454 = vld [vmem:[%s333] sm:$0xff]
        %v455 = vld [vmem:[%s333 + $0x8] sm:$0xff]
        %v456 = vld [vmem:[%s333 + $0x10] sm:$0xff]
        %v457 = vld [vmem:[%s333 + $0x18] sm:$0xff]
        %v458 = vld [vmem:[%s333 + $0x20] sm:$0xff]
        %v459 = vld [vmem:[%s333 + $0x28] sm:$0xff]
        %v460 = vld [vmem:[%s333 + $0x30] sm:$0xff]
        %v461 = vld [vmem:[%s333 + $0x38] sm:$0xff]
        %v462 = vld [vmem:[%s333 + $0x40] sm:$0xff]
        %v463 = vld [vmem:[%s333 + $0x48] sm:$0xff]
        %v464 = vld [vmem:[%s333 + $0x50] sm:$0xff]
        %v465 = vld [vmem:[%s333 + $0x58] sm:$0xff]
        %v466 = vld [vmem:[%s333 + $0x60] sm:$0xff]
        %v467 = vld [vmem:[%s333 + $0x68] sm:$0xff]
        %v468 = vld [vmem:[%s333 + $0x70] sm:$0xff]
        %v469 = vld [vmem:[%s333 + $0x78] sm:$0xff]
        %v470 = vld [vmem:[%s333 + $0x80] sm:$0xff]
        %v471 = vld [vmem:[%s333 + $0x88] sm:$0xff]
        %v472 = vld [vmem:[%s333 + $0x90] sm:$0xff]
        %v473 = vld [vmem:[%s333 + $0x98] sm:$0xff]
        %v474 = vld [vmem:[%s333 + $0xa0] sm:$0xff]
        %v475 = vld [vmem:[%s333 + $0xa8] sm:$0xff]
        %v476 = vld [vmem:[%s333 + $0xb0] sm:$0xff]
        %v477 = vld [vmem:[%s333 + $0xb8] sm:$0xff]
        %v478 = vld [vmem:[%s333 + $0xc0] sm:$0xff]
        %v479 = vld [vmem:[%s333 + $0xc8] sm:$0xff]
        %v480 = vld [vmem:[%s333 + $0xd0] sm:$0xff]
        %v481 = vld [vmem:[%s333 + $0xd8] sm:$0xff]
        %v482 = vld [vmem:[%s333 + $0xe0] sm:$0xff]
        %v483 = vld [vmem:[%s333 + $0xe8] sm:$0xff]
        %v484 = vld [vmem:[%s333 + $0xf0] sm:$0xff]
        %v485 = vld [vmem:[%s333 + $0xf8] sm:$0xff]
        %v486 = vadd.f32 %v422, %v454
        %v487 = vadd.f32 %v423, %v455
        %v488 = vadd.f32 %v424, %v456
        %v489 = vadd.f32 %v425, %v457
        %v490 = vadd.f32 %v426, %v458
        %v491 = vadd.f32 %v427, %v459
        %v492 = vadd.f32 %v428, %v460
        %v493 = vadd.f32 %v429, %v461
        %v494 = vadd.f32 %v430, %v462
        %v495 = vadd.f32 %v431, %v463
        %v496 = vadd.f32 %v432, %v464
        %v497 = vadd.f32 %v433, %v465
        %v498 = vadd.f32 %v434, %v466
        %v499 = vadd.f32 %v435, %v467
        %v500 = vadd.f32 %v436, %v468
        %v501 = vadd.f32 %v437, %v469
        %v502 = vadd.f32 %v438, %v470
        %v503 = vadd.f32 %v439, %v471
        %v504 = vadd.f32 %v440, %v472
        %v505 = vadd.f32 %v441, %v473
        %v506 = vadd.f32 %v442, %v474
        %v507 = vadd.f32 %v443, %v475
        %v508 = vadd.f32 %v444, %v476
        %v509 = vadd.f32 %v445, %v477
        %v510 = vadd.f32 %v446, %v478
        %v511 = vadd.f32 %v447, %v479
        %v512 = vadd.f32 %v448, %v480
        %v513 = vadd.f32 %v449, %v481
        %v514 = vadd.f32 %v450, %v482
        %v515 = vadd.f32 %v451, %v483
        %v516 = vadd.f32 %v452, %v484
        %v517 = vadd.f32 %v453, %v485
        %v518 = vpack.c.bf16 %v487, %v486
        %v519 = vpack.c.bf16 %v489, %v488
        %v520 = vpack.c.bf16 %v491, %v490
        %v521 = vpack.c.bf16 %v493, %v492
        %v522 = vpack.c.bf16 %v495, %v494
        %v523 = vpack.c.bf16 %v497, %v496
        %v524 = vpack.c.bf16 %v499, %v498
        %v525 = vpack.c.bf16 %v501, %v500
        %v526 = vpack.c.bf16 %v503, %v502
        %v527 = vpack.c.bf16 %v505, %v504
        %v528 = vpack.c.bf16 %v507, %v506
        %v529 = vpack.c.bf16 %v509, %v508
        %v530 = vpack.c.bf16 %v511, %v510
        %v531 = vpack.c.bf16 %v513, %v512
        %v532 = vpack.c.bf16 %v515, %v514
        %v533 = vpack.c.bf16 %v517, %v516
        %v534 = vld [vmem:[%s2] sm:$0xf]
        %v535 = vld [vmem:[%s2 + $0x4] sm:$0xf]
        %v536 = vld [vmem:[%s2 + $0x8] sm:$0xf]
        %v537 = vld [vmem:[%s2 + $0xc] sm:$0xf]
        %v538 = vld [vmem:[%s2 + $0x10] sm:$0xf]
        %v539 = vld [vmem:[%s2 + $0x14] sm:$0xf]
        %v540 = vld [vmem:[%s2 + $0x18] sm:$0xf]
        %v541 = vld [vmem:[%s2 + $0x1c] sm:$0xf]
        %v542 = vld [vmem:[%s3] sm:$0x1]
        %v544 = vlaneseq
        %v545 = vshrl.u32 %v544, 7
        %v546 = vsub.s32 0, %v545
        %v547 = vrot.slane %v542, %v546
        %v557 = vunpack.c.l.b16 %v534
        %v558 = vunpack.c.l.b16 %v535
        %v559 = vunpack.c.l.b16 %v536
        %v560 = vunpack.c.l.b16 %v537
        %v561 = vunpack.c.l.b16 %v538
        %v562 = vunpack.c.l.b16 %v539
        %v563 = vunpack.c.l.b16 %v540
        %v564 = vunpack.c.l.b16 %v541
        %v565 = vpack.c.b16 %v558, %v557
        %v566 = vpack.c.b16 %v560, %v559
        %v567 = vpack.c.b16 %v562, %v561
        %v568 = vpack.c.b16 %v564, %v563
        %vm573 = vcmask 523264
        %v575 = vsel %vm573, %v518, 0
        %v578 = vsel %vm573, %v519, 0
        %v581 = vsel %vm573, %v520, 0
        %v584 = vsel %vm573, %v521, 0
        %v587 = vsel %vm573, %v522, 0
        %v590 = vsel %vm573, %v523, 0
        %v593 = vsel %vm573, %v524, 0
        %v596 = vsel %vm573, %v525, 0
        %v599 = vsel %vm573, %v526, 0
        %v602 = vsel %vm573, %v527, 0
        %v605 = vsel %vm573, %v528, 0
        %v608 = vsel %vm573, %v529, 0
        %v611 = vsel %vm573, %v530, 0
        %v614 = vsel %vm573, %v531, 0
        %v617 = vsel %vm573, %v532, 0
        %v620 = vsel %vm573, %v533, 0
        %622 = vmatprep.subr.bf16.mxu0 0
        %623 = vmatpush1.bf16.msra.mxu0 %v565
        %624 = vmatprep.subr.bf16.mxu0 0
        %625 = vmatpush1.bf16.msra.mxu0 %v566
        %626 = vmatprep.subr.bf16.mxu0 0
        %627 = vmatpush1.bf16.msra.mxu0 %v567
        %628 = vmatprep.subr.bf16.mxu0 0
        %629 = vmatpush1.bf16.msra.mxu0 %v568
        %630 = vmatprep.subr.bf16.mxu0 0
        %631 = vmatpush1.bf16.msra.mxu0 0
        %632 = vmatprep.subr.bf16.mxu0 0
        %633 = vmatpush1.bf16.msra.mxu0 0
        %634 = vmatprep.subr.bf16.mxu0 0
        %635 = vmatpush1.bf16.msra.mxu0 0
        %636 = vmatprep.subr.bf16.mxu0 0
        %637 = vmatpush1.bf16.msra.mxu0 0
        %638 = vmatprep.subr.bf16.mxu0 0
        %639 = vmatpush1.bf16.msra.mxu0 0
        %640 = vmatprep.subr.bf16.mxu0 0
        %641 = vmatpush1.bf16.msra.mxu0 0
        %642 = vmatprep.subr.bf16.mxu0 0
        %643 = vmatpush1.bf16.msra.mxu0 0
        %644 = vmatprep.subr.bf16.mxu0 0
        %645 = vmatpush1.bf16.msra.mxu0 0
        %646 = vmatprep.subr.bf16.mxu0 0
        %647 = vmatpush1.bf16.msra.mxu0 0
        %648 = vmatprep.subr.bf16.mxu0 0
        %649 = vmatpush1.bf16.msra.mxu0 0
        %650 = vmatprep.subr.bf16.mxu0 0
        %651 = vmatpush1.bf16.msra.mxu0 0
        %652 = vmatprep.subr.bf16.mxu0 0
        %653 = vmatpush1.bf16.msra.mxu0 0
        %654 = vmatprep.mubr.bf16.mxu0 0
        %655 = vmatmul.mubr.bf16.gmra.mrb[0].mxu0 %v575
        %v656 = vpop.f32.mrb[0].mxu0
        %v657 = vadd.f32 %v547, %v656
        %v658 = vpop.f32.mrb[0].mxu0
        %v659 = vpop.f32.mrb[0].mxu0
        %v660 = vadd.f32 %v547, %v659
        %v661 = vpop.f32.mrb[0].mxu0
        %662 = vmatprep.mubr.bf16.mxu0 0
        %663 = vmatmul.mubr.bf16.gmra.mrb[0].mxu0 %v578
        %v664 = vpop.f32.mrb[0].mxu0
        %v665 = vadd.f32 %v547, %v664
        %v666 = vpop.f32.mrb[0].mxu0
        %v667 = vpop.f32.mrb[0].mxu0
        %v668 = vadd.f32 %v547, %v667
        %v669 = vpop.f32.mrb[0].mxu0
        %670 = vmatprep.mubr.bf16.mxu0 0
        %671 = vmatmul.mubr.bf16.gmra.mrb[0].mxu0 %v581
        %v672 = vpop.f32.mrb[0].mxu0
        %v673 = vadd.f32 %v547, %v672
        %v674 = vpop.f32.mrb[0].mxu0
        %v675 = vpop.f32.mrb[0].mxu0
        %v676 = vadd.f32 %v547, %v675
        %v677 = vpop.f32.mrb[0].mxu0
        %678 = vmatprep.mubr.bf16.mxu0 0
        %679 = vmatmul.mubr.bf16.gmra.mrb[0].mxu0 %v584
        %v680 = vpop.f32.mrb[0].mxu0
        %v681 = vadd.f32 %v547, %v680
        %v682 = vpop.f32.mrb[0].mxu0
        %v683 = vpop.f32.mrb[0].mxu0
        %v684 = vadd.f32 %v547, %v683
        %v685 = vpop.f32.mrb[0].mxu0
        %686 = vmatprep.mubr.bf16.mxu0 0
        %687 = vmatmul.mubr.bf16.gmra.mrb[0].mxu0 %v587
        %v688 = vpop.f32.mrb[0].mxu0
        %v689 = vadd.f32 %v547, %v688
        %v690 = vpop.f32.mrb[0].mxu0
        %v691 = vpop.f32.mrb[0].mxu0
        %v692 = vadd.f32 %v547, %v691
        %v693 = vpop.f32.mrb[0].mxu0
        %694 = vmatprep.mubr.bf16.mxu0 0
        %695 = vmatmul.mubr.bf16.gmra.mrb[0].mxu0 %v590
        %v696 = vpop.f32.mrb[0].mxu0
        %v697 = vadd.f32 %v547, %v696
        %v698 = vpop.f32.mrb[0].mxu0
        %v699 = vpop.f32.mrb[0].mxu0
        %v700 = vadd.f32 %v547, %v699
        %v701 = vpop.f32.mrb[0].mxu0
        %702 = vmatprep.mubr.bf16.mxu0 0
        %703 = vmatmul.mubr.bf16.gmra.mrb[0].mxu0 %v593
        %v704 = vpop.f32.mrb[0].mxu0
        %v705 = vadd.f32 %v547, %v704
        %v706 = vpop.f32.mrb[0].mxu0
        %v707 = vpop.f32.mrb[0].mxu0
        %v708 = vadd.f32 %v547, %v707
        %v709 = vpop.f32.mrb[0].mxu0
        %710 = vmatprep.mubr.bf16.mxu0 0
        %711 = vmatmul.mubr.bf16.gmra.mrb[0].mxu0 %v596
        %v712 = vpop.f32.mrb[0].mxu0
        %v713 = vadd.f32 %v547, %v712
        %v714 = vpop.f32.mrb[0].mxu0
        %v715 = vpop.f32.mrb[0].mxu0
        %v716 = vadd.f32 %v547, %v715
        %v717 = vpop.f32.mrb[0].mxu0
        %718 = vmatprep.mubr.bf16.mxu0 0
        %719 = vmatmul.mubr.bf16.gmra.mrb[0].mxu0 %v599
        %v720 = vpop.f32.mrb[0].mxu0
        %v721 = vadd.f32 %v547, %v720
        %v722 = vpop.f32.mrb[0].mxu0
        %v723 = vpop.f32.mrb[0].mxu0
        %v724 = vadd.f32 %v547, %v723
        %v725 = vpop.f32.mrb[0].mxu0
        %726 = vmatprep.mubr.bf16.mxu0 0
        %727 = vmatmul.mubr.bf16.gmra.mrb[0].mxu0 %v602
        %v728 = vpop.f32.mrb[0].mxu0
        %v729 = vadd.f32 %v547, %v728
        %v730 = vpop.f32.mrb[0].mxu0
        %v731 = vpop.f32.mrb[0].mxu0
        %v732 = vadd.f32 %v547, %v731
        %v733 = vpop.f32.mrb[0].mxu0
        %734 = vmatprep.mubr.bf16.mxu0 0
        %735 = vmatmul.mubr.bf16.gmra.mrb[0].mxu0 %v605
        %v736 = vpop.f32.mrb[0].mxu0
        %v737 = vadd.f32 %v547, %v736
        %v738 = vpop.f32.mrb[0].mxu0
        %v739 = vpop.f32.mrb[0].mxu0
        %v740 = vadd.f32 %v547, %v739
        %v741 = vpop.f32.mrb[0].mxu0
        %742 = vmatprep.mubr.bf16.mxu0 0
        %743 = vmatmul.mubr.bf16.gmra.mrb[0].mxu0 %v608
        %v744 = vpop.f32.mrb[0].mxu0
        %v745 = vadd.f32 %v547, %v744
        %v746 = vpop.f32.mrb[0].mxu0
        %v747 = vpop.f32.mrb[0].mxu0
        %v748 = vadd.f32 %v547, %v747
        %v749 = vpop.f32.mrb[0].mxu0
        %750 = vmatprep.mubr.bf16.mxu0 0
        %751 = vmatmul.mubr.bf16.gmra.mrb[0].mxu0 %v611
        %v752 = vpop.f32.mrb[0].mxu0
        %v753 = vadd.f32 %v547, %v752
        %v754 = vpop.f32.mrb[0].mxu0
        %v755 = vpop.f32.mrb[0].mxu0
        %v756 = vadd.f32 %v547, %v755
        %v757 = vpop.f32.mrb[0].mxu0
        %758 = vmatprep.mubr.bf16.mxu0 0
        %759 = vmatmul.mubr.bf16.gmra.mrb[0].mxu0 %v614
        %v760 = vpop.f32.mrb[0].mxu0
        %v761 = vadd.f32 %v547, %v760
        %v762 = vpop.f32.mrb[0].mxu0
        %v763 = vpop.f32.mrb[0].mxu0
        %v764 = vadd.f32 %v547, %v763
        %v765 = vpop.f32.mrb[0].mxu0
        %766 = vmatprep.mubr.bf16.mxu0 0
        %767 = vmatmul.mubr.bf16.gmra.mrb[0].mxu0 %v617
        %v768 = vpop.f32.mrb[0].mxu0
        %v769 = vadd.f32 %v547, %v768
        %v770 = vpop.f32.mrb[0].mxu0
        %v771 = vpop.f32.mrb[0].mxu0
        %v772 = vadd.f32 %v547, %v771
        %v773 = vpop.f32.mrb[0].mxu0
        %774 = vmatprep.mubr.bf16.mxu0 0
        %775 = vmatmul.mubr.bf16.gmra.mrb[0].mxu0 %v620
        %v776 = vpop.f32.mrb[0].mxu0
        %v777 = vadd.f32 %v547, %v776
        %v778 = vpop.f32.mrb[0].mxu0
        %v779 = vpop.f32.mrb[0].mxu0
        %v780 = vadd.f32 %v547, %v779
        %v781 = vpop.f32.mrb[0].mxu0
        %782 = vdwg.mxu0
        %vm783 = vcmask 130048
        %784 = vst.msk [vmem:[%s401] sm:$0xff] %vm783, %v657
        %785 = vst.msk [vmem:[%s401 + $0x8] sm:$0xff] %vm783, %v660
        %786 = vst.msk [vmem:[%s401 + $0x10] sm:$0xff] %vm783, %v665
        %787 = vst.msk [vmem:[%s401 + $0x18] sm:$0xff] %vm783, %v668
        %788 = vst.msk [vmem:[%s401 + $0x20] sm:$0xff] %vm783, %v673
        %789 = vst.msk [vmem:[%s401 + $0x28] sm:$0xff] %vm783, %v676
        %790 = vst.msk [vmem:[%s401 + $0x30] sm:$0xff] %vm783, %v681
        %791 = vst.msk [vmem:[%s401 + $0x38] sm:$0xff] %vm783, %v684
        %792 = vst.msk [vmem:[%s401 + $0x40] sm:$0xff] %vm783, %v689
        %793 = vst.msk [vmem:[%s401 + $0x48] sm:$0xff] %vm783, %v692
        %794 = vst.msk [vmem:[%s401 + $0x50] sm:$0xff] %vm783, %v697
        %795 = vst.msk [vmem:[%s401 + $0x58] sm:$0xff] %vm783, %v700
        %796 = vst.msk [vmem:[%s401 + $0x60] sm:$0xff] %vm783, %v705
        %797 = vst.msk [vmem:[%s401 + $0x68] sm:$0xff] %vm783, %v708
        %798 = vst.msk [vmem:[%s401 + $0x70] sm:$0xff] %vm783, %v713
        %799 = vst.msk [vmem:[%s401 + $0x78] sm:$0xff] %vm783, %v716
        %800 = vst.msk [vmem:[%s401 + $0x80] sm:$0xff] %vm783, %v721
        %801 = vst.msk [vmem:[%s401 + $0x88] sm:$0xff] %vm783, %v724
        %802 = vst.msk [vmem:[%s401 + $0x90] sm:$0xff] %vm783, %v729
        %803 = vst.msk [vmem:[%s401 + $0x98] sm:$0xff] %vm783, %v732
        %804 = vst.msk [vmem:[%s401 + $0xa0] sm:$0xff] %vm783, %v737
        %805 = vst.msk [vmem:[%s401 + $0xa8] sm:$0xff] %vm783, %v740
        %806 = vst.msk [vmem:[%s401 + $0xb0] sm:$0xff] %vm783, %v745
        %807 = vst.msk [vmem:[%s401 + $0xb8] sm:$0xff] %vm783, %v748
        %808 = vst.msk [vmem:[%s401 + $0xc0] sm:$0xff] %vm783, %v753
        %809 = vst.msk [vmem:[%s401 + $0xc8] sm:$0xff] %vm783, %v756
        %810 = vst.msk [vmem:[%s401 + $0xd0] sm:$0xff] %vm783, %v761
        %811 = vst.msk [vmem:[%s401 + $0xd8] sm:$0xff] %vm783, %v764
        %812 = vst.msk [vmem:[%s401 + $0xe0] sm:$0xff] %vm783, %v769
        %813 = vst.msk [vmem:[%s401 + $0xe8] sm:$0xff] %vm783, %v772
        %814 = vst.msk [vmem:[%s401 + $0xf0] sm:$0xff] %vm783, %v777
        %815 = vst.msk [vmem:[%s401 + $0xf8] sm:$0xff] %vm783, %v780
        %v816 = vsel %vm783, %v657, 0.0
        %v817 = vsel %vm783, %v660, 0.0
        %v818 = vadd.f32 %v816, %v817
        %v819 = vsel %vm783, %v665, 0.0
        %v820 = vadd.f32 %v818, %v819
        %v821 = vsel %vm783, %v668, 0.0
        %v822 = vadd.f32 %v820, %v821
        %v823 = vsel %vm783, %v673, 0.0
        %v824 = vadd.f32 %v822, %v823
        %v825 = vsel %vm783, %v676, 0.0
        %v826 = vadd.f32 %v824, %v825
        %v827 = vsel %vm783, %v681, 0.0
        %v828 = vadd.f32 %v826, %v827
        %v829 = vsel %vm783, %v684, 0.0
        %v830 = vadd.f32 %v828, %v829
        %v831 = vsel %vm783, %v689, 0.0
        %v832 = vadd.f32 %v830, %v831
        %v833 = vsel %vm783, %v692, 0.0
        %v834 = vadd.f32 %v832, %v833
        %v835 = vsel %vm783, %v697, 0.0
        %v836 = vadd.f32 %v834, %v835
        %v837 = vsel %vm783, %v700, 0.0
        %v838 = vadd.f32 %v836, %v837
        %v839 = vsel %vm783, %v705, 0.0
        %v840 = vadd.f32 %v838, %v839
        %v841 = vsel %vm783, %v708, 0.0
        %v842 = vadd.f32 %v840, %v841
        %v843 = vsel %vm783, %v713, 0.0
        %v844 = vadd.f32 %v842, %v843
        %v845 = vsel %vm783, %v716, 0.0
        %v846 = vadd.f32 %v844, %v845
        %v847 = vsel %vm783, %v721, 0.0
        %v848 = vadd.f32 %v846, %v847
        %v849 = vsel %vm783, %v724, 0.0
        %v850 = vadd.f32 %v848, %v849
        %v851 = vsel %vm783, %v729, 0.0
        %v852 = vadd.f32 %v850, %v851
        %v853 = vsel %vm783, %v732, 0.0
        %v854 = vadd.f32 %v852, %v853
        %v855 = vsel %vm783, %v737, 0.0
        %v856 = vadd.f32 %v854, %v855
        %v857 = vsel %vm783, %v740, 0.0
        %v858 = vadd.f32 %v856, %v857
        %v859 = vsel %vm783, %v745, 0.0
        %v860 = vadd.f32 %v858, %v859
        %v861 = vsel %vm783, %v748, 0.0
        %v862 = vadd.f32 %v860, %v861
        %v863 = vsel %vm783, %v753, 0.0
        %v864 = vadd.f32 %v862, %v863
        %v865 = vsel %vm783, %v756, 0.0
        %v866 = vadd.f32 %v864, %v865
        %v867 = vsel %vm783, %v761, 0.0
        %v868 = vadd.f32 %v866, %v867
        %v869 = vsel %vm783, %v764, 0.0
        %v870 = vadd.f32 %v868, %v869
        %v871 = vsel %vm783, %v769, 0.0
        %v872 = vadd.f32 %v870, %v871
        %v873 = vsel %vm783, %v772, 0.0
        %v874 = vadd.f32 %v872, %v873
        %v875 = vsel %vm783, %v777, 0.0
        %v876 = vadd.f32 %v874, %v875
        %v877 = vsel %vm783, %v780, 0.0
        %v878 = vadd.f32 %v876, %v877
        %v879 = vrot.slane %v878, 4
        %v880 = vadd.f32 %v878, %v879
        %v881 = vrot.slane %v880, 2
        %v882 = vadd.f32 %v880, %v881
        %v883 = vrot.slane %v882, 1
        %v884 = vadd.f32 %v882, %v883
        %vm885 = vcmask 122880
        %886 = vst.msk [vmem:[%s408] sm:$0x1] %vm885, %v884
        %v887 = vmul.f32 %v657, %v657
        %v888 = vmul.f32 %v660, %v660
        %v889 = vmul.f32 %v665, %v665
        %v890 = vmul.f32 %v668, %v668
        %v891 = vmul.f32 %v673, %v673
        %v892 = vmul.f32 %v676, %v676
        %v893 = vmul.f32 %v681, %v681
        %v894 = vmul.f32 %v684, %v684
        %v895 = vmul.f32 %v689, %v689
        %v896 = vmul.f32 %v692, %v692
        %v897 = vmul.f32 %v697, %v697
        %v898 = vmul.f32 %v700, %v700
        %v899 = vmul.f32 %v705, %v705
        %v900 = vmul.f32 %v708, %v708
        %v901 = vmul.f32 %v713, %v713
        %v902 = vmul.f32 %v716, %v716
        %v903 = vmul.f32 %v721, %v721
        %v904 = vmul.f32 %v724, %v724
        %v905 = vmul.f32 %v729, %v729
        %v906 = vmul.f32 %v732, %v732
        %v907 = vmul.f32 %v737, %v737
        %v908 = vmul.f32 %v740, %v740
        %v909 = vmul.f32 %v745, %v745
        %v910 = vmul.f32 %v748, %v748
        %v911 = vmul.f32 %v753, %v753
        %v912 = vmul.f32 %v756, %v756
        %v913 = vmul.f32 %v761, %v761
        %v914 = vmul.f32 %v764, %v764
        %v915 = vmul.f32 %v769, %v769
        %v916 = vmul.f32 %v772, %v772
        %v917 = vmul.f32 %v777, %v777
        %v918 = vmul.f32 %v780, %v780
        %v919 = vsel %vm783, %v887, 0.0
        %v920 = vsel %vm783, %v888, 0.0
        %v921 = vadd.f32 %v919, %v920
        %v922 = vsel %vm783, %v889, 0.0
        %v923 = vadd.f32 %v921, %v922
        %v924 = vsel %vm783, %v890, 0.0
        %v925 = vadd.f32 %v923, %v924
        %v926 = vsel %vm783, %v891, 0.0
        %v927 = vadd.f32 %v925, %v926
        %v928 = vsel %vm783, %v892, 0.0
        %v929 = vadd.f32 %v927, %v928
        %v930 = vsel %vm783, %v893, 0.0
        %v931 = vadd.f32 %v929, %v930
        %v932 = vsel %vm783, %v894, 0.0
        %v933 = vadd.f32 %v931, %v932
        %v934 = vsel %vm783, %v895, 0.0
        %v935 = vadd.f32 %v933, %v934
        %v936 = vsel %vm783, %v896, 0.0
        %v937 = vadd.f32 %v935, %v936
        %v938 = vsel %vm783, %v897, 0.0
        %v939 = vadd.f32 %v937, %v938
        %v940 = vsel %vm783, %v898, 0.0
        %v941 = vadd.f32 %v939, %v940
        %v942 = vsel %vm783, %v899, 0.0
        %v943 = vadd.f32 %v941, %v942
        %v944 = vsel %vm783, %v900, 0.0
        %v945 = vadd.f32 %v943, %v944
        %v946 = vsel %vm783, %v901, 0.0
        %v947 = vadd.f32 %v945, %v946
        %v948 = vsel %vm783, %v902, 0.0
        %v949 = vadd.f32 %v947, %v948
        %v950 = vsel %vm783, %v903, 0.0
        %v951 = vadd.f32 %v949, %v950
        %v952 = vsel %vm783, %v904, 0.0
        %v953 = vadd.f32 %v951, %v952
        %v954 = vsel %vm783, %v905, 0.0
        %v955 = vadd.f32 %v953, %v954
        %v956 = vsel %vm783, %v906, 0.0
        %v957 = vadd.f32 %v955, %v956
        %v958 = vsel %vm783, %v907, 0.0
        %v959 = vadd.f32 %v957, %v958
        %v960 = vsel %vm783, %v908, 0.0
        %v961 = vadd.f32 %v959, %v960
        %v962 = vsel %vm783, %v909, 0.0
        %v963 = vadd.f32 %v961, %v962
        %v964 = vsel %vm783, %v910, 0.0
        %v965 = vadd.f32 %v963, %v964
        %v966 = vsel %vm783, %v911, 0.0
        %v967 = vadd.f32 %v965, %v966
        %v968 = vsel %vm783, %v912, 0.0
        %v969 = vadd.f32 %v967, %v968
        %v970 = vsel %vm783, %v913, 0.0
        %v971 = vadd.f32 %v969, %v970
        %v972 = vsel %vm783, %v914, 0.0
        %v973 = vadd.f32 %v971, %v972
        %v974 = vsel %vm783, %v915, 0.0
        %v975 = vadd.f32 %v973, %v974
        %v976 = vsel %vm783, %v916, 0.0
        %v977 = vadd.f32 %v975, %v976
        %v978 = vsel %vm783, %v917, 0.0
        %v979 = vadd.f32 %v977, %v978
        %v980 = vsel %vm783, %v918, 0.0
        %v981 = vadd.f32 %v979, %v980
        %v982 = vrot.slane %v981, 4
        %v983 = vadd.f32 %v981, %v982
        %v984 = vrot.slane %v983, 2
        %v985 = vadd.f32 %v983, %v984
        %v986 = vrot.slane %v985, 1
        %v987 = vadd.f32 %v985, %v986
        %988 = vst.msk [vmem:[%s414] sm:$0x1] %vm885, %v987
        %v989 = vsel %vm573, %v486, 0.0
        %v990 = vsel %vm573, %v487, 0.0
        %v991 = vadd.f32 %v989, %v990
        %v992 = vsel %vm573, %v488, 0.0
        %v993 = vadd.f32 %v991, %v992
        %v994 = vsel %vm573, %v489, 0.0
        %v995 = vadd.f32 %v993, %v994
        %v996 = vsel %vm573, %v490, 0.0
        %v997 = vadd.f32 %v995, %v996
        %v998 = vsel %vm573, %v491, 0.0
        %v999 = vadd.f32 %v997, %v998
        %v1000 = vsel %vm573, %v492, 0.0
        %v1001 = vadd.f32 %v999, %v1000
        %v1002 = vsel %vm573, %v493, 0.0
        %v1003 = vadd.f32 %v1001, %v1002
        %v1004 = vsel %vm573, %v494, 0.0
        %v1005 = vadd.f32 %v1003, %v1004
        %v1006 = vsel %vm573, %v495, 0.0
        %v1007 = vadd.f32 %v1005, %v1006
        %v1008 = vsel %vm573, %v496, 0.0
        %v1009 = vadd.f32 %v1007, %v1008
        %v1010 = vsel %vm573, %v497, 0.0
        %v1011 = vadd.f32 %v1009, %v1010
        %v1012 = vsel %vm573, %v498, 0.0
        %v1013 = vadd.f32 %v1011, %v1012
        %v1014 = vsel %vm573, %v499, 0.0
        %v1015 = vadd.f32 %v1013, %v1014
        %v1016 = vsel %vm573, %v500, 0.0
        %v1017 = vadd.f32 %v1015, %v1016
        %v1018 = vsel %vm573, %v501, 0.0
        %v1019 = vadd.f32 %v1017, %v1018
        %v1020 = vsel %vm573, %v502, 0.0
        %v1021 = vadd.f32 %v1019, %v1020
        %v1022 = vsel %vm573, %v503, 0.0
        %v1023 = vadd.f32 %v1021, %v1022
        %v1024 = vsel %vm573, %v504, 0.0
        %v1025 = vadd.f32 %v1023, %v1024
        %v1026 = vsel %vm573, %v505, 0.0
        %v1027 = vadd.f32 %v1025, %v1026
        %v1028 = vsel %vm573, %v506, 0.0
        %v1029 = vadd.f32 %v1027, %v1028
        %v1030 = vsel %vm573, %v507, 0.0
        %v1031 = vadd.f32 %v1029, %v1030
        %v1032 = vsel %vm573, %v508, 0.0
        %v1033 = vadd.f32 %v1031, %v1032
        %v1034 = vsel %vm573, %v509, 0.0
        %v1035 = vadd.f32 %v1033, %v1034
        %v1036 = vsel %vm573, %v510, 0.0
        %v1037 = vadd.f32 %v1035, %v1036
        %v1038 = vsel %vm573, %v511, 0.0
        %v1039 = vadd.f32 %v1037, %v1038
        %v1040 = vsel %vm573, %v512, 0.0
        %v1041 = vadd.f32 %v1039, %v1040
        %v1042 = vsel %vm573, %v513, 0.0
        %v1043 = vadd.f32 %v1041, %v1042
        %v1044 = vsel %vm573, %v514, 0.0
        %v1045 = vadd.f32 %v1043, %v1044
        %v1046 = vsel %vm573, %v515, 0.0
        %v1047 = vadd.f32 %v1045, %v1046
        %v1048 = vsel %vm573, %v516, 0.0
        %v1049 = vadd.f32 %v1047, %v1048
        %v1050 = vsel %vm573, %v517, 0.0
        %v1051 = vadd.f32 %v1049, %v1050
        %v1052 = vrot.slane %v1051, 4
        %v1053 = vadd.f32 %v1051, %v1052
        %v1054 = vrot.slane %v1053, 2
        %v1055 = vadd.f32 %v1053, %v1054
        %v1056 = vrot.slane %v1055, 1
        %v1057 = vadd.f32 %v1055, %v1056
        %vm1058 = vcmask 516096
        %1059 = vst.msk [vmem:[%s420] sm:$0x1] %vm1058, %v1057
        %s1060 = smul.u32 32, %s30
        %p1061 = scmp.lt.s32.totalorder %s29, 1
        %s1062 = scalar_select %p1061, %s29, 1
        %p1063 = scmp.lt.s32.totalorder %s1060, 31
        %s1064 = scalar_select %p1063, %s1060, 31
        %s1065 = smul.addr %s1062, 32
        %s1066 = sadd.s32 %s1064, %s1065
        %s1067 = smul.addr %s1066, 8
        %s1068 = scalar_lea.vmem %s4, %s1067
        %p1069 = scmp.lt.s32.totalorder %s29, 1
        %s1070 = scalar_select %p1069, %s29, 1
        %p1071 = scmp.lt.s32.totalorder %s30, 0
        %s1072 = scalar_select %p1071, %s30, 0
        %s1073 = sadd.s32 %s1072, %s1070
        %s1074 = scalar_lea.vmem %s5, %s1073
        %p1075 = scmp.lt.s32.totalorder %s29, 1
        %s1076 = scalar_select %p1075, %s29, 1
        %p1077 = scmp.lt.s32.totalorder %s30, 0
        %s1078 = scalar_select %p1077, %s30, 0
        %s1079 = sadd.s32 %s1078, %s1076
        %s1080 = scalar_lea.vmem %s6, %s1079
        %p1081 = scmp.lt.s32.totalorder %s29, 1
        %s1082 = scalar_select %p1081, %s29, 1
        %p1083 = scmp.lt.s32.totalorder %s30, 0
        %s1084 = scalar_select %p1083, %s30, 0
        %s1085 = sadd.s32 %s1084, %s1082
        %s1086 = scalar_lea.vmem %s7, %s1085
        // Predicated region
        $region45: #{aff_forward.3} parent=35 // pred_check
          %p1087 = pneg %p155
        $region46: #{aff_forward.3} parent=35 // pred_check_branch
          %1089 = sbr.rel (%p1087) target = $region48
        $region47: #{aff_forward.3} parent=35 // pred_region
          %s1090 = smul.u32 32, %s30
        $region48: #{aff_forward.3} parent=35 // pred_fallthru
          _
        // Predicated region
        $region49: #{aff_forward.3} parent=35 // pred_check
          %p1091 = pneg %p183
        $region50: #{aff_forward.3} parent=35 // pred_check_branch
          %1093 = sbr.rel (%p1091) target = $region52
        $region51: #{aff_forward.3} parent=35 // pred_region
          _
        $region52: #{aff_forward.3} parent=35 // pred_fallthru
          _
        // Predicated region
        $region53: #{aff_forward.3} parent=35 // pred_check
          %p1094 = pneg %p211
        $region54: #{aff_forward.3} parent=35 // pred_check_branch
          %1096 = sbr.rel (%p1094) target = $region56
        $region55: #{aff_forward.3} parent=35 // pred_region
          _
        $region56: #{aff_forward.3} parent=35 // pred_fallthru
          _
        // Predicated region
        $region57: #{aff_forward.3} parent=35 // pred_check
          %p1097 = pneg %p239
        $region58: #{aff_forward.3} parent=35 // pred_check_branch
          %1099 = sbr.rel (%p1097) target = $region60
        $region59: #{aff_forward.3} parent=35 // pred_region
          _
        $region60: #{aff_forward.3} parent=35 // pred_fallthru
          _
      $region36: #{aff_forward.3} parent=5 // pred_fallthru
        _
      %p1100 = scmp.le.s32.totalorder 2, %s20
      // Predicated region
      $region61: #{aff_forward.3} parent=5 // pred_check
        %p1101 = pneg %p1100
      $region62: #{aff_forward.3} parent=5 // pred_check_branch
        %1103 = sbr.rel (%p1101) target = $region64
      $region63: #{aff_forward.3} parent=5 // pred_region
        %s1104 = ssub.s32 %s20, 2
        // Predicated region
        $region65: #{aff_forward.3} parent=63 // pred_check
          %p1105 = pneg %p161
        $region66: #{aff_forward.3} parent=63 // pred_check_branch
          %1107 = sbr.rel (%p1105) target = $region68
        $region67: #{aff_forward.3} parent=63 // pred_region
          %s1108 = smul.u32 32, %s32
          %p1109 = scmp.lt.s32.totalorder %s31, 1
          %s1110 = scalar_select %p1109, %s31, 1
          %p1111 = scmp.lt.s32.totalorder %s1108, 31
          %s1112 = scalar_select %p1111, %s1108, 31
          %s1113 = smul.addr %s1110, 32
          %s1114 = sadd.s32 %s1112, %s1113
          %s1115 = smul.addr %s1114, 8
          %s1116 = scalar_lea.vmem %s4, %s1115
        $region68: #{aff_forward.3} parent=63 // pred_fallthru
          _
        // Predicated region
        $region69: #{aff_forward.3} parent=63 // pred_check
          %p1117 = pneg %p189
        $region70: #{aff_forward.3} parent=63 // pred_check_branch
          %1119 = sbr.rel (%p1117) target = $region72
        $region71: #{aff_forward.3} parent=63 // pred_region
          %p1120 = scmp.lt.s32.totalorder %s31, 1
          %s1121 = scalar_select %p1120, %s31, 1
          %p1122 = scmp.lt.s32.totalorder %s32, 0
          %s1123 = scalar_select %p1122, %s32, 0
          %s1124 = sadd.s32 %s1123, %s1121
          %s1125 = scalar_lea.vmem %s5, %s1124
        $region72: #{aff_forward.3} parent=63 // pred_fallthru
          _
        // Predicated region
        $region73: #{aff_forward.3} parent=63 // pred_check
          %p1126 = pneg %p217
        $region74: #{aff_forward.3} parent=63 // pred_check_branch
          %1128 = sbr.rel (%p1126) target = $region76
        $region75: #{aff_forward.3} parent=63 // pred_region
          %p1129 = scmp.lt.s32.totalorder %s31, 1
          %s1130 = scalar_select %p1129, %s31, 1
          %p1131 = scmp.lt.s32.totalorder %s32, 0
          %s1132 = scalar_select %p1131, %s32, 0
          %s1133 = sadd.s32 %s1132, %s1130
          %s1134 = scalar_lea.vmem %s6, %s1133
        $region76: #{aff_forward.3} parent=63 // pred_fallthru
          _
        // Predicated region
        $region77: #{aff_forward.3} parent=63 // pred_check
          %p1135 = pneg %p245
        $region78: #{aff_forward.3} parent=63 // pred_check_branch
          %1137 = sbr.rel (%p1135) target = $region80
        $region79: #{aff_forward.3} parent=63 // pred_region
          %p1138 = scmp.lt.s32.totalorder %s31, 1
          %s1139 = scalar_select %p1138, %s31, 1
          %p1140 = scmp.lt.s32.totalorder %s32, 0
          %s1141 = scalar_select %p1140, %s32, 0
          %s1142 = sadd.s32 %s1141, %s1139
          %s1143 = scalar_lea.vmem %s7, %s1142
        $region80: #{aff_forward.3} parent=63 // pred_fallthru
          _
      $region64: #{aff_forward.3} parent=5 // pred_fallthru
        _
    $region6: #{aff_forward.3} parent=1 // loop_footer
      %s24 = sadd.s32 1, %s20
    $region7: #{aff_forward.3} parent=1 // loop_footer_branch
      %19 = sbr.rel target = $region3
    $region8: #{aff_forward.3} parent=1 // loop_exit
      _
    %1144 = vsyncpa [#allocation3], 1
    %s1145 = scalar_lea.sflag [#allocation3], 1
    %1146 = vsyncpa %s1145, 1
    %1147 = vsyncpa [#allocation5], 1
    %s1148 = scalar_lea.sflag [#allocation5], 1
    %1149 = vsyncpa %s1148, 1

// kernel: aff_forward.5
$region0: #{aff_forward.5}
  #allocation0 [shape = 'u32[]', space=smem, size = 0x4, offset = 0x4, fixed_abs, tag = 'smem constant byte address 0x4 - core index']
  #allocation1 [shape = 'u32[144,128]{1,0:T(1,128)}', space=vmem, size = 0x12000, scoped, tag = 'internal scratch']
  %s0 = inlined_call_operand.vmem [shape: f32[2,128,128], index: 0, kind: input, shape index: {}]
  %s1 = inlined_call_operand.vmem [shape: f32[2,128,128], index: 1, kind: input, shape index: {}]
  %s2 = inlined_call_operand.vmem [shape: f32[2,128,128], index: 2, kind: input, shape index: {}]
  %s3 = inlined_call_operand.vmem [shape: f32[1,128], index: 3, kind: input, shape index: {}]
  %s4 = inlined_call_operand.vmem [shape: f32[1,128], index: 4, kind: input, shape index: {}]
  %s5 = inlined_call_operand.vmem [shape: f32[2,1,128], index: 5, kind: input, shape index: {}]
  %s6 = inlined_call_operand.vmem [shape: f32[2,128,128], index: 6, kind: output, shape index: {}]
  %s7 = sld [smem:[#allocation0]]
  $region57: #{aff_forward.5} parent=0
    _
  %s9 = ssub.s32 1, %s7
  %s10 = scalar_select 0, %s9, %s7
  loop: start=0, step=1, limit=4
  $region2: #{aff_forward.5} parent=0 // loop_pre_header
    _
  $region3: #{aff_forward.5} parent=0 // loop_header
    %s12 = sphi 0, %s16
    %p13 = scmp.ge.s32.totalorder %s12, 4
    %s19 = sphi 0, %s31
    %s20 = sphi 0, %s27
    %s21 = sphi 0, %s19
    %s22 = sphi 0, %s20
    %s23 = sphi 0, %s21
    %s24 = sphi 0, %s22
    %s36 = sphi 0, %s38
    %s39 = sphi 0, %s36
    %s40 = sphi 0, %s39
    %s56 = sphi 0, %s40
    %s64 = sphi 0, %s66
    %s67 = sphi 0, %s64
    %s68 = sphi 0, %s67
    %s84 = sphi 0, %s68
    %s92 = sphi 0, %s94
    %s95 = sphi 0, %s92
    %s96 = sphi 0, %s95
    %s112 = sphi 0, %s96
    %s116 = sphi 0, %s116
    %s118 = sphi 0, %s116
    %s119 = sphi 0, %s118
    %s133 = sphi 0, %s119
    %s137 = sphi 0, %s137
    %s139 = sphi 0, %s137
    %s140 = sphi 0, %s139
    %s154 = sphi 0, %s140
    %s160 = sphi 0, %s162
    %s163 = sphi 0, %s160
    %s164 = sphi 0, %s163
    %s180 = sphi 0, %s164
    %s188 = sphi 0, %s190
    %s191 = sphi 0, %s188
    %s192 = sphi 0, %s191
    %s208 = sphi 0, %s192
  $region4: #{aff_forward.5} parent=0 // loop_header_branch
    %15 = sbr.rel (%p13) target = $region8
  $region5: #{aff_forward.5} parent=0 // loop_body
    %s17 = ssub.s32 %s12, 1
    %s18 = ssub.s32 %s12, 2
    %s25 = sadd.s32 1, %s20
    %p26 = scmp.ge.s32.totalorder %s25, 1
    %s27 = scalar_select %p26, 0, %s25
    %s28 = sadd.s32 1, %s19
    %s29 = scalar_select %p26, %s28, %s19
    %p30 = scmp.ge.s32.totalorder %s29, 2
    %s31 = scalar_select %p30, 0, %s29
    %s32 = ssub.s32 %s19, %s31
    %s33 = ssub.s32 %s20, %s27
    %s34 = sor.u32 %s32, %s33
    %p35 = scmp.eq.s32.totalorder %s34, 0
    %s37 = sadd.s32 %s36, 1
    %s38 = scalar_select %p35, %s36, %s37
    %p41 = pneg %p35
    %p42 = scmp.eq.s32.totalorder %s12, 1
    %p43 = por %p41, %p42
    %p44 = scmp.ne.s32.totalorder %s36, %s39
    %p45 = scmp.eq.s32.totalorder %s12, 0
    %p46 = por %p44, %p45
    %p47 = scmp.ne.s32.totalorder %s36, %s39
    %p48 = scmp.eq.s32.totalorder %s17, 1
    %p49 = por %p47, %p48
    %p50 = scmp.ne.s32.totalorder %s39, %s40
    %p51 = scmp.eq.s32.totalorder %s17, 0
    %p52 = por %p50, %p51
    %p53 = scmp.ne.s32.totalorder %s39, %s40
    %p54 = scmp.eq.s32.totalorder %s18, 1
    %p55 = por %p53, %p54
    %p57 = scmp.ne.s32.totalorder %s40, %s56
    %p58 = scmp.eq.s32.totalorder %s18, 0
    %p59 = por %p57, %p58
    %s60 = ssub.s32 %s19, %s31
    %s61 = ssub.s32 %s20, %s27
    %s62 = sor.u32 %s60, %s61
    %p63 = scmp.eq.s32.totalorder %s62, 0
    %s65 = sadd.s32 %s64, 1
    %s66 = scalar_select %p63, %s64, %s65
    %p69 = pneg %p63
    %p70 = scmp.eq.s32.totalorder %s12, 1
    %p71 = por %p69, %p70
    %p72 = scmp.ne.s32.totalorder %s64, %s67
    %p73 = scmp.eq.s32.totalorder %s12, 0
    %p74 = por %p72, %p73
    %p75 = scmp.ne.s32.totalorder %s64, %s67
    %p76 = scmp.eq.s32.totalorder %s17, 1
    %p77 = por %p75, %p76
    %p78 = scmp.ne.s32.totalorder %s67, %s68
    %p79 = scmp.eq.s32.totalorder %s17, 0
    %p80 = por %p78, %p79
    %p81 = scmp.ne.s32.totalorder %s67, %s68
    %p82 = scmp.eq.s32.totalorder %s18, 1
    %p83 = por %p81, %p82
    %p85 = scmp.ne.s32.totalorder %s68, %s84
    %p86 = scmp.eq.s32.totalorder %s18, 0
    %p87 = por %p85, %p86
    %s88 = ssub.s32 %s19, %s31
    %s89 = ssub.s32 %s20, %s27
    %s90 = sor.u32 %s88, %s89
    %p91 = scmp.eq.s32.totalorder %s90, 0
    %s93 = sadd.s32 %s92, 1
    %s94 = scalar_select %p91, %s92, %s93
    %p97 = pneg %p91
    %p98 = scmp.eq.s32.totalorder %s12, 1
    %p99 = por %p97, %p98
    %p100 = scmp.ne.s32.totalorder %s92, %s95
    %p101 = scmp.eq.s32.totalorder %s12, 0
    %p102 = por %p100, %p101
    %p103 = scmp.ne.s32.totalorder %s92, %s95
    %p104 = scmp.eq.s32.totalorder %s17, 1
    %p105 = por %p103, %p104
    %p106 = scmp.ne.s32.totalorder %s95, %s96
    %p107 = scmp.eq.s32.totalorder %s17, 0
    %p108 = por %p106, %p107
    %p109 = scmp.ne.s32.totalorder %s95, %s96
    %p110 = scmp.eq.s32.totalorder %s18, 1
    %p111 = por %p109, %p110
    %p113 = scmp.ne.s32.totalorder %s96, %s112
    %p114 = scmp.eq.s32.totalorder %s18, 0
    %p115 = por %p113, %p114
    %s117 = sadd.s32 %s116, 1
    %p120 = scmp.eq.s32.totalorder %s12, 1
    %p121 = scmp.ne.s32.totalorder %s116, %s118
    %p122 = scmp.eq.s32.totalorder %s12, 0
    %p123 = por %p121, %p122
    %p124 = scmp.ne.s32.totalorder %s116, %s118
    %p125 = scmp.eq.s32.totalorder %s17, 1
    %p126 = por %p124, %p125
    %p127 = scmp.ne.s32.totalorder %s118, %s119
    %p128 = scmp.eq.s32.totalorder %s17, 0
    %p129 = por %p127, %p128
    %p130 = scmp.ne.s32.totalorder %s118, %s119
    %p131 = scmp.eq.s32.totalorder %s18, 1
    %p132 = por %p130, %p131
    %p134 = scmp.ne.s32.totalorder %s119, %s133
    %p135 = scmp.eq.s32.totalorder %s18, 0
    %p136 = por %p134, %p135
    %s138 = sadd.s32 %s137, 1
    %p141 = scmp.eq.s32.totalorder %s12, 1
    %p142 = scmp.ne.s32.totalorder %s137, %s139
    %p143 = scmp.eq.s32.totalorder %s12, 0
    %p144 = por %p142, %p143
    %p145 = scmp.ne.s32.totalorder %s137, %s139
    %p146 = scmp.eq.s32.totalorder %s17, 1
    %p147 = por %p145, %p146
    %p148 = scmp.ne.s32.totalorder %s139, %s140
    %p149 = scmp.eq.s32.totalorder %s17, 0
    %p150 = por %p148, %p149
    %p151 = scmp.ne.s32.totalorder %s139, %s140
    %p152 = scmp.eq.s32.totalorder %s18, 1
    %p153 = por %p151, %p152
    %p155 = scmp.ne.s32.totalorder %s140, %s154
    %p156 = scmp.eq.s32.totalorder %s18, 0
    %p157 = por %p155, %p156
    %s158 = ssub.s32 %s19, %s31
    %p159 = scmp.eq.s32.totalorder %s158, 0
    %s161 = sadd.s32 %s160, 1
    %s162 = scalar_select %p159, %s160, %s161
    %p165 = pneg %p159
    %p166 = scmp.eq.s32.totalorder %s12, 1
    %p167 = por %p165, %p166
    %p168 = scmp.ne.s32.totalorder %s160, %s163
    %p169 = scmp.eq.s32.totalorder %s12, 0
    %p170 = por %p168, %p169
    %p171 = scmp.ne.s32.totalorder %s160, %s163
    %p172 = scmp.eq.s32.totalorder %s17, 1
    %p173 = por %p171, %p172
    %p174 = scmp.ne.s32.totalorder %s163, %s164
    %p175 = scmp.eq.s32.totalorder %s17, 0
    %p176 = por %p174, %p175
    %p177 = scmp.ne.s32.totalorder %s163, %s164
    %p178 = scmp.eq.s32.totalorder %s18, 1
    %p179 = por %p177, %p178
    %p181 = scmp.ne.s32.totalorder %s164, %s180
    %p182 = scmp.eq.s32.totalorder %s18, 0
    %p183 = por %p181, %p182
    %s184 = ssub.s32 %s19, %s31
    %s185 = ssub.s32 %s20, %s27
    %s186 = sor.u32 %s184, %s185
    %p187 = scmp.eq.s32.totalorder %s186, 0
    %s189 = sadd.s32 %s188, 1
    %s190 = scalar_select %p187, %s188, %s189
    %p193 = pneg %p187
    %p194 = scmp.eq.s32.totalorder %s12, 1
    %p195 = por %p193, %p194
    %p196 = scmp.ne.s32.totalorder %s188, %s191
    %p197 = scmp.eq.s32.totalorder %s12, 0
    %p198 = por %p196, %p197
    %p199 = scmp.ne.s32.totalorder %s188, %s191
    %p200 = scmp.eq.s32.totalorder %s17, 1
    %p201 = por %p199, %p200
    %p202 = scmp.ne.s32.totalorder %s191, %s192
    %p203 = scmp.eq.s32.totalorder %s17, 0
    %p204 = por %p202, %p203
    %p205 = scmp.ne.s32.totalorder %s191, %s192
    %p206 = scmp.eq.s32.totalorder %s18, 1
    %p207 = por %p205, %p206
    %p209 = scmp.ne.s32.totalorder %s192, %s208
    %p210 = scmp.eq.s32.totalorder %s18, 0
    %p211 = por %p209, %p210
    %p212 = scmp.le.s32.totalorder 1, %s12
    %p213 = scmp.lt.s32.totalorder %s12, 3
    %p214 = pnand %p212, %p213
    %p215 = pneg %p214
    // Predicated region
    $region9: #{aff_forward.5} parent=5 // pred_check
      _
    $region10: #{aff_forward.5} parent=5 // pred_check_branch
      %217 = sbr.rel (%p214) target = $region12
    $region11: #{aff_forward.5} parent=5 // pred_region
      %s218 = ssub.s32 %s12, 1
      // Predicated region
      $region13: #{aff_forward.5} parent=11 // pred_check
        %p219 = pneg %p129
      $region14: #{aff_forward.5} parent=11 // pred_check_branch
        %221 = sbr.rel (%p219) target = $region16
      $region15: #{aff_forward.5} parent=11 // pred_region
        _
      $region16: #{aff_forward.5} parent=11 // pred_fallthru
        _
      // Predicated region
      $region17: #{aff_forward.5} parent=11 // pred_check
        %p222 = pneg %p150
      $region18: #{aff_forward.5} parent=11 // pred_check_branch
        %224 = sbr.rel (%p222) target = $region20
      $region19: #{aff_forward.5} parent=11 // pred_region
        _
      $region20: #{aff_forward.5} parent=11 // pred_fallthru
        _
    $region12: #{aff_forward.5} parent=5 // pred_fallthru
      _
    %p225 = scmp.lt.s32.totalorder %s12, 2
    // Predicated region
    $region21: #{aff_forward.5} parent=5 // pred_check
      %p226 = pneg %p225
    $region22: #{aff_forward.5} parent=5 // pred_check_branch
      %228 = sbr.rel (%p226) target = $region24
    $region23: #{aff_forward.5} parent=5 // pred_region
      // Predicated region
      $region25: #{aff_forward.5} parent=23 // pred_check
        %p229 = pneg %p46
      $region26: #{aff_forward.5} parent=23 // pred_check_branch
        %231 = sbr.rel (%p229) target = $region28
      $region27: #{aff_forward.5} parent=23 // pred_region
        %s232 = smul.u32 16, %s20
        %p233 = scmp.lt.s32.totalorder %s19, 1
        %s234 = scalar_select %p233, %s19, 1
        %p235 = scmp.lt.s32.totalorder %s232, 15
        %s236 = scalar_select %p235, %s232, 15
        %s237 = smul.addr %s234, 16
        %s238 = sadd.s32 %s236, %s237
        %s239 = smul.addr %s238, 8
        %s240 = scalar_lea.vmem %s0, %s239
        %s241 = smul.u32 16, %s20
      $region28: #{aff_forward.5} parent=23 // pred_fallthru
        _
      // Predicated region
      $region29: #{aff_forward.5} parent=23 // pred_check
        %p242 = pneg %p74
      $region30: #{aff_forward.5} parent=23 // pred_check_branch
        %244 = sbr.rel (%p242) target = $region32
      $region31: #{aff_forward.5} parent=23 // pred_region
        %s245 = smul.u32 16, %s20
        %p246 = scmp.lt.s32.totalorder %s19, 1
        %s247 = scalar_select %p246, %s19, 1
        %p248 = scmp.lt.s32.totalorder %s245, 15
        %s249 = scalar_select %p248, %s245, 15
        %s250 = smul.addr %s247, 16
        %s251 = sadd.s32 %s249, %s250
        %s252 = smul.addr %s251, 8
        %s253 = scalar_lea.vmem %s1, %s252
        %s254 = smul.u32 16, %s20
      $region32: #{aff_forward.5} parent=23 // pred_fallthru
        _
      // Predicated region
      $region33: #{aff_forward.5} parent=23 // pred_check
        %p255 = pneg %p102
      $region34: #{aff_forward.5} parent=23 // pred_check_branch
        %257 = sbr.rel (%p255) target = $region36
      $region35: #{aff_forward.5} parent=23 // pred_region
        %s258 = smul.u32 16, %s20
        %p259 = scmp.lt.s32.totalorder %s19, 1
        %s260 = scalar_select %p259, %s19, 1
        %p261 = scmp.lt.s32.totalorder %s258, 15
        %s262 = scalar_select %p261, %s258, 15
        %s263 = smul.addr %s260, 16
        %s264 = sadd.s32 %s262, %s263
        %s265 = smul.addr %s264, 8
        %s266 = scalar_lea.vmem %s2, %s265
        %s267 = smul.u32 16, %s20
      $region36: #{aff_forward.5} parent=23 // pred_fallthru
        _
      // Predicated region
      $region37: #{aff_forward.5} parent=23 // pred_check
        %p268 = pneg %p170
      $region38: #{aff_forward.5} parent=23 // pred_check_branch
        %270 = sbr.rel (%p268) target = $region40
      $region39: #{aff_forward.5} parent=23 // pred_region
        %p271 = scmp.lt.s32.totalorder %s19, 1
        %s272 = scalar_select %p271, %s19, 1
        %s273 = scalar_lea.vmem %s5, %s272
      $region40: #{aff_forward.5} parent=23 // pred_fallthru
        _
    $region24: #{aff_forward.5} parent=5 // pred_fallthru
      _
    %p274 = scmp.le.s32.totalorder 1, %s12
    %p275 = scmp.lt.s32.totalorder %s12, 3
    %p276 = pnand %p274, %p275
    %p277 = pneg %p276
    // Predicated region
    $region41: #{aff_forward.5} parent=5 // pred_check
      _
    $region42: #{aff_forward.5} parent=5 // pred_check_branch
      %279 = sbr.rel (%p276) target = $region44
    $region43: #{aff_forward.5} parent=5 // pred_region
      %s280 = ssub.s32 %s12, 1
      %s281 = smul.u32 16, %s22
      %p282 = scmp.lt.s32.totalorder %s21, 1
      %s283 = scalar_select %p282, %s21, 1
      %p284 = scmp.lt.s32.totalorder %s281, 15
      %s285 = scalar_select %p284, %s281, 15
      %s286 = smul.addr %s283, 16
      %s287 = sadd.s32 %s285, %s286
      %s288 = smul.addr %s287, 8
      %s289 = scalar_lea.vmem %s0, %s288
      %p290 = pneg %p52
      %p291 = pneg %p49
      %s292 = smul.u32 16, %s22
      %p293 = scmp.lt.s32.totalorder %s21, 1
      %s294 = scalar_select %p293, %s21, 1
      %p295 = scmp.lt.s32.totalorder %s292, 15
      %s296 = scalar_select %p295, %s292, 15
      %s297 = smul.addr %s294, 16
      %s298 = sadd.s32 %s296, %s297
      %s299 = smul.addr %s298, 8
      %s300 = scalar_lea.vmem %s1, %s299
      %p301 = pneg %p80
      %p302 = pneg %p77
      %s303 = smul.u32 16, %s22
      %p304 = scmp.lt.s32.totalorder %s21, 1
      %s305 = scalar_select %p304, %s21, 1
      %p306 = scmp.lt.s32.totalorder %s303, 15
      %s307 = scalar_select %p306, %s303, 15
      %s308 = smul.addr %s305, 16
      %s309 = sadd.s32 %s307, %s308
      %s310 = smul.addr %s309, 8
      %s311 = scalar_lea.vmem %s2, %s310
      %p312 = pneg %p108
      %p313 = pneg %p105
      %p314 = pneg %p129
      %p315 = pneg %p126
      %p316 = pneg %p150
      %p317 = pneg %p147
      %p318 = scmp.lt.s32.totalorder %s21, 1
      %s319 = scalar_select %p318, %s21, 1
      %s320 = scalar_lea.vmem %s5, %s319
      %p321 = pneg %p176
      %p322 = pneg %p173
      %p323 = pneg %p204
      %p324 = pneg %p201
      %s325 = smul.u32 16, %s22
      %p326 = scmp.lt.s32.totalorder %s21, 1
      %s327 = scalar_select %p326, %s21, 1
      %p328 = scmp.lt.s32.totalorder %s325, 15
      %s329 = scalar_select %p328, %s325, 15
      %s330 = smul.addr %s327, 16
      %s331 = sadd.s32 %s329, %s330
      %s332 = smul.addr %s331, 8
      %s333 = scalar_lea.vmem %s6, %s332
      %s334 = smul.u32 16, %s22
      %p335 = scmp.lt.s32.totalorder %s21, 1
      %s336 = scalar_select %p335, %s21, 1
      %p337 = scmp.lt.s32.totalorder %s334, 15
      %s338 = scalar_select %p337, %s334, 15
      %s339 = smul.addr %s336, 16
      %s340 = sadd.s32 %s338, %s339
      %s341 = smul.addr %s340, 8
      %s342 = scalar_lea.vmem %s0, %s341
      %s343 = smul.u32 16, %s22
      %s344 = smul.u32 16, %s22
      %p345 = scmp.lt.s32.totalorder %s21, 1
      %s346 = scalar_select %p345, %s21, 1
      %p347 = scmp.lt.s32.totalorder %s344, 15
      %s348 = scalar_select %p347, %s344, 15
      %s349 = smul.addr %s346, 16
      %s350 = sadd.s32 %s348, %s349
      %s351 = smul.addr %s350, 8
      %s352 = scalar_lea.vmem %s1, %s351
      %s353 = smul.u32 16, %s22
      %s354 = smul.u32 16, %s22
      %p355 = scmp.lt.s32.totalorder %s21, 1
      %s356 = scalar_select %p355, %s21, 1
      %p357 = scmp.lt.s32.totalorder %s354, 15
      %s358 = scalar_select %p357, %s354, 15
      %s359 = smul.addr %s356, 16
      %s360 = sadd.s32 %s358, %s359
      %s361 = smul.addr %s360, 8
      %s362 = scalar_lea.vmem %s2, %s361
      %s363 = smul.u32 16, %s22
      %p364 = scmp.lt.s32.totalorder %s21, 1
      %s365 = scalar_select %p364, %s21, 1
      %s366 = scalar_lea.vmem %s5, %s365
      %s367 = smul.u32 16, %s22
      %p368 = scmp.lt.s32.totalorder %s21, 1
      %s369 = scalar_select %p368, %s21, 1
      %p370 = scmp.lt.s32.totalorder %s367, 15
      %s371 = scalar_select %p370, %s367, 15
      %s372 = smul.addr %s369, 16
      %s373 = sadd.s32 %s371, %s372
      %s374 = smul.addr %s373, 8
      %s375 = scalar_lea.vmem %s6, %s374
      %s376 = smul.u32 16, %s22
      %v377 = vld [vmem:[%s362] sm:$0xff]
      %v378 = vld [vmem:[%s362 + $0x8] sm:$0xff]
      %v379 = vld [vmem:[%s362 + $0x10] sm:$0xff]
      %v380 = vld [vmem:[%s362 + $0x18] sm:$0xff]
      %v381 = vld [vmem:[%s362 + $0x20] sm:$0xff]
      %v382 = vld [vmem:[%s362 + $0x28] sm:$0xff]
      %v383 = vld [vmem:[%s362 + $0x30] sm:$0xff]
      %v384 = vld [vmem:[%s362 + $0x38] sm:$0xff]
      %v385 = vld [vmem:[%s362 + $0x40] sm:$0xff]
      %v386 = vld [vmem:[%s362 + $0x48] sm:$0xff]
      %v387 = vld [vmem:[%s362 + $0x50] sm:$0xff]
      %v388 = vld [vmem:[%s362 + $0x58] sm:$0xff]
      %v389 = vld [vmem:[%s362 + $0x60] sm:$0xff]
      %v390 = vld [vmem:[%s362 + $0x68] sm:$0xff]
      %v391 = vld [vmem:[%s362 + $0x70] sm:$0xff]
      %v392 = vld [vmem:[%s362 + $0x78] sm:$0xff]
      %v393 = vld [vmem:[%s3] sm:$0x1]
      %v395 = vlaneseq
      %v396 = vshrl.u32 %v395, 7
      %v397 = vsub.s32 0, %v396
      %v398 = vrot.slane %v393, %v397
      %v400 = vmul.f32 %v377, %v398
      %v401 = vmul.f32 %v378, %v398
      %v402 = vmul.f32 %v379, %v398
      %v403 = vmul.f32 %v380, %v398
      %v404 = vmul.f32 %v381, %v398
      %v405 = vmul.f32 %v382, %v398
      %v406 = vmul.f32 %v383, %v398
      %v407 = vmul.f32 %v384, %v398
      %v408 = vmul.f32 %v385, %v398
      %v409 = vmul.f32 %v386, %v398
      %v410 = vmul.f32 %v387, %v398
      %v411 = vmul.f32 %v388, %v398
      %v412 = vmul.f32 %v389, %v398
      %v413 = vmul.f32 %v390, %v398
      %v414 = vmul.f32 %v391, %v398
      %v415 = vmul.f32 %v392, %v398
      %v416 = vld [vmem:[%s4] sm:$0x1]
      %v418 = vlaneseq
      %v419 = vshrl.u32 %v418, 7
      %v420 = vsub.s32 0, %v419
      %v421 = vrot.slane %v416, %v420
      %v423 = vadd.f32 %v400, %v421
      %v424 = vadd.f32 %v401, %v421
      %v425 = vadd.f32 %v402, %v421
      %v426 = vadd.f32 %v403, %v421
      %v427 = vadd.f32 %v404, %v421
      %v428 = vadd.f32 %v405, %v421
      %v429 = vadd.f32 %v406, %v421
      %v430 = vadd.f32 %v407, %v421
      %v431 = vadd.f32 %v408, %v421
      %v432 = vadd.f32 %v409, %v421
      %v433 = vadd.f32 %v410, %v421
      %v434 = vadd.f32 %v411, %v421
      %v435 = vadd.f32 %v412, %v421
      %v436 = vadd.f32 %v413, %v421
      %v437 = vadd.f32 %v414, %v421
      %v438 = vadd.f32 %v415, %v421
      %v439 = vld [vmem:[%s366] sm:$0x1]
      %v441 = vlaneseq
      %v442 = vshrl.u32 %v441, 7
      %v443 = vsub.s32 0, %v442
      %v444 = vrot.slane %v439, %v443
      %v446 = vadd.f32 %v423, %v444
      %v447 = vadd.f32 %v424, %v444
      %v448 = vadd.f32 %v425, %v444
      %v449 = vadd.f32 %v426, %v444
      %v450 = vadd.f32 %v427, %v444
      %v451 = vadd.f32 %v428, %v444
      %v452 = vadd.f32 %v429, %v444
      %v453 = vadd.f32 %v430, %v444
      %v454 = vadd.f32 %v431, %v444
      %v455 = vadd.f32 %v432, %v444
      %v456 = vadd.f32 %v433, %v444
      %v457 = vadd.f32 %v434, %v444
      %v458 = vadd.f32 %v435, %v444
      %v459 = vadd.f32 %v436, %v444
      %v460 = vadd.f32 %v437, %v444
      %v461 = vadd.f32 %v438, %v444
      %v462 = vxor.u32 %v446, 2147483648
      %v463 = vxor.u32 %v447, 2147483648
      %v464 = vxor.u32 %v448, 2147483648
      %v465 = vxor.u32 %v449, 2147483648
      %v466 = vxor.u32 %v450, 2147483648
      %v467 = vxor.u32 %v451, 2147483648
      %v468 = vxor.u32 %v452, 2147483648
      %v469 = vxor.u32 %v453, 2147483648
      %v470 = vxor.u32 %v454, 2147483648
      %v471 = vxor.u32 %v455, 2147483648
      %v472 = vxor.u32 %v456, 2147483648
      %v473 = vxor.u32 %v457, 2147483648
      %v474 = vxor.u32 %v458, 2147483648
      %v475 = vxor.u32 %v459, 2147483648
      %v476 = vxor.u32 %v460, 2147483648
      %v477 = vxor.u32 %v461, 2147483648
      %v478 = vmul.f32 %v462, 1.442695
      %v479 = vpow.pop %v478
      %v480 = vmul.f32 %v463, 1.442695
      %v481 = vpow.pop %v480
      %v482 = vmul.f32 %v464, 1.442695
      %v483 = vpow.pop %v482
      %v484 = vmul.f32 %v465, 1.442695
      %v485 = vpow.pop %v484
      %v486 = vmul.f32 %v466, 1.442695
      %v487 = vpow.pop %v486
      %v488 = vmul.f32 %v467, 1.442695
      %v489 = vpow.pop %v488
      %v490 = vmul.f32 %v468, 1.442695
      %v491 = vpow.pop %v490
      %v492 = vmul.f32 %v469, 1.442695
      %v493 = vpow.pop %v492
      %v494 = vmul.f32 %v470, 1.442695
      %v495 = vpow.pop %v494
      %v496 = vmul.f32 %v471, 1.442695
      %v497 = vpow.pop %v496
      %v498 = vmul.f32 %v472, 1.442695
      %v499 = vpow.pop %v498
      %v500 = vmul.f32 %v473, 1.442695
      %v501 = vpow.pop %v500
      %v502 = vmul.f32 %v474, 1.442695
      %v503 = vpow.pop %v502
      %v504 = vmul.f32 %v475, 1.442695
      %v505 = vpow.pop %v504
      %v506 = vmul.f32 %v476, 1.442695
      %v507 = vpow.pop %v506
      %v508 = vmul.f32 %v477, 1.442695
      %v509 = vpow.pop %v508
      %v510 = vadd.f32 %v479, 1.0
      %v511 = vadd.f32 %v481, 1.0
      %v512 = vadd.f32 %v483, 1.0
      %v513 = vadd.f32 %v485, 1.0
      %v514 = vadd.f32 %v487, 1.0
      %v515 = vadd.f32 %v489, 1.0
      %v516 = vadd.f32 %v491, 1.0
      %v517 = vadd.f32 %v493, 1.0
      %v518 = vadd.f32 %v495, 1.0
      %v519 = vadd.f32 %v497, 1.0
      %v520 = vadd.f32 %v499, 1.0
      %v521 = vadd.f32 %v501, 1.0
      %v522 = vadd.f32 %v503, 1.0
      %v523 = vadd.f32 %v505, 1.0
      %v524 = vadd.f32 %v507, 1.0
      %v525 = vadd.f32 %v509, 1.0
      %v526 = vrcp.pop %v510
      %v527 = vmul.f32 1.0, %v526
      %v528 = vrcp.pop %v511
      %v529 = vmul.f32 1.0, %v528
      %v530 = vrcp.pop %v512
      %v531 = vmul.f32 1.0, %v530
      %v532 = vrcp.pop %v513
      %v533 = vmul.f32 1.0, %v532
      %v534 = vrcp.pop %v514
      %v535 = vmul.f32 1.0, %v534
      %v536 = vrcp.pop %v515
      %v537 = vmul.f32 1.0, %v536
      %v538 = vrcp.pop %v516
      %v539 = vmul.f32 1.0, %v538
      %v540 = vrcp.pop %v517
      %v541 = vmul.f32 1.0, %v540
      %v542 = vrcp.pop %v518
      %v543 = vmul.f32 1.0, %v542
      %v544 = vrcp.pop %v519
      %v545 = vmul.f32 1.0, %v544
      %v546 = vrcp.pop %v520
      %v547 = vmul.f32 1.0, %v546
      %v548 = vrcp.pop %v521
      %v549 = vmul.f32 1.0, %v548
      %v550 = vrcp.pop %v522
      %v551 = vmul.f32 1.0, %v550
      %v552 = vrcp.pop %v523
      %v553 = vmul.f32 1.0, %v552
      %v554 = vrcp.pop %v524
      %v555 = vmul.f32 1.0, %v554
      %v556 = vrcp.pop %v525
      %v557 = vmul.f32 1.0, %v556
      %v558 = vld [vmem:[%s342] sm:$0xff]
      %v559 = vld [vmem:[%s342 + $0x8] sm:$0xff]
      %v560 = vld [vmem:[%s342 + $0x10] sm:$0xff]
      %v561 = vld [vmem:[%s342 + $0x18] sm:$0xff]
      %v562 = vld [vmem:[%s342 + $0x20] sm:$0xff]
      %v563 = vld [vmem:[%s342 + $0x28] sm:$0xff]
      %v564 = vld [vmem:[%s342 + $0x30] sm:$0xff]
      %v565 = vld [vmem:[%s342 + $0x38] sm:$0xff]
      %v566 = vld [vmem:[%s342 + $0x40] sm:$0xff]
      %v567 = vld [vmem:[%s342 + $0x48] sm:$0xff]
      %v568 = vld [vmem:[%s342 + $0x50] sm:$0xff]
      %v569 = vld [vmem:[%s342 + $0x58] sm:$0xff]
      %v570 = vld [vmem:[%s342 + $0x60] sm:$0xff]
      %v571 = vld [vmem:[%s342 + $0x68] sm:$0xff]
      %v572 = vld [vmem:[%s342 + $0x70] sm:$0xff]
      %v573 = vld [vmem:[%s342 + $0x78] sm:$0xff]
      %v574 = vmul.f32 %v558, 2.0
      %v575 = vmul.f32 %v559, 2.0
      %v576 = vmul.f32 %v560, 2.0
      %v577 = vmul.f32 %v561, 2.0
      %v578 = vmul.f32 %v562, 2.0
      %v579 = vmul.f32 %v563, 2.0
      %v580 = vmul.f32 %v564, 2.0
      %v581 = vmul.f32 %v565, 2.0
      %v582 = vmul.f32 %v566, 2.0
      %v583 = vmul.f32 %v567, 2.0
      %v584 = vmul.f32 %v568, 2.0
      %v585 = vmul.f32 %v569, 2.0
      %v586 = vmul.f32 %v570, 2.0
      %v587 = vmul.f32 %v571, 2.0
      %v588 = vmul.f32 %v572, 2.0
      %v589 = vmul.f32 %v573, 2.0
      %v590 = vmul.f32 %v574, %v527
      %v591 = vmul.f32 %v575, %v529
      %v592 = vmul.f32 %v576, %v531
      %v593 = vmul.f32 %v577, %v533
      %v594 = vmul.f32 %v578, %v535
      %v595 = vmul.f32 %v579, %v537
      %v596 = vmul.f32 %v580, %v539
      %v597 = vmul.f32 %v581, %v541
      %v598 = vmul.f32 %v582, %v543
      %v599 = vmul.f32 %v583, %v545
      %v600 = vmul.f32 %v584, %v547
      %v601 = vmul.f32 %v585, %v549
      %v602 = vmul.f32 %v586, %v551
      %v603 = vmul.f32 %v587, %v553
      %v604 = vmul.f32 %v588, %v555
      %v605 = vmul.f32 %v589, %v557
      %v606 = vld [vmem:[%s352] sm:$0xff]
      %v607 = vld [vmem:[%s352 + $0x8] sm:$0xff]
      %v608 = vld [vmem:[%s352 + $0x10] sm:$0xff]
      %v609 = vld [vmem:[%s352 + $0x18] sm:$0xff]
      %v610 = vld [vmem:[%s352 + $0x20] sm:$0xff]
      %v611 = vld [vmem:[%s352 + $0x28] sm:$0xff]
      %v612 = vld [vmem:[%s352 + $0x30] sm:$0xff]
      %v613 = vld [vmem:[%s352 + $0x38] sm:$0xff]
      %v614 = vld [vmem:[%s352 + $0x40] sm:$0xff]
      %v615 = vld [vmem:[%s352 + $0x48] sm:$0xff]
      %v616 = vld [vmem:[%s352 + $0x50] sm:$0xff]
      %v617 = vld [vmem:[%s352 + $0x58] sm:$0xff]
      %v618 = vld [vmem:[%s352 + $0x60] sm:$0xff]
      %v619 = vld [vmem:[%s352 + $0x68] sm:$0xff]
      %v620 = vld [vmem:[%s352 + $0x70] sm:$0xff]
      %v621 = vld [vmem:[%s352 + $0x78] sm:$0xff]
      %v622 = vmul.f32 %v606, 2.0
      %v623 = vmul.f32 %v607, 2.0
      %v624 = vmul.f32 %v608, 2.0
      %v625 = vmul.f32 %v609, 2.0
      %v626 = vmul.f32 %v610, 2.0
      %v627 = vmul.f32 %v611, 2.0
      %v628 = vmul.f32 %v612, 2.0
      %v629 = vmul.f32 %v613, 2.0
      %v630 = vmul.f32 %v614, 2.0
      %v631 = vmul.f32 %v615, 2.0
      %v632 = vmul.f32 %v616, 2.0
      %v633 = vmul.f32 %v617, 2.0
      %v634 = vmul.f32 %v618, 2.0
      %v635 = vmul.f32 %v619, 2.0
      %v636 = vmul.f32 %v620, 2.0
      %v637 = vmul.f32 %v621, 2.0
      %v638 = vsub.f32 1.0, %v527
      %v639 = vsub.f32 1.0, %v529
      %v640 = vsub.f32 1.0, %v531
      %v641 = vsub.f32 1.0, %v533
      %v642 = vsub.f32 1.0, %v535
      %v643 = vsub.f32 1.0, %v537
      %v644 = vsub.f32 1.0, %v539
      %v645 = vsub.f32 1.0, %v541
      %v646 = vsub.f32 1.0, %v543
      %v647 = vsub.f32 1.0, %v545
      %v648 = vsub.f32 1.0, %v547
      %v649 = vsub.f32 1.0, %v549
      %v650 = vsub.f32 1.0, %v551
      %v651 = vsub.f32 1.0, %v553
      %v652 = vsub.f32 1.0, %v555
      %v653 = vsub.f32 1.0, %v557
      %v654 = vmul.f32 %v622, %v638
      %v655 = vmul.f32 %v623, %v639
      %v656 = vmul.f32 %v624, %v640
      %v657 = vmul.f32 %v625, %v641
      %v658 = vmul.f32 %v626, %v642
      %v659 = vmul.f32 %v627, %v643
      %v660 = vmul.f32 %v628, %v644
      %v661 = vmul.f32 %v629, %v645
      %v662 = vmul.f32 %v630, %v646
      %v663 = vmul.f32 %v631, %v647
      %v664 = vmul.f32 %v632, %v648
      %v665 = vmul.f32 %v633, %v649
      %v666 = vmul.f32 %v634, %v650
      %v667 = vmul.f32 %v635, %v651
      %v668 = vmul.f32 %v636, %v652
      %v669 = vmul.f32 %v637, %v653
      %v670 = vadd.f32 %v590, %v654
      %v671 = vadd.f32 %v591, %v655
      %v672 = vadd.f32 %v592, %v656
      %v673 = vadd.f32 %v593, %v657
      %v674 = vadd.f32 %v594, %v658
      %v675 = vadd.f32 %v595, %v659
      %v676 = vadd.f32 %v596, %v660
      %v677 = vadd.f32 %v597, %v661
      %v678 = vadd.f32 %v598, %v662
      %v679 = vadd.f32 %v599, %v663
      %v680 = vadd.f32 %v600, %v664
      %v681 = vadd.f32 %v601, %v665
      %v682 = vadd.f32 %v602, %v666
      %v683 = vadd.f32 %v603, %v667
      %v684 = vadd.f32 %v604, %v668
      %v685 = vadd.f32 %v605, %v669
      %686 = vst [vmem:[%s375] sm:$0xff] %v670
      %687 = vst [vmem:[%s375 + $0x8] sm:$0xff] %v671
      %688 = vst [vmem:[%s375 + $0x10] sm:$0xff] %v672
      %689 = vst [vmem:[%s375 + $0x18] sm:$0xff] %v673
      %690 = vst [vmem:[%s375 + $0x20] sm:$0xff] %v674
      %691 = vst [vmem:[%s375 + $0x28] sm:$0xff] %v675
      %692 = vst [vmem:[%s375 + $0x30] sm:$0xff] %v676
      %693 = vst [vmem:[%s375 + $0x38] sm:$0xff] %v677
      %694 = vst [vmem:[%s375 + $0x40] sm:$0xff] %v678
      %695 = vst [vmem:[%s375 + $0x48] sm:$0xff] %v679
      %696 = vst [vmem:[%s375 + $0x50] sm:$0xff] %v680
      %697 = vst [vmem:[%s375 + $0x58] sm:$0xff] %v681
      %698 = vst [vmem:[%s375 + $0x60] sm:$0xff] %v682
      %699 = vst [vmem:[%s375 + $0x68] sm:$0xff] %v683
      %700 = vst [vmem:[%s375 + $0x70] sm:$0xff] %v684
      %701 = vst [vmem:[%s375 + $0x78] sm:$0xff] %v685
      %s702 = smul.u32 16, %s22
      %p703 = scmp.lt.s32.totalorder %s21, 1
      %s704 = scalar_select %p703, %s21, 1
      %p705 = scmp.lt.s32.totalorder %s702, 15
      %s706 = scalar_select %p705, %s702, 15
      %s707 = smul.addr %s704, 16
      %s708 = sadd.s32 %s706, %s707
      %s709 = smul.addr %s708, 8
      %s710 = scalar_lea.vmem %s6, %s709
      // Predicated region
      $region45: #{aff_forward.5} parent=43 // pred_check
        %p711 = pneg %p201
      $region46: #{aff_forward.5} parent=43 // pred_check_branch
        %713 = sbr.rel (%p711) target = $region48
      $region47: #{aff_forward.5} parent=43 // pred_region
        %s714 = smul.u32 16, %s22
      $region48: #{aff_forward.5} parent=43 // pred_fallthru
        _
    $region44: #{aff_forward.5} parent=5 // pred_fallthru
      _
    %p715 = scmp.le.s32.totalorder 2, %s12
    // Predicated region
    $region49: #{aff_forward.5} parent=5 // pred_check
      %p716 = pneg %p715
    $region50: #{aff_forward.5} parent=5 // pred_check_branch
      %718 = sbr.rel (%p716) target = $region52
    $region51: #{aff_forward.5} parent=5 // pred_region
      %s719 = ssub.s32 %s12, 2
      // Predicated region
      $region53: #{aff_forward.5} parent=51 // pred_check
        %p720 = pneg %p207
      $region54: #{aff_forward.5} parent=51 // pred_check_branch
        %722 = sbr.rel (%p720) target = $region56
      $region55: #{aff_forward.5} parent=51 // pred_region
        %s723 = smul.u32 16, %s24
        %p724 = scmp.lt.s32.totalorder %s23, 1
        %s725 = scalar_select %p724, %s23, 1
        %p726 = scmp.lt.s32.totalorder %s723, 15
        %s727 = scalar_select %p726, %s723, 15
        %s728 = smul.addr %s725, 16
        %s729 = sadd.s32 %s727, %s728
        %s730 = smul.addr %s729, 8
        %s731 = scalar_lea.vmem %s6, %s730
      $region56: #{aff_forward.5} parent=51 // pred_fallthru
        _
    $region52: #{aff_forward.5} parent=5 // pred_fallthru
      _
  $region6: #{aff_forward.5} parent=0 // loop_footer
    %s16 = sadd.s32 1, %s12
  $region7: #{aff_forward.5} parent=0 // loop_footer_branch
    %11 = sbr.rel target = $region3
  $region8: #{aff_forward.5} parent=0 // loop_exit
    _

// kernel: aff_forward.4
$region0: #{aff_forward.4}
  #allocation0 [shape = 'u32[]', space=smem, size = 0x4, offset = 0x4, fixed_abs, tag = 'smem constant byte address 0x4 - core index']
  #allocation1 [shape = 'u32[144,128]{1,0:T(1,128)}', space=vmem, size = 0x12000, scoped, tag = 'internal scratch']
  %s0 = inlined_call_operand.vmem [shape: f32[2,256,16], index: 0, kind: input, shape index: {}]
  %s1 = inlined_call_operand.vmem [shape: f32[1,16], index: 1, kind: input, shape index: {}]
  %s2 = inlined_call_operand.vmem [shape: f32[1,16], index: 2, kind: input, shape index: {}]
  %s3 = inlined_call_operand.vmem [shape: bf16[16,64], index: 3, kind: input, shape index: {}]
  %s4 = inlined_call_operand.vmem [shape: f32[1,64], index: 4, kind: input, shape index: {}]
  %s5 = inlined_call_operand.vmem [shape: f32[2,256,64], index: 5, kind: output, shape index: {0}]
  %s6 = inlined_call_operand.vmem [shape: f32[2,1,1,64], index: 6, kind: output, shape index: {1}]
  %s7 = inlined_call_operand.vmem [shape: f32[2,1,1,64], index: 7, kind: output, shape index: {2}]
  %8 = xla_tuple %s5, %s6, %s7
  %s9 = sld [smem:[#allocation0]]
  $region69: #{aff_forward.4} parent=0
    _
  %s11 = ssub.s32 1, %s9
  %s12 = scalar_select 0, %s11, %s9
  loop: start=0, step=1, limit=4
  $region2: #{aff_forward.4} parent=0 // loop_pre_header
    _
  $region3: #{aff_forward.4} parent=0 // loop_header
    %s14 = sphi 0, %s18
    %p15 = scmp.ge.s32.totalorder %s14, 4
    %s21 = sphi 0, %s33
    %s22 = sphi 0, %s29
    %s23 = sphi 0, %s21
    %s24 = sphi 0, %s22
    %s25 = sphi 0, %s23
    %s26 = sphi 0, %s24
    %s38 = sphi 0, %s40
    %s41 = sphi 0, %s38
    %s42 = sphi 0, %s41
    %s58 = sphi 0, %s42
    %s62 = sphi 0, %s62
    %s64 = sphi 0, %s62
    %s65 = sphi 0, %s64
    %s79 = sphi 0, %s65
    %s83 = sphi 0, %s83
    %s85 = sphi 0, %s83
    %s86 = sphi 0, %s85
    %s100 = sphi 0, %s86
    %s104 = sphi 0, %s104
    %s106 = sphi 0, %s104
    %s107 = sphi 0, %s106
    %s121 = sphi 0, %s107
    %s125 = sphi 0, %s125
    %s127 = sphi 0, %s125
    %s128 = sphi 0, %s127
    %s142 = sphi 0, %s128
    %s150 = sphi 0, %s152
    %s153 = sphi 0, %s150
    %s154 = sphi 0, %s153
    %s170 = sphi 0, %s154
    %s178 = sphi 0, %s180
    %s181 = sphi 0, %s178
    %s182 = sphi 0, %s181
    %s198 = sphi 0, %s182
    %s206 = sphi 0, %s208
    %s209 = sphi 0, %s206
    %s210 = sphi 0, %s209
    %s226 = sphi 0, %s210
  $region4: #{aff_forward.4} parent=0 // loop_header_branch
    %17 = sbr.rel (%p15) target = $region8
  $region5: #{aff_forward.4} parent=0 // loop_body
    %s19 = ssub.s32 %s14, 1
    %s20 = ssub.s32 %s14, 2
    %s27 = sadd.s32 1, %s22
    %p28 = scmp.ge.s32.totalorder %s27, 1
    %s29 = scalar_select %p28, 0, %s27
    %s30 = sadd.s32 1, %s21
    %s31 = scalar_select %p28, %s30, %s21
    %p32 = scmp.ge.s32.totalorder %s31, 2
    %s33 = scalar_select %p32, 0, %s31
    %s34 = ssub.s32 %s21, %s33
    %s35 = ssub.s32 %s22, %s29
    %s36 = sor.u32 %s34, %s35
    %p37 = scmp.eq.s32.totalorder %s36, 0
    %s39 = sadd.s32 %s38, 1
    %s40 = scalar_select %p37, %s38, %s39
    %p43 = pneg %p37
    %p44 = scmp.eq.s32.totalorder %s14, 1
    %p45 = por %p43, %p44
    %p46 = scmp.ne.s32.totalorder %s38, %s41
    %p47 = scmp.eq.s32.totalorder %s14, 0
    %p48 = por %p46, %p47
    %p49 = scmp.ne.s32.totalorder %s38, %s41
    %p50 = scmp.eq.s32.totalorder %s19, 1
    %p51 = por %p49, %p50
    %p52 = scmp.ne.s32.totalorder %s41, %s42
    %p53 = scmp.eq.s32.totalorder %s19, 0
    %p54 = por %p52, %p53
    %p55 = scmp.ne.s32.totalorder %s41, %s42
    %p56 = scmp.eq.s32.totalorder %s20, 1
    %p57 = por %p55, %p56
    %p59 = scmp.ne.s32.totalorder %s42, %s58
    %p60 = scmp.eq.s32.totalorder %s20, 0
    %p61 = por %p59, %p60
    %s63 = sadd.s32 %s62, 1
    %p66 = scmp.eq.s32.totalorder %s14, 1
    %p67 = scmp.ne.s32.totalorder %s62, %s64
    %p68 = scmp.eq.s32.totalorder %s14, 0
    %p69 = por %p67, %p68
    %p70 = scmp.ne.s32.totalorder %s62, %s64
    %p71 = scmp.eq.s32.totalorder %s19, 1
    %p72 = por %p70, %p71
    %p73 = scmp.ne.s32.totalorder %s64, %s65
    %p74 = scmp.eq.s32.totalorder %s19, 0
    %p75 = por %p73, %p74
    %p76 = scmp.ne.s32.totalorder %s64, %s65
    %p77 = scmp.eq.s32.totalorder %s20, 1
    %p78 = por %p76, %p77
    %p80 = scmp.ne.s32.totalorder %s65, %s79
    %p81 = scmp.eq.s32.totalorder %s20, 0
    %p82 = por %p80, %p81
    %s84 = sadd.s32 %s83, 1
    %p87 = scmp.eq.s32.totalorder %s14, 1
    %p88 = scmp.ne.s32.totalorder %s83, %s85
    %p89 = scmp.eq.s32.totalorder %s14, 0
    %p90 = por %p88, %p89
    %p91 = scmp.ne.s32.totalorder %s83, %s85
    %p92 = scmp.eq.s32.totalorder %s19, 1
    %p93 = por %p91, %p92
    %p94 = scmp.ne.s32.totalorder %s85, %s86
    %p95 = scmp.eq.s32.totalorder %s19, 0
    %p96 = por %p94, %p95
    %p97 = scmp.ne.s32.totalorder %s85, %s86
    %p98 = scmp.eq.s32.totalorder %s20, 1
    %p99 = por %p97, %p98
    %p101 = scmp.ne.s32.totalorder %s86, %s100
    %p102 = scmp.eq.s32.totalorder %s20, 0
    %p103 = por %p101, %p102
    %s105 = sadd.s32 %s104, 1
    %p108 = scmp.eq.s32.totalorder %s14, 1
    %p109 = scmp.ne.s32.totalorder %s104, %s106
    %p110 = scmp.eq.s32.totalorder %s14, 0
    %p111 = por %p109, %p110
    %p112 = scmp.ne.s32.totalorder %s104, %s106
    %p113 = scmp.eq.s32.totalorder %s19, 1
    %p114 = por %p112, %p113
    %p115 = scmp.ne.s32.totalorder %s106, %s107
    %p116 = scmp.eq.s32.totalorder %s19, 0
    %p117 = por %p115, %p116
    %p118 = scmp.ne.s32.totalorder %s106, %s107
    %p119 = scmp.eq.s32.totalorder %s20, 1
    %p120 = por %p118, %p119
    %p122 = scmp.ne.s32.totalorder %s107, %s121
    %p123 = scmp.eq.s32.totalorder %s20, 0
    %p124 = por %p122, %p123
    %s126 = sadd.s32 %s125, 1
    %p129 = scmp.eq.s32.totalorder %s14, 1
    %p130 = scmp.ne.s32.totalorder %s125, %s127
    %p131 = scmp.eq.s32.totalorder %s14, 0
    %p132 = por %p130, %p131
    %p133 = scmp.ne.s32.totalorder %s125, %s127
    %p134 = scmp.eq.s32.totalorder %s19, 1
    %p135 = por %p133, %p134
    %p136 = scmp.ne.s32.totalorder %s127, %s128
    %p137 = scmp.eq.s32.totalorder %s19, 0
    %p138 = por %p136, %p137
    %p139 = scmp.ne.s32.totalorder %s127, %s128
    %p140 = scmp.eq.s32.totalorder %s20, 1
    %p141 = por %p139, %p140
    %p143 = scmp.ne.s32.totalorder %s128, %s142
    %p144 = scmp.eq.s32.totalorder %s20, 0
    %p145 = por %p143, %p144
    %s146 = ssub.s32 %s21, %s33
    %s147 = ssub.s32 %s22, %s29
    %s148 = sor.u32 %s146, %s147
    %p149 = scmp.eq.s32.totalorder %s148, 0
    %s151 = sadd.s32 %s150, 1
    %s152 = scalar_select %p149, %s150, %s151
    %p155 = pneg %p149
    %p156 = scmp.eq.s32.totalorder %s14, 1
    %p157 = por %p155, %p156
    %p158 = scmp.ne.s32.totalorder %s150, %s153
    %p159 = scmp.eq.s32.totalorder %s14, 0
    %p160 = por %p158, %p159
    %p161 = scmp.ne.s32.totalorder %s150, %s153
    %p162 = scmp.eq.s32.totalorder %s19, 1
    %p163 = por %p161, %p162
    %p164 = scmp.ne.s32.totalorder %s153, %s154
    %p165 = scmp.eq.s32.totalorder %s19, 0
    %p166 = por %p164, %p165
    %p167 = scmp.ne.s32.totalorder %s153, %s154
    %p168 = scmp.eq.s32.totalorder %s20, 1
    %p169 = por %p167, %p168
    %p171 = scmp.ne.s32.totalorder %s154, %s170
    %p172 = scmp.eq.s32.totalorder %s20, 0
    %p173 = por %p171, %p172
    %s174 = ssub.s32 %s21, %s33
    %s175 = ssub.s32 %s22, %s29
    %s176 = sor.u32 %s174, %s175
    %p177 = scmp.eq.s32.totalorder %s176, 0
    %s179 = sadd.s32 %s178, 1
    %s180 = scalar_select %p177, %s178, %s179
    %p183 = pneg %p177
    %p184 = scmp.eq.s32.totalorder %s14, 1
    %p185 = por %p183, %p184
    %p186 = scmp.ne.s32.totalorder %s178, %s181
    %p187 = scmp.eq.s32.totalorder %s14, 0
    %p188 = por %p186, %p187
    %p189 = scmp.ne.s32.totalorder %s178, %s181
    %p190 = scmp.eq.s32.totalorder %s19, 1
    %p191 = por %p189, %p190
    %p192 = scmp.ne.s32.totalorder %s181, %s182
    %p193 = scmp.eq.s32.totalorder %s19, 0
    %p194 = por %p192, %p193
    %p195 = scmp.ne.s32.totalorder %s181, %s182
    %p196 = scmp.eq.s32.totalorder %s20, 1
    %p197 = por %p195, %p196
    %p199 = scmp.ne.s32.totalorder %s182, %s198
    %p200 = scmp.eq.s32.totalorder %s20, 0
    %p201 = por %p199, %p200
    %s202 = ssub.s32 %s21, %s33
    %s203 = ssub.s32 %s22, %s29
    %s204 = sor.u32 %s202, %s203
    %p205 = scmp.eq.s32.totalorder %s204, 0
    %s207 = sadd.s32 %s206, 1
    %s208 = scalar_select %p205, %s206, %s207
    %p211 = pneg %p205
    %p212 = scmp.eq.s32.totalorder %s14, 1
    %p213 = por %p211, %p212
    %p214 = scmp.ne.s32.totalorder %s206, %s209
    %p215 = scmp.eq.s32.totalorder %s14, 0
    %p216 = por %p214, %p215
    %p217 = scmp.ne.s32.totalorder %s206, %s209
    %p218 = scmp.eq.s32.totalorder %s19, 1
    %p219 = por %p217, %p218
    %p220 = scmp.ne.s32.totalorder %s209, %s210
    %p221 = scmp.eq.s32.totalorder %s19, 0
    %p222 = por %p220, %p221
    %p223 = scmp.ne.s32.totalorder %s209, %s210
    %p224 = scmp.eq.s32.totalorder %s20, 1
    %p225 = por %p223, %p224
    %p227 = scmp.ne.s32.totalorder %s210, %s226
    %p228 = scmp.eq.s32.totalorder %s20, 0
    %p229 = por %p227, %p228
    %p230 = scmp.le.s32.totalorder 1, %s14
    %p231 = scmp.lt.s32.totalorder %s14, 3
    %p232 = pnand %p230, %p231
    %p233 = pneg %p232
    // Predicated region
    $region9: #{aff_forward.4} parent=5 // pred_check
      _
    $region10: #{aff_forward.4} parent=5 // pred_check_branch
      %235 = sbr.rel (%p232) target = $region12
    $region11: #{aff_forward.4} parent=5 // pred_region
      %s236 = ssub.s32 %s14, 1
      // Predicated region
      $region13: #{aff_forward.4} parent=11 // pred_check
        %p237 = pneg %p75
      $region14: #{aff_forward.4} parent=11 // pred_check_branch
        %239 = sbr.rel (%p237) target = $region16
      $region15: #{aff_forward.4} parent=11 // pred_region
        _
      $region16: #{aff_forward.4} parent=11 // pred_fallthru
        _
      // Predicated region
      $region17: #{aff_forward.4} parent=11 // pred_check
        %p240 = pneg %p96
      $region18: #{aff_forward.4} parent=11 // pred_check_branch
        %242 = sbr.rel (%p240) target = $region20
      $region19: #{aff_forward.4} parent=11 // pred_region
        _
      $region20: #{aff_forward.4} parent=11 // pred_fallthru
        _
      // Predicated region
      $region21: #{aff_forward.4} parent=11 // pred_check
        %p243 = pneg %p117
      $region22: #{aff_forward.4} parent=11 // pred_check_branch
        %245 = sbr.rel (%p243) target = $region24
      $region23: #{aff_forward.4} parent=11 // pred_region
        _
      $region24: #{aff_forward.4} parent=11 // pred_fallthru
        _
      // Predicated region
      $region25: #{aff_forward.4} parent=11 // pred_check
        %p246 = pneg %p138
      $region26: #{aff_forward.4} parent=11 // pred_check_branch
        %248 = sbr.rel (%p246) target = $region28
      $region27: #{aff_forward.4} parent=11 // pred_region
        _
      $region28: #{aff_forward.4} parent=11 // pred_fallthru
        _
    $region12: #{aff_forward.4} parent=5 // pred_fallthru
      _
    %p249 = scmp.lt.s32.totalorder %s14, 2
    // Predicated region
    $region29: #{aff_forward.4} parent=5 // pred_check
      %p250 = pneg %p249
    $region30: #{aff_forward.4} parent=5 // pred_check_branch
      %252 = sbr.rel (%p250) target = $region32
    $region31: #{aff_forward.4} parent=5 // pred_region
      // Predicated region
      $region33: #{aff_forward.4} parent=31 // pred_check
        %p253 = pneg %p48
      $region34: #{aff_forward.4} parent=31 // pred_check_branch
        %255 = sbr.rel (%p253) target = $region36
      $region35: #{aff_forward.4} parent=31 // pred_region
        %s256 = smul.u32 32, %s22
        %p257 = scmp.lt.s32.totalorder %s21, 1
        %s258 = scalar_select %p257, %s21, 1
        %p259 = scmp.lt.s32.totalorder %s256, 31
        %s260 = scalar_select %p259, %s256, 31
        %s261 = smul.addr %s258, 32
        %s262 = sadd.s32 %s260, %s261
        %s263 = smul.addr %s262, 8
        %s264 = scalar_lea.vmem %s0, %s263
        %s265 = smul.u32 32, %s22
      $region36: #{aff_forward.4} parent=31 // pred_fallthru
        _
    $region32: #{aff_forward.4} parent=5 // pred_fallthru
      _
    %p266 = scmp.le.s32.totalorder 1, %s14
    %p267 = scmp.lt.s32.totalorder %s14, 3
    %p268 = pnand %p266, %p267
    %p269 = pneg %p268
    // Predicated region
    $region37: #{aff_forward.4} parent=5 // pred_check
      _
    $region38: #{aff_forward.4} parent=5 // pred_check_branch
      %271 = sbr.rel (%p268) target = $region40
    $region39: #{aff_forward.4} parent=5 // pred_region
      %s272 = ssub.s32 %s14, 1
      %s273 = smul.u32 32, %s24
      %p274 = scmp.lt.s32.totalorder %s23, 1
      %s275 = scalar_select %p274, %s23, 1
      %p276 = scmp.lt.s32.totalorder %s273, 31
      %s277 = scalar_select %p276, %s273, 31
      %s278 = smul.addr %s275, 32
      %s279 = sadd.s32 %s277, %s278
      %s280 = smul.addr %s279, 8
      %s281 = scalar_lea.vmem %s0, %s280
      %p282 = pneg %p54
      %p283 = pneg %p51
      %p284 = pneg %p75
      %p285 = pneg %p72
      %p286 = pneg %p96
      %p287 = pneg %p93
      %p288 = pneg %p117
      %p289 = pneg %p114
      %p290 = pneg %p138
      %p291 = pneg %p135
      %p292 = pneg %p166
      %p293 = pneg %p163
      %s294 = smul.u32 32, %s24
      %p295 = scmp.lt.s32.totalorder %s23, 1
      %s296 = scalar_select %p295, %s23, 1
      %p297 = scmp.lt.s32.totalorder %s294, 31
      %s298 = scalar_select %p297, %s294, 31
      %s299 = smul.addr %s296, 32
      %s300 = sadd.s32 %s298, %s299
      %s301 = smul.addr %s300, 8
      %s302 = scalar_lea.vmem %s5, %s301
      %p303 = pneg %p194
      %p304 = pneg %p191
      %p305 = scmp.lt.s32.totalorder %s23, 1
      %s306 = scalar_select %p305, %s23, 1
      %p307 = scmp.lt.s32.totalorder %s24, 0
      %s308 = scalar_select %p307, %s24, 0
      %s309 = sadd.s32 %s308, %s306
      %s310 = scalar_lea.vmem %s6, %s309
      %p311 = pneg %p222
      %p312 = pneg %p219
      %p313 = scmp.lt.s32.totalorder %s23, 1
      %s314 = scalar_select %p313, %s23, 1
      %p315 = scmp.lt.s32.totalorder %s24, 0
      %s316 = scalar_select %p315, %s24, 0
      %s317 = sadd.s32 %s316, %s314
      %s318 = scalar_lea.vmem %s7, %s317
      %s319 = smul.u32 32, %s24
      %p320 = scmp.lt.s32.totalorder %s23, 1
      %s321 = scalar_select %p320, %s23, 1
      %p322 = scmp.lt.s32.totalorder %s319, 31
      %s323 = scalar_select %p322, %s319, 31
      %s324 = smul.addr %s321, 32
      %s325 = sadd.s32 %s323, %s324
      %s326 = smul.addr %s325, 8
      %s327 = scalar_lea.vmem %s0, %s326
      %s328 = smul.u32 32, %s24
      %s329 = smul.u32 32, %s24
      %p330 = scmp.lt.s32.totalorder %s23, 1
      %s331 = scalar_select %p330, %s23, 1
      %p332 = scmp.lt.s32.totalorder %s329, 31
      %s333 = scalar_select %p332, %s329, 31
      %s334 = smul.addr %s331, 32
      %s335 = sadd.s32 %s333, %s334
      %s336 = smul.addr %s335, 8
      %s337 = scalar_lea.vmem %s5, %s336
      %s338 = smul.u32 32, %s24
      %p339 = scmp.lt.s32.totalorder %s23, 1
      %s340 = scalar_select %p339, %s23, 1
      %p341 = scmp.lt.s32.totalorder %s24, 0
      %s342 = scalar_select %p341, %s24, 0
      %s343 = sadd.s32 %s342, %s340
      %s344 = scalar_lea.vmem %s6, %s343
      %p345 = scmp.lt.s32.totalorder %s23, 1
      %s346 = scalar_select %p345, %s23, 1
      %p347 = scmp.lt.s32.totalorder %s24, 0
      %s348 = scalar_select %p347, %s24, 0
      %s349 = sadd.s32 %s348, %s346
      %s350 = scalar_lea.vmem %s7, %s349
      %v352 = vld [vmem:[%s327] sm:$0xff]
      %v353 = vld [vmem:[%s327 + $0x8] sm:$0xff]
      %v354 = vld [vmem:[%s327 + $0x10] sm:$0xff]
      %v355 = vld [vmem:[%s327 + $0x18] sm:$0xff]
      %v356 = vld [vmem:[%s327 + $0x20] sm:$0xff]
      %v357 = vld [vmem:[%s327 + $0x28] sm:$0xff]
      %v358 = vld [vmem:[%s327 + $0x30] sm:$0xff]
      %v359 = vld [vmem:[%s327 + $0x38] sm:$0xff]
      %v360 = vld [vmem:[%s327 + $0x40] sm:$0xff]
      %v361 = vld [vmem:[%s327 + $0x48] sm:$0xff]
      %v362 = vld [vmem:[%s327 + $0x50] sm:$0xff]
      %v363 = vld [vmem:[%s327 + $0x58] sm:$0xff]
      %v364 = vld [vmem:[%s327 + $0x60] sm:$0xff]
      %v365 = vld [vmem:[%s327 + $0x68] sm:$0xff]
      %v366 = vld [vmem:[%s327 + $0x70] sm:$0xff]
      %v367 = vld [vmem:[%s327 + $0x78] sm:$0xff]
      %v368 = vld [vmem:[%s327 + $0x80] sm:$0xff]
      %v369 = vld [vmem:[%s327 + $0x88] sm:$0xff]
      %v370 = vld [vmem:[%s327 + $0x90] sm:$0xff]
      %v371 = vld [vmem:[%s327 + $0x98] sm:$0xff]
      %v372 = vld [vmem:[%s327 + $0xa0] sm:$0xff]
      %v373 = vld [vmem:[%s327 + $0xa8] sm:$0xff]
      %v374 = vld [vmem:[%s327 + $0xb0] sm:$0xff]
      %v375 = vld [vmem:[%s327 + $0xb8] sm:$0xff]
      %v376 = vld [vmem:[%s327 + $0xc0] sm:$0xff]
      %v377 = vld [vmem:[%s327 + $0xc8] sm:$0xff]
      %v378 = vld [vmem:[%s327 + $0xd0] sm:$0xff]
      %v379 = vld [vmem:[%s327 + $0xd8] sm:$0xff]
      %v380 = vld [vmem:[%s327 + $0xe0] sm:$0xff]
      %v381 = vld [vmem:[%s327 + $0xe8] sm:$0xff]
      %v382 = vld [vmem:[%s327 + $0xf0] sm:$0xff]
      %v383 = vld [vmem:[%s327 + $0xf8] sm:$0xff]
      %v384 = vld [vmem:[%s1] sm:$0x1]
      %v386 = vlaneseq
      %v387 = vshrl.u32 %v386, 7
      %v388 = vsub.s32 0, %v387
      %v389 = vrot.slane %v384, %v388
      %v391 = vmul.f32 %v352, %v389
      %v392 = vmul.f32 %v353, %v389
      %v393 = vmul.f32 %v354, %v389
      %v394 = vmul.f32 %v355, %v389
      %v395 = vmul.f32 %v356, %v389
      %v396 = vmul.f32 %v357, %v389
      %v397 = vmul.f32 %v358, %v389
      %v398 = vmul.f32 %v359, %v389
      %v399 = vmul.f32 %v360, %v389
      %v400 = vmul.f32 %v361, %v389
      %v401 = vmul.f32 %v362, %v389
      %v402 = vmul.f32 %v363, %v389
      %v403 = vmul.f32 %v364, %v389
      %v404 = vmul.f32 %v365, %v389
      %v405 = vmul.f32 %v366, %v389
      %v406 = vmul.f32 %v367, %v389
      %v407 = vmul.f32 %v368, %v389
      %v408 = vmul.f32 %v369, %v389
      %v409 = vmul.f32 %v370, %v389
      %v410 = vmul.f32 %v371, %v389
      %v411 = vmul.f32 %v372, %v389
      %v412 = vmul.f32 %v373, %v389
      %v413 = vmul.f32 %v374, %v389
      %v414 = vmul.f32 %v375, %v389
      %v415 = vmul.f32 %v376, %v389
      %v416 = vmul.f32 %v377, %v389
      %v417 = vmul.f32 %v378, %v389
      %v418 = vmul.f32 %v379, %v389
      %v419 = vmul.f32 %v380, %v389
      %v420 = vmul.f32 %v381, %v389
      %v421 = vmul.f32 %v382, %v389
      %v422 = vmul.f32 %v383, %v389
      %v423 = vld [vmem:[%s2] sm:$0x1]
      %v425 = vlaneseq
      %v426 = vshrl.u32 %v425, 7
      %v427 = vsub.s32 0, %v426
      %v428 = vrot.slane %v423, %v427
      %v430 = vadd.f32 %v391, %v428
      %v431 = vadd.f32 %v392, %v428
      %v432 = vadd.f32 %v393, %v428
      %v433 = vadd.f32 %v394, %v428
      %v434 = vadd.f32 %v395, %v428
      %v435 = vadd.f32 %v396, %v428
      %v436 = vadd.f32 %v397, %v428
      %v437 = vadd.f32 %v398, %v428
      %v438 = vadd.f32 %v399, %v428
      %v439 = vadd.f32 %v400, %v428
      %v440 = vadd.f32 %v401, %v428
      %v441 = vadd.f32 %v402, %v428
      %v442 = vadd.f32 %v403, %v428
      %v443 = vadd.f32 %v404, %v428
      %v444 = vadd.f32 %v405, %v428
      %v445 = vadd.f32 %v406, %v428
      %v446 = vadd.f32 %v407, %v428
      %v447 = vadd.f32 %v408, %v428
      %v448 = vadd.f32 %v409, %v428
      %v449 = vadd.f32 %v410, %v428
      %v450 = vadd.f32 %v411, %v428
      %v451 = vadd.f32 %v412, %v428
      %v452 = vadd.f32 %v413, %v428
      %v453 = vadd.f32 %v414, %v428
      %v454 = vadd.f32 %v415, %v428
      %v455 = vadd.f32 %v416, %v428
      %v456 = vadd.f32 %v417, %v428
      %v457 = vadd.f32 %v418, %v428
      %v458 = vadd.f32 %v419, %v428
      %v459 = vadd.f32 %v420, %v428
      %v460 = vadd.f32 %v421, %v428
      %v461 = vadd.f32 %v422, %v428
      %v462 = vmul.f32 %v430, 0.70710677
      %v463 = vmul.f32 %v431, 0.70710677
      %v464 = vmul.f32 %v432, 0.70710677
      %v465 = vmul.f32 %v433, 0.70710677
      %v466 = vmul.f32 %v434, 0.70710677
      %v467 = vmul.f32 %v435, 0.70710677
      %v468 = vmul.f32 %v436, 0.70710677
      %v469 = vmul.f32 %v437, 0.70710677
      %v470 = vmul.f32 %v438, 0.70710677
      %v471 = vmul.f32 %v439, 0.70710677
      %v472 = vmul.f32 %v440, 0.70710677
      %v473 = vmul.f32 %v441, 0.70710677
      %v474 = vmul.f32 %v442, 0.70710677
      %v475 = vmul.f32 %v443, 0.70710677
      %v476 = vmul.f32 %v444, 0.70710677
      %v477 = vmul.f32 %v445, 0.70710677
      %v478 = vmul.f32 %v446, 0.70710677
      %v479 = vmul.f32 %v447, 0.70710677
      %v480 = vmul.f32 %v448, 0.70710677
      %v481 = vmul.f32 %v449, 0.70710677
      %v482 = vmul.f32 %v450, 0.70710677
      %v483 = vmul.f32 %v451, 0.70710677
      %v484 = vmul.f32 %v452, 0.70710677
      %v485 = vmul.f32 %v453, 0.70710677
      %v486 = vmul.f32 %v454, 0.70710677
      %v487 = vmul.f32 %v455, 0.70710677
      %v488 = vmul.f32 %v456, 0.70710677
      %v489 = vmul.f32 %v457, 0.70710677
      %v490 = vmul.f32 %v458, 0.70710677
      %v491 = vmul.f32 %v459, 0.70710677
      %v492 = vmul.f32 %v460, 0.70710677
      %v493 = vmul.f32 %v461, 0.70710677
      %v494 = vand.u32 2147483647, %v462
      %v495 = vand.u32 2147483647, %v463
      %v496 = vand.u32 2147483647, %v464
      %v497 = vand.u32 2147483647, %v465
      %v498 = vand.u32 2147483647, %v466
      %v499 = vand.u32 2147483647, %v467
      %v500 = vand.u32 2147483647, %v468
      %v501 = vand.u32 2147483647, %v469
      %v502 = vand.u32 2147483647, %v470
      %v503 = vand.u32 2147483647, %v471
      %v504 = vand.u32 2147483647, %v472
      %v505 = vand.u32 2147483647, %v473
      %v506 = vand.u32 2147483647, %v474
      %v507 = vand.u32 2147483647, %v475
      %v508 = vand.u32 2147483647, %v476
      %v509 = vand.u32 2147483647, %v477
      %v510 = vand.u32 2147483647, %v478
      %v511 = vand.u32 2147483647, %v479
      %v512 = vand.u32 2147483647, %v480
      %v513 = vand.u32 2147483647, %v481
      %v514 = vand.u32 2147483647, %v482
      %v515 = vand.u32 2147483647, %v483
      %v516 = vand.u32 2147483647, %v484
      %v517 = vand.u32 2147483647, %v485
      %v518 = vand.u32 2147483647, %v486
      %v519 = vand.u32 2147483647, %v487
      %v520 = vand.u32 2147483647, %v488
      %v521 = vand.u32 2147483647, %v489
      %v522 = vand.u32 2147483647, %v490
      %v523 = vand.u32 2147483647, %v491
      %v524 = vand.u32 2147483647, %v492
      %v525 = vand.u32 2147483647, %v493
      %v526 = vmul.f32 %v494, 0.3275911
      %v527 = vmul.f32 %v495, 0.3275911
      %v528 = vmul.f32 %v496, 0.3275911
      %v529 = vmul.f32 %v497, 0.3275911
      %v530 = vmul.f32 %v498, 0.3275911
      %v531 = vmul.f32 %v499, 0.3275911
      %v532 = vmul.f32 %v500, 0.3275911
      %v533 = vmul.f32 %v501, 0.3275911
      %v534 = vmul.f32 %v502, 0.3275911
      %v535 = vmul.f32 %v503, 0.3275911
      %v536 = vmul.f32 %v504, 0.3275911
      %v537 = vmul.f32 %v505, 0.3275911
      %v538 = vmul.f32 %v506, 0.3275911
      %v539 = vmul.f32 %v507, 0.3275911
      %v540 = vmul.f32 %v508, 0.3275911
      %v541 = vmul.f32 %v509, 0.3275911
      %v542 = vmul.f32 %v510, 0.3275911
      %v543 = vmul.f32 %v511, 0.3275911
      %v544 = vmul.f32 %v512, 0.3275911
      %v545 = vmul.f32 %v513, 0.3275911
      %v546 = vmul.f32 %v514, 0.3275911
      %v547 = vmul.f32 %v515, 0.3275911
      %v548 = vmul.f32 %v516, 0.3275911
      %v549 = vmul.f32 %v517, 0.3275911
      %v550 = vmul.f32 %v518, 0.3275911
      %v551 = vmul.f32 %v519, 0.3275911
      %v552 = vmul.f32 %v520, 0.3275911
      %v553 = vmul.f32 %v521, 0.3275911
      %v554 = vmul.f32 %v522, 0.3275911
      %v555 = vmul.f32 %v523, 0.3275911
      %v556 = vmul.f32 %v524, 0.3275911
      %v557 = vmul.f32 %v525, 0.3275911
      %v558 = vadd.f32 %v526, 1.0
      %v559 = vadd.f32 %v527, 1.0
      %v560 = vadd.f32 %v528, 1.0
      %v561 = vadd.f32 %v529, 1.0
      %v562 = vadd.f32 %v530, 1.0
      %v563 = vadd.f32 %v531, 1.0
      %v564 = vadd.f32 %v532, 1.0
      %v565 = vadd.f32 %v533, 1.0
      %v566 = vadd.f32 %v534, 1.0
      %v567 = vadd.f32 %v535, 1.0
      %v568 = vadd.f32 %v536, 1.0
      %v569 = vadd.f32 %v537, 1.0
      %v570 = vadd.f32 %v538, 1.0
      %v571 = vadd.f32 %v539, 1.0
      %v572 = vadd.f32 %v540, 1.0
      %v573 = vadd.f32 %v541, 1.0
      %v574 = vadd.f32 %v542, 1.0
      %v575 = vadd.f32 %v543, 1.0
      %v576 = vadd.f32 %v544, 1.0
      %v577 = vadd.f32 %v545, 1.0
      %v578 = vadd.f32 %v546, 1.0
      %v579 = vadd.f32 %v547, 1.0
      %v580 = vadd.f32 %v548, 1.0
      %v581 = vadd.f32 %v549, 1.0
      %v582 = vadd.f32 %v550, 1.0
      %v583 = vadd.f32 %v551, 1.0
      %v584 = vadd.f32 %v552, 1.0
      %v585 = vadd.f32 %v553, 1.0
      %v586 = vadd.f32 %v554, 1.0
      %v587 = vadd.f32 %v555, 1.0
      %v588 = vadd.f32 %v556, 1.0
      %v589 = vadd.f32 %v557, 1.0
      %v590 = vrcp.pop %v558
      %v591 = vmul.f32 1.0, %v590
      %v592 = vrcp.pop %v559
      %v593 = vmul.f32 1.0, %v592
      %v594 = vrcp.pop %v560
      %v595 = vmul.f32 1.0, %v594
      %v596 = vrcp.pop %v561
      %v597 = vmul.f32 1.0, %v596
      %v598 = vrcp.pop %v562
      %v599 = vmul.f32 1.0, %v598
      %v600 = vrcp.pop %v563
      %v601 = vmul.f32 1.0, %v600
      %v602 = vrcp.pop %v564
      %v603 = vmul.f32 1.0, %v602
      %v604 = vrcp.pop %v565
      %v605 = vmul.f32 1.0, %v604
      %v606 = vrcp.pop %v566
      %v607 = vmul.f32 1.0, %v606
      %v608 = vrcp.pop %v567
      %v609 = vmul.f32 1.0, %v608
      %v610 = vrcp.pop %v568
      %v611 = vmul.f32 1.0, %v610
      %v612 = vrcp.pop %v569
      %v613 = vmul.f32 1.0, %v612
      %v614 = vrcp.pop %v570
      %v615 = vmul.f32 1.0, %v614
      %v616 = vrcp.pop %v571
      %v617 = vmul.f32 1.0, %v616
      %v618 = vrcp.pop %v572
      %v619 = vmul.f32 1.0, %v618
      %v620 = vrcp.pop %v573
      %v621 = vmul.f32 1.0, %v620
      %v622 = vrcp.pop %v574
      %v623 = vmul.f32 1.0, %v622
      %v624 = vrcp.pop %v575
      %v625 = vmul.f32 1.0, %v624
      %v626 = vrcp.pop %v576
      %v627 = vmul.f32 1.0, %v626
      %v628 = vrcp.pop %v577
      %v629 = vmul.f32 1.0, %v628
      %v630 = vrcp.pop %v578
      %v631 = vmul.f32 1.0, %v630
      %v632 = vrcp.pop %v579
      %v633 = vmul.f32 1.0, %v632
      %v634 = vrcp.pop %v580
      %v635 = vmul.f32 1.0, %v634
      %v636 = vrcp.pop %v581
      %v637 = vmul.f32 1.0, %v636
      %v638 = vrcp.pop %v582
      %v639 = vmul.f32 1.0, %v638
      %v640 = vrcp.pop %v583
      %v641 = vmul.f32 1.0, %v640
      %v642 = vrcp.pop %v584
      %v643 = vmul.f32 1.0, %v642
      %v644 = vrcp.pop %v585
      %v645 = vmul.f32 1.0, %v644
      %v646 = vrcp.pop %v586
      %v647 = vmul.f32 1.0, %v646
      %v648 = vrcp.pop %v587
      %v649 = vmul.f32 1.0, %v648
      %v650 = vrcp.pop %v588
      %v651 = vmul.f32 1.0, %v650
      %v652 = vrcp.pop %v589
      %v653 = vmul.f32 1.0, %v652
      %v654 = vmul.f32 %v591, 1.0614054
      %v655 = vmul.f32 %v593, 1.0614054
      %v656 = vmul.f32 %v595, 1.0614054
      %v657 = vmul.f32 %v597, 1.0614054
      %v658 = vmul.f32 %v599, 1.0614054
      %v659 = vmul.f32 %v601, 1.0614054
      %v660 = vmul.f32 %v603, 1.0614054
      %v661 = vmul.f32 %v605, 1.0614054
      %v662 = vmul.f32 %v607, 1.0614054
      %v663 = vmul.f32 %v609, 1.0614054
      %v664 = vmul.f32 %v611, 1.0614054
      %v665 = vmul.f32 %v613, 1.0614054
      %v666 = vmul.f32 %v615, 1.0614054
      %v667 = vmul.f32 %v617, 1.0614054
      %v668 = vmul.f32 %v619, 1.0614054
      %v669 = vmul.f32 %v621, 1.0614054
      %v670 = vmul.f32 %v623, 1.0614054
      %v671 = vmul.f32 %v625, 1.0614054
      %v672 = vmul.f32 %v627, 1.0614054
      %v673 = vmul.f32 %v629, 1.0614054
      %v674 = vmul.f32 %v631, 1.0614054
      %v675 = vmul.f32 %v633, 1.0614054
      %v676 = vmul.f32 %v635, 1.0614054
      %v677 = vmul.f32 %v637, 1.0614054
      %v678 = vmul.f32 %v639, 1.0614054
      %v679 = vmul.f32 %v641, 1.0614054
      %v680 = vmul.f32 %v643, 1.0614054
      %v681 = vmul.f32 %v645, 1.0614054
      %v682 = vmul.f32 %v647, 1.0614054
      %v683 = vmul.f32 %v649, 1.0614054
      %v684 = vmul.f32 %v651, 1.0614054
      %v685 = vmul.f32 %v653, 1.0614054
      %v686 = vadd.f32 %v654, -1.4531521
      %v687 = vadd.f32 %v655, -1.4531521
      %v688 = vadd.f32 %v656, -1.4531521
      %v689 = vadd.f32 %v657, -1.4531521
      %v690 = vadd.f32 %v658, -1.4531521
      %v691 = vadd.f32 %v659, -1.4531521
      %v692 = vadd.f32 %v660, -1.4531521
      %v693 = vadd.f32 %v661, -1.4531521
      %v694 = vadd.f32 %v662, -1.4531521
      %v695 = vadd.f32 %v663, -1.4531521
      %v696 = vadd.f32 %v664, -1.4531521
      %v697 = vadd.f32 %v665, -1.4531521
      %v698 = vadd.f32 %v666, -1.4531521
      %v699 = vadd.f32 %v667, -1.4531521
      %v700 = vadd.f32 %v668, -1.4531521
      %v701 = vadd.f32 %v669, -1.4531521
      %v702 = vadd.f32 %v670, -1.4531521
      %v703 = vadd.f32 %v671, -1.4531521
      %v704 = vadd.f32 %v672, -1.4531521
      %v705 = vadd.f32 %v673, -1.4531521
      %v706 = vadd.f32 %v674, -1.4531521
      %v707 = vadd.f32 %v675, -1.4531521
      %v708 = vadd.f32 %v676, -1.4531521
      %v709 = vadd.f32 %v677, -1.4531521
      %v710 = vadd.f32 %v678, -1.4531521
      %v711 = vadd.f32 %v679, -1.4531521
      %v712 = vadd.f32 %v680, -1.4531521
      %v713 = vadd.f32 %v681, -1.4531521
      %v714 = vadd.f32 %v682, -1.4531521
      %v715 = vadd.f32 %v683, -1.4531521
      %v716 = vadd.f32 %v684, -1.4531521
      %v717 = vadd.f32 %v685, -1.4531521
      %v718 = vmul.f32 %v591, %v686
      %v719 = vmul.f32 %v593, %v687
      %v720 = vmul.f32 %v595, %v688
      %v721 = vmul.f32 %v597, %v689
      %v722 = vmul.f32 %v599, %v690
      %v723 = vmul.f32 %v601, %v691
      %v724 = vmul.f32 %v603, %v692
      %v725 = vmul.f32 %v605, %v693
      %v726 = vmul.f32 %v607, %v694
      %v727 = vmul.f32 %v609, %v695
      %v728 = vmul.f32 %v611, %v696
      %v729 = vmul.f32 %v613, %v697
      %v730 = vmul.f32 %v615, %v698
      %v731 = vmul.f32 %v617, %v699
      %v732 = vmul.f32 %v619, %v700
      %v733 = vmul.f32 %v621, %v701
      %v734 = vmul.f32 %v623, %v702
      %v735 = vmul.f32 %v625, %v703
      %v736 = vmul.f32 %v627, %v704
      %v737 = vmul.f32 %v629, %v705
      %v738 = vmul.f32 %v631, %v706
      %v739 = vmul.f32 %v633, %v707
      %v740 = vmul.f32 %v635, %v708
      %v741 = vmul.f32 %v637, %v709
      %v742 = vmul.f32 %v639, %v710
      %v743 = vmul.f32 %v641, %v711
      %v744 = vmul.f32 %v643, %v712
      %v745 = vmul.f32 %v645, %v713
      %v746 = vmul.f32 %v647, %v714
      %v747 = vmul.f32 %v649, %v715
      %v748 = vmul.f32 %v651, %v716
      %v749 = vmul.f32 %v653, %v717
      %v750 = vadd.f32 %v718, 1.4214138
      %v751 = vadd.f32 %v719, 1.4214138
      %v752 = vadd.f32 %v720, 1.4214138
      %v753 = vadd.f32 %v721, 1.4214138
      %v754 = vadd.f32 %v722, 1.4214138
      %v755 = vadd.f32 %v723, 1.4214138
      %v756 = vadd.f32 %v724, 1.4214138
      %v757 = vadd.f32 %v725, 1.4214138
      %v758 = vadd.f32 %v726, 1.4214138
      %v759 = vadd.f32 %v727, 1.4214138
      %v760 = vadd.f32 %v728, 1.4214138
      %v761 = vadd.f32 %v729, 1.4214138
      %v762 = vadd.f32 %v730, 1.4214138
      %v763 = vadd.f32 %v731, 1.4214138
      %v764 = vadd.f32 %v732, 1.4214138
      %v765 = vadd.f32 %v733, 1.4214138
      %v766 = vadd.f32 %v734, 1.4214138
      %v767 = vadd.f32 %v735, 1.4214138
      %v768 = vadd.f32 %v736, 1.4214138
      %v769 = vadd.f32 %v737, 1.4214138
      %v770 = vadd.f32 %v738, 1.4214138
      %v771 = vadd.f32 %v739, 1.4214138
      %v772 = vadd.f32 %v740, 1.4214138
      %v773 = vadd.f32 %v741, 1.4214138
      %v774 = vadd.f32 %v742, 1.4214138
      %v775 = vadd.f32 %v743, 1.4214138
      %v776 = vadd.f32 %v744, 1.4214138
      %v777 = vadd.f32 %v745, 1.4214138
      %v778 = vadd.f32 %v746, 1.4214138
      %v779 = vadd.f32 %v747, 1.4214138
      %v780 = vadd.f32 %v748, 1.4214138
      %v781 = vadd.f32 %v749, 1.4214138
      %v782 = vmul.f32 %v591, %v750
      %v783 = vmul.f32 %v593, %v751
      %v784 = vmul.f32 %v595, %v752
      %v785 = vmul.f32 %v597, %v753
      %v786 = vmul.f32 %v599, %v754
      %v787 = vmul.f32 %v601, %v755
      %v788 = vmul.f32 %v603, %v756
      %v789 = vmul.f32 %v605, %v757
      %v790 = vmul.f32 %v607, %v758
      %v791 = vmul.f32 %v609, %v759
      %v792 = vmul.f32 %v611, %v760
      %v793 = vmul.f32 %v613, %v761
      %v794 = vmul.f32 %v615, %v762
      %v795 = vmul.f32 %v617, %v763
      %v796 = vmul.f32 %v619, %v764
      %v797 = vmul.f32 %v621, %v765
      %v798 = vmul.f32 %v623, %v766
      %v799 = vmul.f32 %v625, %v767
      %v800 = vmul.f32 %v627, %v768
      %v801 = vmul.f32 %v629, %v769
      %v802 = vmul.f32 %v631, %v770
      %v803 = vmul.f32 %v633, %v771
      %v804 = vmul.f32 %v635, %v772
      %v805 = vmul.f32 %v637, %v773
      %v806 = vmul.f32 %v639, %v774
      %v807 = vmul.f32 %v641, %v775
      %v808 = vmul.f32 %v643, %v776
      %v809 = vmul.f32 %v645, %v777
      %v810 = vmul.f32 %v647, %v778
      %v811 = vmul.f32 %v649, %v779
      %v812 = vmul.f32 %v651, %v780
      %v813 = vmul.f32 %v653, %v781
      %v814 = vadd.f32 %v782, -0.28449672
      %v815 = vadd.f32 %v783, -0.28449672
      %v816 = vadd.f32 %v784, -0.28449672
      %v817 = vadd.f32 %v785, -0.28449672
      %v818 = vadd.f32 %v786, -0.28449672
      %v819 = vadd.f32 %v787, -0.28449672
      %v820 = vadd.f32 %v788, -0.28449672
      %v821 = vadd.f32 %v789, -0.28449672
      %v822 = vadd.f32 %v790, -0.28449672
      %v823 = vadd.f32 %v791, -0.28449672
      %v824 = vadd.f32 %v792, -0.28449672
      %v825 = vadd.f32 %v793, -0.28449672
      %v826 = vadd.f32 %v794, -0.28449672
      %v827 = vadd.f32 %v795, -0.28449672
      %v828 = vadd.f32 %v796, -0.28449672
      %v829 = vadd.f32 %v797, -0.28449672
      %v830 = vadd.f32 %v798, -0.28449672
      %v831 = vadd.f32 %v799, -0.28449672
      %v832 = vadd.f32 %v800, -0.28449672
      %v833 = vadd.f32 %v801, -0.28449672
      %v834 = vadd.f32 %v802, -0.28449672
      %v835 = vadd.f32 %v803, -0.28449672
      %v836 = vadd.f32 %v804, -0.28449672
      %v837 = vadd.f32 %v805, -0.28449672
      %v838 = vadd.f32 %v806, -0.28449672
      %v839 = vadd.f32 %v807, -0.28449672
      %v840 = vadd.f32 %v808, -0.28449672
      %v841 = vadd.f32 %v809, -0.28449672
      %v842 = vadd.f32 %v810, -0.28449672
      %v843 = vadd.f32 %v811, -0.28449672
      %v844 = vadd.f32 %v812, -0.28449672
      %v845 = vadd.f32 %v813, -0.28449672
      %v846 = vmul.f32 %v591, %v814
      %v847 = vmul.f32 %v593, %v815
      %v848 = vmul.f32 %v595, %v816
      %v849 = vmul.f32 %v597, %v817
      %v850 = vmul.f32 %v599, %v818
      %v851 = vmul.f32 %v601, %v819
      %v852 = vmul.f32 %v603, %v820
      %v853 = vmul.f32 %v605, %v821
      %v854 = vmul.f32 %v607, %v822
      %v855 = vmul.f32 %v609, %v823
      %v856 = vmul.f32 %v611, %v824
      %v857 = vmul.f32 %v613, %v825
      %v858 = vmul.f32 %v615, %v826
      %v859 = vmul.f32 %v617, %v827
      %v860 = vmul.f32 %v619, %v828
      %v861 = vmul.f32 %v621, %v829
      %v862 = vmul.f32 %v623, %v830
      %v863 = vmul.f32 %v625, %v831
      %v864 = vmul.f32 %v627, %v832
      %v865 = vmul.f32 %v629, %v833
      %v866 = vmul.f32 %v631, %v834
      %v867 = vmul.f32 %v633, %v835
      %v868 = vmul.f32 %v635, %v836
      %v869 = vmul.f32 %v637, %v837
      %v870 = vmul.f32 %v639, %v838
      %v871 = vmul.f32 %v641, %v839
      %v872 = vmul.f32 %v643, %v840
      %v873 = vmul.f32 %v645, %v841
      %v874 = vmul.f32 %v647, %v842
      %v875 = vmul.f32 %v649, %v843
      %v876 = vmul.f32 %v651, %v844
      %v877 = vmul.f32 %v653, %v845
      %v878 = vadd.f32 %v846, 0.2548296
      %v879 = vadd.f32 %v847, 0.2548296
      %v880 = vadd.f32 %v848, 0.2548296
      %v881 = vadd.f32 %v849, 0.2548296
      %v882 = vadd.f32 %v850, 0.2548296
      %v883 = vadd.f32 %v851, 0.2548296
      %v884 = vadd.f32 %v852, 0.2548296
      %v885 = vadd.f32 %v853, 0.2548296
      %v886 = vadd.f32 %v854, 0.2548296
      %v887 = vadd.f32 %v855, 0.2548296
      %v888 = vadd.f32 %v856, 0.2548296
      %v889 = vadd.f32 %v857, 0.2548296
      %v890 = vadd.f32 %v858, 0.2548296
      %v891 = vadd.f32 %v859, 0.2548296
      %v892 = vadd.f32 %v860, 0.2548296
      %v893 = vadd.f32 %v861, 0.2548296
      %v894 = vadd.f32 %v862, 0.2548296
      %v895 = vadd.f32 %v863, 0.2548296
      %v896 = vadd.f32 %v864, 0.2548296
      %v897 = vadd.f32 %v865, 0.2548296
      %v898 = vadd.f32 %v866, 0.2548296
      %v899 = vadd.f32 %v867, 0.2548296
      %v900 = vadd.f32 %v868, 0.2548296
      %v901 = vadd.f32 %v869, 0.2548296
      %v902 = vadd.f32 %v870, 0.2548296
      %v903 = vadd.f32 %v871, 0.2548296
      %v904 = vadd.f32 %v872, 0.2548296
      %v905 = vadd.f32 %v873, 0.2548296
      %v906 = vadd.f32 %v874, 0.2548296
      %v907 = vadd.f32 %v875, 0.2548296
      %v908 = vadd.f32 %v876, 0.2548296
      %v909 = vadd.f32 %v877, 0.2548296
      %v910 = vmul.f32 %v591, %v878
      %v911 = vmul.f32 %v593, %v879
      %v912 = vmul.f32 %v595, %v880
      %v913 = vmul.f32 %v597, %v881
      %v914 = vmul.f32 %v599, %v882
      %v915 = vmul.f32 %v601, %v883
      %v916 = vmul.f32 %v603, %v884
      %v917 = vmul.f32 %v605, %v885
      %v918 = vmul.f32 %v607, %v886
      %v919 = vmul.f32 %v609, %v887
      %v920 = vmul.f32 %v611, %v888
      %v921 = vmul.f32 %v613, %v889
      %v922 = vmul.f32 %v615, %v890
      %v923 = vmul.f32 %v617, %v891
      %v924 = vmul.f32 %v619, %v892
      %v925 = vmul.f32 %v621, %v893
      %v926 = vmul.f32 %v623, %v894
      %v927 = vmul.f32 %v625, %v895
      %v928 = vmul.f32 %v627, %v896
      %v929 = vmul.f32 %v629, %v897
      %v930 = vmul.f32 %v631, %v898
      %v931 = vmul.f32 %v633, %v899
      %v932 = vmul.f32 %v635, %v900
      %v933 = vmul.f32 %v637, %v901
      %v934 = vmul.f32 %v639, %v902
      %v935 = vmul.f32 %v641, %v903
      %v936 = vmul.f32 %v643, %v904
      %v937 = vmul.f32 %v645, %v905
      %v938 = vmul.f32 %v647, %v906
      %v939 = vmul.f32 %v649, %v907
      %v940 = vmul.f32 %v651, %v908
      %v941 = vmul.f32 %v653, %v909
      %v942 = vsub.f32 0.0, %v494
      %v943 = vsub.f32 0.0, %v495
      %v944 = vsub.f32 0.0, %v496
      %v945 = vsub.f32 0.0, %v497
      %v946 = vsub.f32 0.0, %v498
      %v947 = vsub.f32 0.0, %v499
      %v948 = vsub.f32 0.0, %v500
      %v949 = vsub.f32 0.0, %v501
      %v950 = vsub.f32 0.0, %v502
      %v951 = vsub.f32 0.0, %v503
      %v952 = vsub.f32 0.0, %v504
      %v953 = vsub.f32 0.0, %v505
      %v954 = vsub.f32 0.0, %v506
      %v955 = vsub.f32 0.0, %v507
      %v956 = vsub.f32 0.0, %v508
      %v957 = vsub.f32 0.0, %v509
      %v958 = vsub.f32 0.0, %v510
      %v959 = vsub.f32 0.0, %v511
      %v960 = vsub.f32 0.0, %v512
      %v961 = vsub.f32 0.0, %v513
      %v962 = vsub.f32 0.0, %v514
      %v963 = vsub.f32 0.0, %v515
      %v964 = vsub.f32 0.0, %v516
      %v965 = vsub.f32 0.0, %v517
      %v966 = vsub.f32 0.0, %v518
      %v967 = vsub.f32 0.0, %v519
      %v968 = vsub.f32 0.0, %v520
      %v969 = vsub.f32 0.0, %v521
      %v970 = vsub.f32 0.0, %v522
      %v971 = vsub.f32 0.0, %v523
      %v972 = vsub.f32 0.0, %v524
      %v973 = vsub.f32 0.0, %v525
      %v974 = vmul.f32 %v942, %v494
      %v975 = vmul.f32 %v943, %v495
      %v976 = vmul.f32 %v944, %v496
      %v977 = vmul.f32 %v945, %v497
      %v978 = vmul.f32 %v946, %v498
      %v979 = vmul.f32 %v947, %v499
      %v980 = vmul.f32 %v948, %v500
      %v981 = vmul.f32 %v949, %v501
      %v982 = vmul.f32 %v950, %v502
      %v983 = vmul.f32 %v951, %v503
      %v984 = vmul.f32 %v952, %v504
      %v985 = vmul.f32 %v953, %v505
      %v986 = vmul.f32 %v954, %v506
      %v987 = vmul.f32 %v955, %v507
      %v988 = vmul.f32 %v956, %v508
      %v989 = vmul.f32 %v957, %v509
      %v990 = vmul.f32 %v958, %v510
      %v991 = vmul.f32 %v959, %v511
      %v992 = vmul.f32 %v960, %v512
      %v993 = vmul.f32 %v961, %v513
      %v994 = vmul.f32 %v962, %v514
      %v995 = vmul.f32 %v963, %v515
      %v996 = vmul.f32 %v964, %v516
      %v997 = vmul.f32 %v965, %v517
      %v998 = vmul.f32 %v966, %v518
      %v999 = vmul.f32 %v967, %v519
      %v1000 = vmul.f32 %v968, %v520
      %v1001 = vmul.f32 %v969, %v521
      %v1002 = vmul.f32 %v970, %v522
      %v1003 = vmul.f32 %v971, %v523
      %v1004 = vmul.f32 %v972, %v524
      %v1005 = vmul.f32 %v973, %v525
      %v1006 = vmul.f32 %v974, 1.442695
      %v1007 = vpow.pop %v1006
      %v1008 = vmul.f32 %v975, 1.442695
      %v1009 = vpow.pop %v1008
      %v1010 = vmul.f32 %v976, 1.442695
      %v1011 = vpow.pop %v1010
      %v1012 = vmul.f32 %v977, 1.442695
      %v1013 = vpow.pop %v1012
      %v1014 = vmul.f32 %v978, 1.442695
      %v1015 = vpow.pop %v1014
      %v1016 = vmul.f32 %v979, 1.442695
      %v1017 = vpow.pop %v1016
      %v1018 = vmul.f32 %v980, 1.442695
      %v1019 = vpow.pop %v1018
      %v1020 = vmul.f32 %v981, 1.442695
      %v1021 = vpow.pop %v1020
      %v1022 = vmul.f32 %v982, 1.442695
      %v1023 = vpow.pop %v1022
      %v1024 = vmul.f32 %v983, 1.442695
      %v1025 = vpow.pop %v1024
      %v1026 = vmul.f32 %v984, 1.442695
      %v1027 = vpow.pop %v1026
      %v1028 = vmul.f32 %v985, 1.442695
      %v1029 = vpow.pop %v1028
      %v1030 = vmul.f32 %v986, 1.442695
      %v1031 = vpow.pop %v1030
      %v1032 = vmul.f32 %v987, 1.442695
      %v1033 = vpow.pop %v1032
      %v1034 = vmul.f32 %v988, 1.442695
      %v1035 = vpow.pop %v1034
      %v1036 = vmul.f32 %v989, 1.442695
      %v1037 = vpow.pop %v1036
      %v1038 = vmul.f32 %v990, 1.442695
      %v1039 = vpow.pop %v1038
      %v1040 = vmul.f32 %v991, 1.442695
      %v1041 = vpow.pop %v1040
      %v1042 = vmul.f32 %v992, 1.442695
      %v1043 = vpow.pop %v1042
      %v1044 = vmul.f32 %v993, 1.442695
      %v1045 = vpow.pop %v1044
      %v1046 = vmul.f32 %v994, 1.442695
      %v1047 = vpow.pop %v1046
      %v1048 = vmul.f32 %v995, 1.442695
      %v1049 = vpow.pop %v1048
      %v1050 = vmul.f32 %v996, 1.442695
      %v1051 = vpow.pop %v1050
      %v1052 = vmul.f32 %v997, 1.442695
      %v1053 = vpow.pop %v1052
      %v1054 = vmul.f32 %v998, 1.442695
      %v1055 = vpow.pop %v1054
      %v1056 = vmul.f32 %v999, 1.442695
      %v1057 = vpow.pop %v1056
      %v1058 = vmul.f32 %v1000, 1.442695
      %v1059 = vpow.pop %v1058
      %v1060 = vmul.f32 %v1001, 1.442695
      %v1061 = vpow.pop %v1060
      %v1062 = vmul.f32 %v1002, 1.442695
      %v1063 = vpow.pop %v1062
      %v1064 = vmul.f32 %v1003, 1.442695
      %v1065 = vpow.pop %v1064
      %v1066 = vmul.f32 %v1004, 1.442695
      %v1067 = vpow.pop %v1066
      %v1068 = vmul.f32 %v1005, 1.442695
      %v1069 = vpow.pop %v1068
      %v1070 = vmul.f32 %v910, %v1007
      %v1071 = vmul.f32 %v911, %v1009
      %v1072 = vmul.f32 %v912, %v1011
      %v1073 = vmul.f32 %v913, %v1013
      %v1074 = vmul.f32 %v914, %v1015
      %v1075 = vmul.f32 %v915, %v1017
      %v1076 = vmul.f32 %v916, %v1019
      %v1077 = vmul.f32 %v917, %v1021
      %v1078 = vmul.f32 %v918, %v1023
      %v1079 = vmul.f32 %v919, %v1025
      %v1080 = vmul.f32 %v920, %v1027
      %v1081 = vmul.f32 %v921, %v1029
      %v1082 = vmul.f32 %v922, %v1031
      %v1083 = vmul.f32 %v923, %v1033
      %v1084 = vmul.f32 %v924, %v1035
      %v1085 = vmul.f32 %v925, %v1037
      %v1086 = vmul.f32 %v926, %v1039
      %v1087 = vmul.f32 %v927, %v1041
      %v1088 = vmul.f32 %v928, %v1043
      %v1089 = vmul.f32 %v929, %v1045
      %v1090 = vmul.f32 %v930, %v1047
      %v1091 = vmul.f32 %v931, %v1049
      %v1092 = vmul.f32 %v932, %v1051
      %v1093 = vmul.f32 %v933, %v1053
      %v1094 = vmul.f32 %v934, %v1055
      %v1095 = vmul.f32 %v935, %v1057
      %v1096 = vmul.f32 %v936, %v1059
      %v1097 = vmul.f32 %v937, %v1061
      %v1098 = vmul.f32 %v938, %v1063
      %v1099 = vmul.f32 %v939, %v1065
      %v1100 = vmul.f32 %v940, %v1067
      %v1101 = vmul.f32 %v941, %v1069
      %v1102 = vsub.f32 1.0, %v1070
      %v1103 = vsub.f32 1.0, %v1071
      %v1104 = vsub.f32 1.0, %v1072
      %v1105 = vsub.f32 1.0, %v1073
      %v1106 = vsub.f32 1.0, %v1074
      %v1107 = vsub.f32 1.0, %v1075
      %v1108 = vsub.f32 1.0, %v1076
      %v1109 = vsub.f32 1.0, %v1077
      %v1110 = vsub.f32 1.0, %v1078
      %v1111 = vsub.f32 1.0, %v1079
      %v1112 = vsub.f32 1.0, %v1080
      %v1113 = vsub.f32 1.0, %v1081
      %v1114 = vsub.f32 1.0, %v1082
      %v1115 = vsub.f32 1.0, %v1083
      %v1116 = vsub.f32 1.0, %v1084
      %v1117 = vsub.f32 1.0, %v1085
      %v1118 = vsub.f32 1.0, %v1086
      %v1119 = vsub.f32 1.0, %v1087
      %v1120 = vsub.f32 1.0, %v1088
      %v1121 = vsub.f32 1.0, %v1089
      %v1122 = vsub.f32 1.0, %v1090
      %v1123 = vsub.f32 1.0, %v1091
      %v1124 = vsub.f32 1.0, %v1092
      %v1125 = vsub.f32 1.0, %v1093
      %v1126 = vsub.f32 1.0, %v1094
      %v1127 = vsub.f32 1.0, %v1095
      %v1128 = vsub.f32 1.0, %v1096
      %v1129 = vsub.f32 1.0, %v1097
      %v1130 = vsub.f32 1.0, %v1098
      %v1131 = vsub.f32 1.0, %v1099
      %v1132 = vsub.f32 1.0, %v1100
      %v1133 = vsub.f32 1.0, %v1101
      %vm1134 = vcmp.lt.f32.partialorder %v462, 0.0
      %vm1135 = vcmp.lt.f32.partialorder %v463, 0.0
      %vm1136 = vcmp.lt.f32.partialorder %v464, 0.0
      %vm1137 = vcmp.lt.f32.partialorder %v465, 0.0
      %vm1138 = vcmp.lt.f32.partialorder %v466, 0.0
      %vm1139 = vcmp.lt.f32.partialorder %v467, 0.0
      %vm1140 = vcmp.lt.f32.partialorder %v468, 0.0
      %vm1141 = vcmp.lt.f32.partialorder %v469, 0.0
      %vm1142 = vcmp.lt.f32.partialorder %v470, 0.0
      %vm1143 = vcmp.lt.f32.partialorder %v471, 0.0
      %vm1144 = vcmp.lt.f32.partialorder %v472, 0.0
      %vm1145 = vcmp.lt.f32.partialorder %v473, 0.0
      %vm1146 = vcmp.lt.f32.partialorder %v474, 0.0
      %vm1147 = vcmp.lt.f32.partialorder %v475, 0.0
      %vm1148 = vcmp.lt.f32.partialorder %v476, 0.0
      %vm1149 = vcmp.lt.f32.partialorder %v477, 0.0
      %vm1150 = vcmp.lt.f32.partialorder %v478, 0.0
      %vm1151 = vcmp.lt.f32.partialorder %v479, 0.0
      %vm1152 = vcmp.lt.f32.partialorder %v480, 0.0
      %vm1153 = vcmp.lt.f32.partialorder %v481, 0.0
      %vm1154 = vcmp.lt.f32.partialorder %v482, 0.0
      %vm1155 = vcmp.lt.f32.partialorder %v483, 0.0
      %vm1156 = vcmp.lt.f32.partialorder %v484, 0.0
      %vm1157 = vcmp.lt.f32.partialorder %v485, 0.0
      %vm1158 = vcmp.lt.f32.partialorder %v486, 0.0
      %vm1159 = vcmp.lt.f32.partialorder %v487, 0.0
      %vm1160 = vcmp.lt.f32.partialorder %v488, 0.0
      %vm1161 = vcmp.lt.f32.partialorder %v489, 0.0
      %vm1162 = vcmp.lt.f32.partialorder %v490, 0.0
      %vm1163 = vcmp.lt.f32.partialorder %v491, 0.0
      %vm1164 = vcmp.lt.f32.partialorder %v492, 0.0
      %vm1165 = vcmp.lt.f32.partialorder %v493, 0.0
      %v1166 = vsub.f32 0.0, %v1102
      %v1167 = vsub.f32 0.0, %v1103
      %v1168 = vsub.f32 0.0, %v1104
      %v1169 = vsub.f32 0.0, %v1105
      %v1170 = vsub.f32 0.0, %v1106
      %v1171 = vsub.f32 0.0, %v1107
      %v1172 = vsub.f32 0.0, %v1108
      %v1173 = vsub.f32 0.0, %v1109
      %v1174 = vsub.f32 0.0, %v1110
      %v1175 = vsub.f32 0.0, %v1111
      %v1176 = vsub.f32 0.0, %v1112
      %v1177 = vsub.f32 0.0, %v1113
      %v1178 = vsub.f32 0.0, %v1114
      %v1179 = vsub.f32 0.0, %v1115
      %v1180 = vsub.f32 0.0, %v1116
      %v1181 = vsub.f32 0.0, %v1117
      %v1182 = vsub.f32 0.0, %v1118
      %v1183 = vsub.f32 0.0, %v1119
      %v1184 = vsub.f32 0.0, %v1120
      %v1185 = vsub.f32 0.0, %v1121
      %v1186 = vsub.f32 0.0, %v1122
      %v1187 = vsub.f32 0.0, %v1123
      %v1188 = vsub.f32 0.0, %v1124
      %v1189 = vsub.f32 0.0, %v1125
      %v1190 = vsub.f32 0.0, %v1126
      %v1191 = vsub.f32 0.0, %v1127
      %v1192 = vsub.f32 0.0, %v1128
      %v1193 = vsub.f32 0.0, %v1129
      %v1194 = vsub.f32 0.0, %v1130
      %v1195 = vsub.f32 0.0, %v1131
      %v1196 = vsub.f32 0.0, %v1132
      %v1197 = vsub.f32 0.0, %v1133
      %v1198 = vsel %vm1134, %v1166, %v1102
      %v1199 = vsel %vm1135, %v1167, %v1103
      %v1200 = vsel %vm1136, %v1168, %v1104
      %v1201 = vsel %vm1137, %v1169, %v1105
      %v1202 = vsel %vm1138, %v1170, %v1106
      %v1203 = vsel %vm1139, %v1171, %v1107
      %v1204 = vsel %vm1140, %v1172, %v1108
      %v1205 = vsel %vm1141, %v1173, %v1109
      %v1206 = vsel %vm1142, %v1174, %v1110
      %v1207 = vsel %vm1143, %v1175, %v1111
      %v1208 = vsel %vm1144, %v1176, %v1112
      %v1209 = vsel %vm1145, %v1177, %v1113
      %v1210 = vsel %vm1146, %v1178, %v1114
      %v1211 = vsel %vm1147, %v1179, %v1115
      %v1212 = vsel %vm1148, %v1180, %v1116
      %v1213 = vsel %vm1149, %v1181, %v1117
      %v1214 = vsel %vm1150, %v1182, %v1118
      %v1215 = vsel %vm1151, %v1183, %v1119
      %v1216 = vsel %vm1152, %v1184, %v1120
      %v1217 = vsel %vm1153, %v1185, %v1121
      %v1218 = vsel %vm1154, %v1186, %v1122
      %v1219 = vsel %vm1155, %v1187, %v1123
      %v1220 = vsel %vm1156, %v1188, %v1124
      %v1221 = vsel %vm1157, %v1189, %v1125
      %v1222 = vsel %vm1158, %v1190, %v1126
      %v1223 = vsel %vm1159, %v1191, %v1127
      %v1224 = vsel %vm1160, %v1192, %v1128
      %v1225 = vsel %vm1161, %v1193, %v1129
      %v1226 = vsel %vm1162, %v1194, %v1130
      %v1227 = vsel %vm1163, %v1195, %v1131
      %v1228 = vsel %vm1164, %v1196, %v1132
      %v1229 = vsel %vm1165, %v1197, %v1133
      %v1230 = vmul.f32 %v430, 0.5
      %v1231 = vmul.f32 %v431, 0.5
      %v1232 = vmul.f32 %v432, 0.5
      %v1233 = vmul.f32 %v433, 0.5
      %v1234 = vmul.f32 %v434, 0.5
      %v1235 = vmul.f32 %v435, 0.5
      %v1236 = vmul.f32 %v436, 0.5
      %v1237 = vmul.f32 %v437, 0.5
      %v1238 = vmul.f32 %v438, 0.5
      %v1239 = vmul.f32 %v439, 0.5
      %v1240 = vmul.f32 %v440, 0.5
      %v1241 = vmul.f32 %v441, 0.5
      %v1242 = vmul.f32 %v442, 0.5
      %v1243 = vmul.f32 %v443, 0.5
      %v1244 = vmul.f32 %v444, 0.5
      %v1245 = vmul.f32 %v445, 0.5
      %v1246 = vmul.f32 %v446, 0.5
      %v1247 = vmul.f32 %v447, 0.5
      %v1248 = vmul.f32 %v448, 0.5
      %v1249 = vmul.f32 %v449, 0.5
      %v1250 = vmul.f32 %v450, 0.5
      %v1251 = vmul.f32 %v451, 0.5
      %v1252 = vmul.f32 %v452, 0.5
      %v1253 = vmul.f32 %v453, 0.5
      %v1254 = vmul.f32 %v454, 0.5
      %v1255 = vmul.f32 %v455, 0.5
      %v1256 = vmul.f32 %v456, 0.5
      %v1257 = vmul.f32 %v457, 0.5
      %v1258 = vmul.f32 %v458, 0.5
      %v1259 = vmul.f32 %v459, 0.5
      %v1260 = vmul.f32 %v460, 0.5
      %v1261 = vmul.f32 %v461, 0.5
      %v1262 = vadd.f32 %v1198, 1.0
      %v1263 = vadd.f32 %v1199, 1.0
      %v1264 = vadd.f32 %v1200, 1.0
      %v1265 = vadd.f32 %v1201, 1.0
      %v1266 = vadd.f32 %v1202, 1.0
      %v1267 = vadd.f32 %v1203, 1.0
      %v1268 = vadd.f32 %v1204, 1.0
      %v1269 = vadd.f32 %v1205, 1.0
      %v1270 = vadd.f32 %v1206, 1.0
      %v1271 = vadd.f32 %v1207, 1.0
      %v1272 = vadd.f32 %v1208, 1.0
      %v1273 = vadd.f32 %v1209, 1.0
      %v1274 = vadd.f32 %v1210, 1.0
      %v1275 = vadd.f32 %v1211, 1.0
      %v1276 = vadd.f32 %v1212, 1.0
      %v1277 = vadd.f32 %v1213, 1.0
      %v1278 = vadd.f32 %v1214, 1.0
      %v1279 = vadd.f32 %v1215, 1.0
      %v1280 = vadd.f32 %v1216, 1.0
      %v1281 = vadd.f32 %v1217, 1.0
      %v1282 = vadd.f32 %v1218, 1.0
      %v1283 = vadd.f32 %v1219, 1.0
      %v1284 = vadd.f32 %v1220, 1.0
      %v1285 = vadd.f32 %v1221, 1.0
      %v1286 = vadd.f32 %v1222, 1.0
      %v1287 = vadd.f32 %v1223, 1.0
      %v1288 = vadd.f32 %v1224, 1.0
      %v1289 = vadd.f32 %v1225, 1.0
      %v1290 = vadd.f32 %v1226, 1.0
      %v1291 = vadd.f32 %v1227, 1.0
      %v1292 = vadd.f32 %v1228, 1.0
      %v1293 = vadd.f32 %v1229, 1.0
      %v1294 = vmul.f32 %v1230, %v1262
      %v1295 = vmul.f32 %v1231, %v1263
      %v1296 = vmul.f32 %v1232, %v1264
      %v1297 = vmul.f32 %v1233, %v1265
      %v1298 = vmul.f32 %v1234, %v1266
      %v1299 = vmul.f32 %v1235, %v1267
      %v1300 = vmul.f32 %v1236, %v1268
      %v1301 = vmul.f32 %v1237, %v1269
      %v1302 = vmul.f32 %v1238, %v1270
      %v1303 = vmul.f32 %v1239, %v1271
      %v1304 = vmul.f32 %v1240, %v1272
      %v1305 = vmul.f32 %v1241, %v1273
      %v1306 = vmul.f32 %v1242, %v1274
      %v1307 = vmul.f32 %v1243, %v1275
      %v1308 = vmul.f32 %v1244, %v1276
      %v1309 = vmul.f32 %v1245, %v1277
      %v1310 = vmul.f32 %v1246, %v1278
      %v1311 = vmul.f32 %v1247, %v1279
      %v1312 = vmul.f32 %v1248, %v1280
      %v1313 = vmul.f32 %v1249, %v1281
      %v1314 = vmul.f32 %v1250, %v1282
      %v1315 = vmul.f32 %v1251, %v1283
      %v1316 = vmul.f32 %v1252, %v1284
      %v1317 = vmul.f32 %v1253, %v1285
      %v1318 = vmul.f32 %v1254, %v1286
      %v1319 = vmul.f32 %v1255, %v1287
      %v1320 = vmul.f32 %v1256, %v1288
      %v1321 = vmul.f32 %v1257, %v1289
      %v1322 = vmul.f32 %v1258, %v1290
      %v1323 = vmul.f32 %v1259, %v1291
      %v1324 = vmul.f32 %v1260, %v1292
      %v1325 = vmul.f32 %v1261, %v1293
      %v1326 = vpack.c.bf16 %v1295, %v1294
      %v1327 = vpack.c.bf16 %v1297, %v1296
      %v1328 = vpack.c.bf16 %v1299, %v1298
      %v1329 = vpack.c.bf16 %v1301, %v1300
      %v1330 = vpack.c.bf16 %v1303, %v1302
      %v1331 = vpack.c.bf16 %v1305, %v1304
      %v1332 = vpack.c.bf16 %v1307, %v1306
      %v1333 = vpack.c.bf16 %v1309, %v1308
      %v1334 = vpack.c.bf16 %v1311, %v1310
      %v1335 = vpack.c.bf16 %v1313, %v1312
      %v1336 = vpack.c.bf16 %v1315, %v1314
      %v1337 = vpack.c.bf16 %v1317, %v1316
      %v1338 = vpack.c.bf16 %v1319, %v1318
      %v1339 = vpack.c.bf16 %v1321, %v1320
      %v1340 = vpack.c.bf16 %v1323, %v1322
      %v1341 = vpack.c.bf16 %v1325, %v1324
      %v1342 = vld [vmem:[%s3] sm:$0xf]
      %v1343 = vld [vmem:[%s3 + $0x4] sm:$0xf]
      %v1344 = vld [vmem:[%s4] sm:$0x1]
      %v1346 = vlaneseq
      %v1347 = vshrl.u32 %v1346, 7
      %v1348 = vsub.s32 0, %v1347
      %v1349 = vrot.slane %v1344, %v1348
      %v1353 = vunpack.c.l.b16 %v1342
      %v1354 = vunpack.c.l.b16 %v1343
      %v1355 = vpack.c.b16 %v1354, %v1353
      %vm1357 = vcmask 130048
      %v1359 = vsel %vm1357, %v1326, 0
      %v1362 = vsel %vm1357, %v1327, 0
      %v1365 = vsel %vm1357, %v1328, 0
      %v1368 = vsel %vm1357, %v1329, 0
      %v1371 = vsel %vm1357, %v1330, 0
      %v1374 = vsel %vm1357, %v1331, 0
      %v1377 = vsel %vm1357, %v1332, 0
      %v1380 = vsel %vm1357, %v1333, 0
      %v1383 = vsel %vm1357, %v1334, 0
      %v1386 = vsel %vm1357, %v1335, 0
      %v1389 = vsel %vm1357, %v1336, 0
      %v1392 = vsel %vm1357, %v1337, 0
      %v1395 = vsel %vm1357, %v1338, 0
      %v1398 = vsel %vm1357, %v1339, 0
      %v1401 = vsel %vm1357, %v1340, 0
      %v1404 = vsel %vm1357, %v1341, 0
      %1406 = vmatprep.subr.bf16.mxu0 0
      %1407 = vmatpush1.bf16.msra.mxu0 %v1355
      %1408 = vmatprep.subr.bf16.mxu0 0
      %1409 = vmatpush1.bf16.msra.mxu0 0
      %1410 = vmatprep.subr.bf16.mxu0 0
      %1411 = vmatpush1.bf16.msra.mxu0 0
      %1412 = vmatprep.subr.bf16.mxu0 0
      %1413 = vmatpush1.bf16.msra.mxu0 0
      %1414 = vmatprep.subr.bf16.mxu0 0
      %1415 = vmatpush1.bf16.msra.mxu0 0
      %1416 = vmatprep.subr.bf16.mxu0 0
      %1417 = vmatpush1.bf16.msra.mxu0 0
      %1418 = vmatprep.subr.bf16.mxu0 0
      %1419 = vmatpush1.bf16.msra.mxu0 0
      %1420 = vmatprep.subr.bf16.mxu0 0
      %1421 = vmatpush1.bf16.msra.mxu0 0
      %1422 = vmatprep.subr.bf16.mxu0 0
      %1423 = vmatpush1.bf16.msra.mxu0 0
      %1424 = vmatprep.subr.bf16.mxu0 0
      %1425 = vmatpush1.bf16.msra.mxu0 0
      %1426 = vmatprep.subr.bf16.mxu0 0
      %1427 = vmatpush1.bf16.msra.mxu0 0
      %1428 = vmatprep.subr.bf16.mxu0 0
      %1429 = vmatpush1.bf16.msra.mxu0 0
      %1430 = vmatprep.subr.bf16.mxu0 0
      %1431 = vmatpush1.bf16.msra.mxu0 0
      %1432 = vmatprep.subr.bf16.mxu0 0
      %1433 = vmatpush1.bf16.msra.mxu0 0
      %1434 = vmatprep.subr.bf16.mxu0 0
      %1435 = vmatpush1.bf16.msra.mxu0 0
      %1436 = vmatprep.subr.bf16.mxu0 0
      %1437 = vmatpush1.bf16.msra.mxu0 0
      %1438 = vmatprep.mubr.bf16.mxu0 0
      %1439 = vmatmul.mubr.bf16.gmra.mrb[0].mxu0 %v1359
      %v1440 = vpop.f32.mrb[0].mxu0
      %v1441 = vadd.f32 %v1349, %v1440
      %v1442 = vpop.f32.mrb[0].mxu0
      %v1443 = vpop.f32.mrb[0].mxu0
      %v1444 = vadd.f32 %v1349, %v1443
      %v1445 = vpop.f32.mrb[0].mxu0
      %1446 = vmatprep.mubr.bf16.mxu0 0
      %1447 = vmatmul.mubr.bf16.gmra.mrb[0].mxu0 %v1362
      %v1448 = vpop.f32.mrb[0].mxu0
      %v1449 = vadd.f32 %v1349, %v1448
      %v1450 = vpop.f32.mrb[0].mxu0
      %v1451 = vpop.f32.mrb[0].mxu0
      %v1452 = vadd.f32 %v1349, %v1451
      %v1453 = vpop.f32.mrb[0].mxu0
      %1454 = vmatprep.mubr.bf16.mxu0 0
      %1455 = vmatmul.mubr.bf16.gmra.mrb[0].mxu0 %v1365
      %v1456 = vpop.f32.mrb[0].mxu0
      %v1457 = vadd.f32 %v1349, %v1456
      %v1458 = vpop.f32.mrb[0].mxu0
      %v1459 = vpop.f32.mrb[0].mxu0
      %v1460 = vadd.f32 %v1349, %v1459
      %v1461 = vpop.f32.mrb[0].mxu0
      %1462 = vmatprep.mubr.bf16.mxu0 0
      %1463 = vmatmul.mubr.bf16.gmra.mrb[0].mxu0 %v1368
      %v1464 = vpop.f32.mrb[0].mxu0
      %v1465 = vadd.f32 %v1349, %v1464
      %v1466 = vpop.f32.mrb[0].mxu0
      %v1467 = vpop.f32.mrb[0].mxu0
      %v1468 = vadd.f32 %v1349, %v1467
      %v1469 = vpop.f32.mrb[0].mxu0
      %1470 = vmatprep.mubr.bf16.mxu0 0
      %1471 = vmatmul.mubr.bf16.gmra.mrb[0].mxu0 %v1371
      %v1472 = vpop.f32.mrb[0].mxu0
      %v1473 = vadd.f32 %v1349, %v1472
      %v1474 = vpop.f32.mrb[0].mxu0
      %v1475 = vpop.f32.mrb[0].mxu0
      %v1476 = vadd.f32 %v1349, %v1475
      %v1477 = vpop.f32.mrb[0].mxu0
      %1478 = vmatprep.mubr.bf16.mxu0 0
      %1479 = vmatmul.mubr.bf16.gmra.mrb[0].mxu0 %v1374
      %v1480 = vpop.f32.mrb[0].mxu0
      %v1481 = vadd.f32 %v1349, %v1480
      %v1482 = vpop.f32.mrb[0].mxu0
      %v1483 = vpop.f32.mrb[0].mxu0
      %v1484 = vadd.f32 %v1349, %v1483
      %v1485 = vpop.f32.mrb[0].mxu0
      %1486 = vmatprep.mubr.bf16.mxu0 0
      %1487 = vmatmul.mubr.bf16.gmra.mrb[0].mxu0 %v1377
      %v1488 = vpop.f32.mrb[0].mxu0
      %v1489 = vadd.f32 %v1349, %v1488
      %v1490 = vpop.f32.mrb[0].mxu0
      %v1491 = vpop.f32.mrb[0].mxu0
      %v1492 = vadd.f32 %v1349, %v1491
      %v1493 = vpop.f32.mrb[0].mxu0
      %1494 = vmatprep.mubr.bf16.mxu0 0
      %1495 = vmatmul.mubr.bf16.gmra.mrb[0].mxu0 %v1380
      %v1496 = vpop.f32.mrb[0].mxu0
      %v1497 = vadd.f32 %v1349, %v1496
      %v1498 = vpop.f32.mrb[0].mxu0
      %v1499 = vpop.f32.mrb[0].mxu0
      %v1500 = vadd.f32 %v1349, %v1499
      %v1501 = vpop.f32.mrb[0].mxu0
      %1502 = vmatprep.mubr.bf16.mxu0 0
      %1503 = vmatmul.mubr.bf16.gmra.mrb[0].mxu0 %v1383
      %v1504 = vpop.f32.mrb[0].mxu0
      %v1505 = vadd.f32 %v1349, %v1504
      %v1506 = vpop.f32.mrb[0].mxu0
      %v1507 = vpop.f32.mrb[0].mxu0
      %v1508 = vadd.f32 %v1349, %v1507
      %v1509 = vpop.f32.mrb[0].mxu0
      %1510 = vmatprep.mubr.bf16.mxu0 0
      %1511 = vmatmul.mubr.bf16.gmra.mrb[0].mxu0 %v1386
      %v1512 = vpop.f32.mrb[0].mxu0
      %v1513 = vadd.f32 %v1349, %v1512
      %v1514 = vpop.f32.mrb[0].mxu0
      %v1515 = vpop.f32.mrb[0].mxu0
      %v1516 = vadd.f32 %v1349, %v1515
      %v1517 = vpop.f32.mrb[0].mxu0
      %1518 = vmatprep.mubr.bf16.mxu0 0
      %1519 = vmatmul.mubr.bf16.gmra.mrb[0].mxu0 %v1389
      %v1520 = vpop.f32.mrb[0].mxu0
      %v1521 = vadd.f32 %v1349, %v1520
      %v1522 = vpop.f32.mrb[0].mxu0
      %v1523 = vpop.f32.mrb[0].mxu0
      %v1524 = vadd.f32 %v1349, %v1523
      %v1525 = vpop.f32.mrb[0].mxu0
      %1526 = vmatprep.mubr.bf16.mxu0 0
      %1527 = vmatmul.mubr.bf16.gmra.mrb[0].mxu0 %v1392
      %v1528 = vpop.f32.mrb[0].mxu0
      %v1529 = vadd.f32 %v1349, %v1528
      %v1530 = vpop.f32.mrb[0].mxu0
      %v1531 = vpop.f32.mrb[0].mxu0
      %v1532 = vadd.f32 %v1349, %v1531
      %v1533 = vpop.f32.mrb[0].mxu0
      %1534 = vmatprep.mubr.bf16.mxu0 0
      %1535 = vmatmul.mubr.bf16.gmra.mrb[0].mxu0 %v1395
      %v1536 = vpop.f32.mrb[0].mxu0
      %v1537 = vadd.f32 %v1349, %v1536
      %v1538 = vpop.f32.mrb[0].mxu0
      %v1539 = vpop.f32.mrb[0].mxu0
      %v1540 = vadd.f32 %v1349, %v1539
      %v1541 = vpop.f32.mrb[0].mxu0
      %1542 = vmatprep.mubr.bf16.mxu0 0
      %1543 = vmatmul.mubr.bf16.gmra.mrb[0].mxu0 %v1398
      %v1544 = vpop.f32.mrb[0].mxu0
      %v1545 = vadd.f32 %v1349, %v1544
      %v1546 = vpop.f32.mrb[0].mxu0
      %v1547 = vpop.f32.mrb[0].mxu0
      %v1548 = vadd.f32 %v1349, %v1547
      %v1549 = vpop.f32.mrb[0].mxu0
      %1550 = vmatprep.mubr.bf16.mxu0 0
      %1551 = vmatmul.mubr.bf16.gmra.mrb[0].mxu0 %v1401
      %v1552 = vpop.f32.mrb[0].mxu0
      %v1553 = vadd.f32 %v1349, %v1552
      %v1554 = vpop.f32.mrb[0].mxu0
      %v1555 = vpop.f32.mrb[0].mxu0
      %v1556 = vadd.f32 %v1349, %v1555
      %v1557 = vpop.f32.mrb[0].mxu0
      %1558 = vmatprep.mubr.bf16.mxu0 0
      %1559 = vmatmul.mubr.bf16.gmra.mrb[0].mxu0 %v1404
      %v1560 = vpop.f32.mrb[0].mxu0
      %v1561 = vadd.f32 %v1349, %v1560
      %v1562 = vpop.f32.mrb[0].mxu0
      %v1563 = vpop.f32.mrb[0].mxu0
      %v1564 = vadd.f32 %v1349, %v1563
      %v1565 = vpop.f32.mrb[0].mxu0
      %1566 = vdwg.mxu0
      %vm1567 = vcmask 523264
      %1568 = vst.msk [vmem:[%s337] sm:$0xff] %vm1567, %v1441
      %1569 = vst.msk [vmem:[%s337 + $0x8] sm:$0xff] %vm1567, %v1444
      %1570 = vst.msk [vmem:[%s337 + $0x10] sm:$0xff] %vm1567, %v1449
      %1571 = vst.msk [vmem:[%s337 + $0x18] sm:$0xff] %vm1567, %v1452
      %1572 = vst.msk [vmem:[%s337 + $0x20] sm:$0xff] %vm1567, %v1457
      %1573 = vst.msk [vmem:[%s337 + $0x28] sm:$0xff] %vm1567, %v1460
      %1574 = vst.msk [vmem:[%s337 + $0x30] sm:$0xff] %vm1567, %v1465
      %1575 = vst.msk [vmem:[%s337 + $0x38] sm:$0xff] %vm1567, %v1468
      %1576 = vst.msk [vmem:[%s337 + $0x40] sm:$0xff] %vm1567, %v1473
      %1577 = vst.msk [vmem:[%s337 + $0x48] sm:$0xff] %vm1567, %v1476
      %1578 = vst.msk [vmem:[%s337 + $0x50] sm:$0xff] %vm1567, %v1481
      %1579 = vst.msk [vmem:[%s337 + $0x58] sm:$0xff] %vm1567, %v1484
      %1580 = vst.msk [vmem:[%s337 + $0x60] sm:$0xff] %vm1567, %v1489
      %1581 = vst.msk [vmem:[%s337 + $0x68] sm:$0xff] %vm1567, %v1492
      %1582 = vst.msk [vmem:[%s337 + $0x70] sm:$0xff] %vm1567, %v1497
      %1583 = vst.msk [vmem:[%s337 + $0x78] sm:$0xff] %vm1567, %v1500
      %1584 = vst.msk [vmem:[%s337 + $0x80] sm:$0xff] %vm1567, %v1505
      %1585 = vst.msk [vmem:[%s337 + $0x88] sm:$0xff] %vm1567, %v1508
      %1586 = vst.msk [vmem:[%s337 + $0x90] sm:$0xff] %vm1567, %v1513
      %1587 = vst.msk [vmem:[%s337 + $0x98] sm:$0xff] %vm1567, %v1516
      %1588 = vst.msk [vmem:[%s337 + $0xa0] sm:$0xff] %vm1567, %v1521
      %1589 = vst.msk [vmem:[%s337 + $0xa8] sm:$0xff] %vm1567, %v1524
      %1590 = vst.msk [vmem:[%s337 + $0xb0] sm:$0xff] %vm1567, %v1529
      %1591 = vst.msk [vmem:[%s337 + $0xb8] sm:$0xff] %vm1567, %v1532
      %1592 = vst.msk [vmem:[%s337 + $0xc0] sm:$0xff] %vm1567, %v1537
      %1593 = vst.msk [vmem:[%s337 + $0xc8] sm:$0xff] %vm1567, %v1540
      %1594 = vst.msk [vmem:[%s337 + $0xd0] sm:$0xff] %vm1567, %v1545
      %1595 = vst.msk [vmem:[%s337 + $0xd8] sm:$0xff] %vm1567, %v1548
      %1596 = vst.msk [vmem:[%s337 + $0xe0] sm:$0xff] %vm1567, %v1553
      %1597 = vst.msk [vmem:[%s337 + $0xe8] sm:$0xff] %vm1567, %v1556
      %1598 = vst.msk [vmem:[%s337 + $0xf0] sm:$0xff] %vm1567, %v1561
      %1599 = vst.msk [vmem:[%s337 + $0xf8] sm:$0xff] %vm1567, %v1564
      %v1600 = vsel %vm1567, %v1441, 0.0
      %v1601 = vsel %vm1567, %v1444, 0.0
      %v1602 = vadd.f32 %v1600, %v1601
      %v1603 = vsel %vm1567, %v1449, 0.0
      %v1604 = vadd.f32 %v1602, %v1603
      %v1605 = vsel %vm1567, %v1452, 0.0
      %v1606 = vadd.f32 %v1604, %v1605
      %v1607 = vsel %vm1567, %v1457, 0.0
      %v1608 = vadd.f32 %v1606, %v1607
      %v1609 = vsel %vm1567, %v1460, 0.0
      %v1610 = vadd.f32 %v1608, %v1609
      %v1611 = vsel %vm1567, %v1465, 0.0
      %v1612 = vadd.f32 %v1610, %v1611
      %v1613 = vsel %vm1567, %v1468, 0.0
      %v1614 = vadd.f32 %v1612, %v1613
      %v1615 = vsel %vm1567, %v1473, 0.0
      %v1616 = vadd.f32 %v1614, %v1615
      %v1617 = vsel %vm1567, %v1476, 0.0
      %v1618 = vadd.f32 %v1616, %v1617
      %v1619 = vsel %vm1567, %v1481, 0.0
      %v1620 = vadd.f32 %v1618, %v1619
      %v1621 = vsel %vm1567, %v1484, 0.0
      %v1622 = vadd.f32 %v1620, %v1621
      %v1623 = vsel %vm1567, %v1489, 0.0
      %v1624 = vadd.f32 %v1622, %v1623
      %v1625 = vsel %vm1567, %v1492, 0.0
      %v1626 = vadd.f32 %v1624, %v1625
      %v1627 = vsel %vm1567, %v1497, 0.0
      %v1628 = vadd.f32 %v1626, %v1627
      %v1629 = vsel %vm1567, %v1500, 0.0
      %v1630 = vadd.f32 %v1628, %v1629
      %v1631 = vsel %vm1567, %v1505, 0.0
      %v1632 = vadd.f32 %v1630, %v1631
      %v1633 = vsel %vm1567, %v1508, 0.0
      %v1634 = vadd.f32 %v1632, %v1633
      %v1635 = vsel %vm1567, %v1513, 0.0
      %v1636 = vadd.f32 %v1634, %v1635
      %v1637 = vsel %vm1567, %v1516, 0.0
      %v1638 = vadd.f32 %v1636, %v1637
      %v1639 = vsel %vm1567, %v1521, 0.0
      %v1640 = vadd.f32 %v1638, %v1639
      %v1641 = vsel %vm1567, %v1524, 0.0
      %v1642 = vadd.f32 %v1640, %v1641
      %v1643 = vsel %vm1567, %v1529, 0.0
      %v1644 = vadd.f32 %v1642, %v1643
      %v1645 = vsel %vm1567, %v1532, 0.0
      %v1646 = vadd.f32 %v1644, %v1645
      %v1647 = vsel %vm1567, %v1537, 0.0
      %v1648 = vadd.f32 %v1646, %v1647
      %v1649 = vsel %vm1567, %v1540, 0.0
      %v1650 = vadd.f32 %v1648, %v1649
      %v1651 = vsel %vm1567, %v1545, 0.0
      %v1652 = vadd.f32 %v1650, %v1651
      %v1653 = vsel %vm1567, %v1548, 0.0
      %v1654 = vadd.f32 %v1652, %v1653
      %v1655 = vsel %vm1567, %v1553, 0.0
      %v1656 = vadd.f32 %v1654, %v1655
      %v1657 = vsel %vm1567, %v1556, 0.0
      %v1658 = vadd.f32 %v1656, %v1657
      %v1659 = vsel %vm1567, %v1561, 0.0
      %v1660 = vadd.f32 %v1658, %v1659
      %v1661 = vsel %vm1567, %v1564, 0.0
      %v1662 = vadd.f32 %v1660, %v1661
      %v1663 = vrot.slane %v1662, 4
      %v1664 = vadd.f32 %v1662, %v1663
      %v1665 = vrot.slane %v1664, 2
      %v1666 = vadd.f32 %v1664, %v1665
      %v1667 = vrot.slane %v1666, 1
      %v1668 = vadd.f32 %v1666, %v1667
      %vm1669 = vcmask 516096
      %1670 = vst.msk [vmem:[%s344] sm:$0x1] %vm1669, %v1668
      %v1671 = vmul.f32 %v1441, %v1441
      %v1672 = vmul.f32 %v1444, %v1444
      %v1673 = vmul.f32 %v1449, %v1449
      %v1674 = vmul.f32 %v1452, %v1452
      %v1675 = vmul.f32 %v1457, %v1457
      %v1676 = vmul.f32 %v1460, %v1460
      %v1677 = vmul.f32 %v1465, %v1465
      %v1678 = vmul.f32 %v1468, %v1468
      %v1679 = vmul.f32 %v1473, %v1473
      %v1680 = vmul.f32 %v1476, %v1476
      %v1681 = vmul.f32 %v1481, %v1481
      %v1682 = vmul.f32 %v1484, %v1484
      %v1683 = vmul.f32 %v1489, %v1489
      %v1684 = vmul.f32 %v1492, %v1492
      %v1685 = vmul.f32 %v1497, %v1497
      %v1686 = vmul.f32 %v1500, %v1500
      %v1687 = vmul.f32 %v1505, %v1505
      %v1688 = vmul.f32 %v1508, %v1508
      %v1689 = vmul.f32 %v1513, %v1513
      %v1690 = vmul.f32 %v1516, %v1516
      %v1691 = vmul.f32 %v1521, %v1521
      %v1692 = vmul.f32 %v1524, %v1524
      %v1693 = vmul.f32 %v1529, %v1529
      %v1694 = vmul.f32 %v1532, %v1532
      %v1695 = vmul.f32 %v1537, %v1537
      %v1696 = vmul.f32 %v1540, %v1540
      %v1697 = vmul.f32 %v1545, %v1545
      %v1698 = vmul.f32 %v1548, %v1548
      %v1699 = vmul.f32 %v1553, %v1553
      %v1700 = vmul.f32 %v1556, %v1556
      %v1701 = vmul.f32 %v1561, %v1561
      %v1702 = vmul.f32 %v1564, %v1564
      %v1703 = vsel %vm1567, %v1671, 0.0
      %v1704 = vsel %vm1567, %v1672, 0.0
      %v1705 = vadd.f32 %v1703, %v1704
      %v1706 = vsel %vm1567, %v1673, 0.0
      %v1707 = vadd.f32 %v1705, %v1706
      %v1708 = vsel %vm1567, %v1674, 0.0
      %v1709 = vadd.f32 %v1707, %v1708
      %v1710 = vsel %vm1567, %v1675, 0.0
      %v1711 = vadd.f32 %v1709, %v1710
      %v1712 = vsel %vm1567, %v1676, 0.0
      %v1713 = vadd.f32 %v1711, %v1712
      %v1714 = vsel %vm1567, %v1677, 0.0
      %v1715 = vadd.f32 %v1713, %v1714
      %v1716 = vsel %vm1567, %v1678, 0.0
      %v1717 = vadd.f32 %v1715, %v1716
      %v1718 = vsel %vm1567, %v1679, 0.0
      %v1719 = vadd.f32 %v1717, %v1718
      %v1720 = vsel %vm1567, %v1680, 0.0
      %v1721 = vadd.f32 %v1719, %v1720
      %v1722 = vsel %vm1567, %v1681, 0.0
      %v1723 = vadd.f32 %v1721, %v1722
      %v1724 = vsel %vm1567, %v1682, 0.0
      %v1725 = vadd.f32 %v1723, %v1724
      %v1726 = vsel %vm1567, %v1683, 0.0
      %v1727 = vadd.f32 %v1725, %v1726
      %v1728 = vsel %vm1567, %v1684, 0.0
      %v1729 = vadd.f32 %v1727, %v1728
      %v1730 = vsel %vm1567, %v1685, 0.0
      %v1731 = vadd.f32 %v1729, %v1730
      %v1732 = vsel %vm1567, %v1686, 0.0
      %v1733 = vadd.f32 %v1731, %v1732
      %v1734 = vsel %vm1567, %v1687, 0.0
      %v1735 = vadd.f32 %v1733, %v1734
      %v1736 = vsel %vm1567, %v1688, 0.0
      %v1737 = vadd.f32 %v1735, %v1736
      %v1738 = vsel %vm1567, %v1689, 0.0
      %v1739 = vadd.f32 %v1737, %v1738
      %v1740 = vsel %vm1567, %v1690, 0.0
      %v1741 = vadd.f32 %v1739, %v1740
      %v1742 = vsel %vm1567, %v1691, 0.0
      %v1743 = vadd.f32 %v1741, %v1742
      %v1744 = vsel %vm1567, %v1692, 0.0
      %v1745 = vadd.f32 %v1743, %v1744
      %v1746 = vsel %vm1567, %v1693, 0.0
      %v1747 = vadd.f32 %v1745, %v1746
      %v1748 = vsel %vm1567, %v1694, 0.0
      %v1749 = vadd.f32 %v1747, %v1748
      %v1750 = vsel %vm1567, %v1695, 0.0
      %v1751 = vadd.f32 %v1749, %v1750
      %v1752 = vsel %vm1567, %v1696, 0.0
      %v1753 = vadd.f32 %v1751, %v1752
      %v1754 = vsel %vm1567, %v1697, 0.0
      %v1755 = vadd.f32 %v1753, %v1754
      %v1756 = vsel %vm1567, %v1698, 0.0
      %v1757 = vadd.f32 %v1755, %v1756
      %v1758 = vsel %vm1567, %v1699, 0.0
      %v1759 = vadd.f32 %v1757, %v1758
      %v1760 = vsel %vm1567, %v1700, 0.0
      %v1761 = vadd.f32 %v1759, %v1760
      %v1762 = vsel %vm1567, %v1701, 0.0
      %v1763 = vadd.f32 %v1761, %v1762
      %v1764 = vsel %vm1567, %v1702, 0.0
      %v1765 = vadd.f32 %v1763, %v1764
      %v1766 = vrot.slane %v1765, 4
      %v1767 = vadd.f32 %v1765, %v1766
      %v1768 = vrot.slane %v1767, 2
      %v1769 = vadd.f32 %v1767, %v1768
      %v1770 = vrot.slane %v1769, 1
      %v1771 = vadd.f32 %v1769, %v1770
      %1772 = vst.msk [vmem:[%s350] sm:$0x1] %vm1669, %v1771
      %s1773 = smul.u32 32, %s24
      %p1774 = scmp.lt.s32.totalorder %s23, 1
      %s1775 = scalar_select %p1774, %s23, 1
      %p1776 = scmp.lt.s32.totalorder %s1773, 31
      %s1777 = scalar_select %p1776, %s1773, 31
      %s1778 = smul.addr %s1775, 32
      %s1779 = sadd.s32 %s1777, %s1778
      %s1780 = smul.addr %s1779, 8
      %s1781 = scalar_lea.vmem %s5, %s1780
      %p1782 = scmp.lt.s32.totalorder %s23, 1
      %s1783 = scalar_select %p1782, %s23, 1
      %p1784 = scmp.lt.s32.totalorder %s24, 0
      %s1785 = scalar_select %p1784, %s24, 0
      %s1786 = sadd.s32 %s1785, %s1783
      %s1787 = scalar_lea.vmem %s6, %s1786
      %p1788 = scmp.lt.s32.totalorder %s23, 1
      %s1789 = scalar_select %p1788, %s23, 1
      %p1790 = scmp.lt.s32.totalorder %s24, 0
      %s1791 = scalar_select %p1790, %s24, 0
      %s1792 = sadd.s32 %s1791, %s1789
      %s1793 = scalar_lea.vmem %s7, %s1792
      // Predicated region
      $region41: #{aff_forward.4} parent=39 // pred_check
        %p1794 = pneg %p163
      $region42: #{aff_forward.4} parent=39 // pred_check_branch
        %1796 = sbr.rel (%p1794) target = $region44
      $region43: #{aff_forward.4} parent=39 // pred_region
        %s1797 = smul.u32 32, %s24
      $region44: #{aff_forward.4} parent=39 // pred_fallthru
        _
      // Predicated region
      $region45: #{aff_forward.4} parent=39 // pred_check
        %p1798 = pneg %p191
      $region46: #{aff_forward.4} parent=39 // pred_check_branch
        %1800 = sbr.rel (%p1798) target = $region48
      $region47: #{aff_forward.4} parent=39 // pred_region
        _
      $region48: #{aff_forward.4} parent=39 // pred_fallthru
        _
      // Predicated region
      $region49: #{aff_forward.4} parent=39 // pred_check
        %p1801 = pneg %p219
      $region50: #{aff_forward.4} parent=39 // pred_check_branch
        %1803 = sbr.rel (%p1801) target = $region52
      $region51: #{aff_forward.4} parent=39 // pred_region
        _
      $region52: #{aff_forward.4} parent=39 // pred_fallthru
        _
    $region40: #{aff_forward.4} parent=5 // pred_fallthru
      _
    %p1804 = scmp.le.s32.totalorder 2, %s14
    // Predicated region
    $region53: #{aff_forward.4} parent=5 // pred_check
      %p1805 = pneg %p1804
    $region54: #{aff_forward.4} parent=5 // pred_check_branch
      %1807 = sbr.rel (%p1805) target = $region56
    $region55: #{aff_forward.4} parent=5 // pred_region
      %s1808 = ssub.s32 %s14, 2
      // Predicated region
      $region57: #{aff_forward.4} parent=55 // pred_check
        %p1809 = pneg %p169
      $region58: #{aff_forward.4} parent=55 // pred_check_branch
        %1811 = sbr.rel (%p1809) target = $region60
      $region59: #{aff_forward.4} parent=55 // pred_region
        %s1812 = smul.u32 32, %s26
        %p1813 = scmp.lt.s32.totalorder %s25, 1
        %s1814 = scalar_select %p1813, %s25, 1
        %p1815 = scmp.lt.s32.totalorder %s1812, 31
        %s1816 = scalar_select %p1815, %s1812, 31
        %s1817 = smul.addr %s1814, 32
        %s1818 = sadd.s32 %s1816, %s1817
        %s1819 = smul.addr %s1818, 8
        %s1820 = scalar_lea.vmem %s5, %s1819
      $region60: #{aff_forward.4} parent=55 // pred_fallthru
        _
      // Predicated region
      $region61: #{aff_forward.4} parent=55 // pred_check
        %p1821 = pneg %p197
      $region62: #{aff_forward.4} parent=55 // pred_check_branch
        %1823 = sbr.rel (%p1821) target = $region64
      $region63: #{aff_forward.4} parent=55 // pred_region
        %p1824 = scmp.lt.s32.totalorder %s25, 1
        %s1825 = scalar_select %p1824, %s25, 1
        %p1826 = scmp.lt.s32.totalorder %s26, 0
        %s1827 = scalar_select %p1826, %s26, 0
        %s1828 = sadd.s32 %s1827, %s1825
        %s1829 = scalar_lea.vmem %s6, %s1828
      $region64: #{aff_forward.4} parent=55 // pred_fallthru
        _
      // Predicated region
      $region65: #{aff_forward.4} parent=55 // pred_check
        %p1830 = pneg %p225
      $region66: #{aff_forward.4} parent=55 // pred_check_branch
        %1832 = sbr.rel (%p1830) target = $region68
      $region67: #{aff_forward.4} parent=55 // pred_region
        %p1833 = scmp.lt.s32.totalorder %s25, 1
        %s1834 = scalar_select %p1833, %s25, 1
        %p1835 = scmp.lt.s32.totalorder %s26, 0
        %s1836 = scalar_select %p1835, %s26, 0
        %s1837 = sadd.s32 %s1836, %s1834
        %s1838 = scalar_lea.vmem %s7, %s1837
      $region68: #{aff_forward.4} parent=55 // pred_fallthru
        _
    $region56: #{aff_forward.4} parent=5 // pred_fallthru
      _
  $region6: #{aff_forward.4} parent=0 // loop_footer
    %s18 = sadd.s32 1, %s14
  $region7: #{aff_forward.4} parent=0 // loop_footer_branch
    %13 = sbr.rel target = $region3
  $region8: #{aff_forward.4} parent=0 // loop_exit
    _

</llo_original>
